<compile_context>
chip_gen: v6e
topology: v6e:2x2x1
jax: 0.10.0
libtpu: 0.0.40
codegen_flags: <defaults>
</compile_context>

<pallas_src>
import math
import functools

import jax
import jax.numpy as jnp
from jax.experimental import pallas as pl
from jax.experimental.pallas import tpu as pltpu


# ----------------------------- VMEM budgeting -------------------------------

def _vmem_limit_bytes(frac=0.85):
    # Query physical VMEM and leave headroom (v5e/v6e: 128 MiB, v7x: 64 MiB).
    try:
        cap = int(pltpu.get_tpu_info().vmem_capacity_bytes)
    except Exception:
        cap = 64 * 1024 * 1024
    return int(cap * frac)


# --------------------------- tiled linear kernel ----------------------------

def _linear_kernel(x_ref, w_ref, b_ref, o_ref, acc_ref, *, activation):
    @pl.when(pl.program_id(2) == 0)
    def _():
        acc_ref[...] = jnp.zeros_like(acc_ref)

    # bf16 operands, f32 accumulation.
    acc_ref[...] += jnp.dot(x_ref[...].astype(jnp.bfloat16),
                            w_ref[...].astype(jnp.bfloat16),
                            preferred_element_type=jnp.float32)

    @pl.when(pl.program_id(2) == pl.num_programs(2) - 1)
    def _():
        y = acc_ref[...] + b_ref[...].astype(jnp.float32)
        if activation == "relu":
            y = jnp.maximum(y, 0.0)
        o_ref[...] = y.astype(o_ref.dtype)


def _pick_tile(dim, pref):
    # Use the preferred tile if it divides the dim, otherwise fall back to the
    # full extent (blocks must be (8,128)-divisible or equal the full dims).
    return pref if (dim >= pref and dim % pref == 0) else dim


def linear(x, w, b, activation=None, *, tm=256, tn=512, tk=512):
    """y = act(x @ w + b).  x: [M,K] f32, w: [K,N] bf16 (= torch W.T), b: [N] f32."""
    M, K = x.shape
    N = w.shape[1]
    tm, tn, tk = _pick_tile(M, tm), _pick_tile(N, tn), _pick_tile(K, tk)
    return pl.pallas_call(
        functools.partial(_linear_kernel, activation=activation),
        out_shape=jax.ShapeDtypeStruct((M, N), jnp.float32),
        grid=(M // tm, N // tn, K // tk),
        in_specs=[
            pl.BlockSpec((tm, tk), lambda i, j, k: (i, k)),
            pl.BlockSpec((tk, tn), lambda i, j, k: (k, j)),
            pl.BlockSpec((1, tn), lambda i, j, k: (0, j)),
        ],
        out_specs=pl.BlockSpec((tm, tn), lambda i, j, k: (i, j)),
        scratch_shapes=[pltpu.VMEM((tm, tn), jnp.float32)],
        compiler_params=pltpu.CompilerParams(
            dimension_semantics=("parallel", "parallel", "arbitrary"),
            vmem_limit_bytes=_vmem_limit_bytes()),
    )(x, w, b.reshape(1, N))


# ---------------------- fused decoder-stack kernel --------------------------

_STACK_ORDER = ("sa_wqkv", "sa_bqkv", "sa_wo", "sa_bo",
                "ca_wq", "ca_bq", "ca_wkv", "ca_bkv", "ca_wo", "ca_bo",
                "ff_w1", "ff_b1", "ff_w2", "ff_b2",
                "ln_g", "ln_b")


def _decoder_stack_kernel(x_ref, enc_ref, tpad_ref, epad_ref,
                          sa_wqkv_ref, sa_bqkv_ref, sa_wo_ref, sa_bo_ref,
                          ca_wq_ref, ca_bq_ref, ca_wkv_ref, ca_bkv_ref,
                          ca_wo_ref, ca_bo_ref,
                          ff_w1_ref, ff_b1_ref, ff_w2_ref, ff_b2_ref,
                          ln_g_ref, ln_b_ref,
                          o_ref,
                          selfb_ref, crossb_ref,
                          *, n_heads, batch):
    f32 = jnp.float32
    bf16 = jnp.bfloat16
    B = batch
    _, T, D = x_ref.shape
    S = enc_ref.shape[1]
    dk = D // n_heads
    scale = 1.0 / math.sqrt(dk)
    layer = pl.program_id(0)

    # ---- layer 0: seed the VMEM-resident hidden state, build masks once ----
    @pl.when(layer == 0)
    def _():
        o_ref[...] = x_ref[...]
        q_pos = jax.lax.broadcasted_iota(jnp.int32, (T, T), 0)
        k_pos = jax.lax.broadcasted_iota(jnp.int32, (T, T), 1)
        causal = (k_pos <= q_pos)[None, :, :]                      # [1,T,T]
        tgt_keep = (tpad_ref[...] != 0)[:, None, :]                # [B,1,T]
        selfb_ref[...] = jnp.where(jnp.logical_and(causal, tgt_keep),
                                   0.0, -1e9).astype(f32)          # [B,T,T]
        src_keep = (epad_ref[...] != 0)[:, None, :]                # [B,1,S]
        crossb_ref[...] = jnp.where(jnp.broadcast_to(src_keep, (B, T, S)),
                                    0.0, -1e9).astype(f32)         # [B,T,S]

    # carried hidden state (f32), batch folded into M
    h = o_ref[...].reshape(B * T, D).astype(f32)                   # [B*T, D]
    enc = enc_ref[...].reshape(B * S, D).astype(bf16)              # [B*S, D]

    ln_g = ln_g_ref[0].astype(f32)                                 # [3, D]
    ln_b = ln_b_ref[0].astype(f32)                                 # [3, D]

    def layer_norm(v, i):
        mean = jnp.mean(v, axis=-1, keepdims=True)
        var = jnp.mean(jnp.square(v - mean), axis=-1, keepdims=True)
        nv = (v - mean) * jax.lax.rsqrt(var + 1e-5)
        return nv * ln_g[i:i + 1, :] + ln_b[i:i + 1, :]

    def softmax_rows(s):
        s = s - jnp.max(s, axis=-1, keepdims=True)
        p = jnp.exp(s)
        return p / jnp.sum(p, axis=-1, keepdims=True)

    def attend(q_all, k_all, v_all, bias_ref, wo_bf, bo, Tk):
        # q_all: [B*T, D] f32;  k_all/v_all: [B*Tk, D] f32 (post-projection).
        # Heads are column slices; outputs are merged (concat) and projected
        # through W_o with ONE full-depth [B*T, D] @ [D, D] matmul.
        per_batch = []
        for b in range(B):
            q_b = (q_all[b * T:(b + 1) * T, :] * scale).astype(bf16)   # [T, D]
            k_b = k_all[b * Tk:(b + 1) * Tk, :].astype(bf16)           # [Tk, D]
            v_b = v_all[b * Tk:(b + 1) * Tk, :].astype(bf16)           # [Tk, D]
            bias_b = bias_ref[b]                                       # [T, Tk]
            heads = []
            for hd in range(n_heads):
                lo = hd * dk
                q_h = q_b[:, lo:lo + dk]
                k_h = k_b[:, lo:lo + dk]
                v_h = v_b[:, lo:lo + dk]
                # contract last dims; no explicit transpose (no XLU op)
                s = jax.lax.dot_general(q_h, k_h, (((1,), (1,)), ((), ())),
                                        preferred_element_type=f32)    # [T, Tk]
                p = softmax_rows(s + bias_b)
                heads.append(jnp.dot(p.astype(bf16), v_h,
                                     preferred_element_type=f32))      # [T, dk]
            per_batch.append(jnp.concatenate(heads, axis=-1))          # [T, D]
        merged = jnp.concatenate(per_batch, axis=0).astype(bf16)       # [B*T, D]
        return jnp.dot(merged, wo_bf, preferred_element_type=f32) + bo

    # ---- self attention (fused QKV projection: one [D, 3D] matmul) ---------
    h_bf = h.astype(bf16)
    qkv = (jnp.dot(h_bf, sa_wqkv_ref[0], preferred_element_type=f32)
           + sa_bqkv_ref[0].astype(f32))                                # [B*T,3D]
    sa = attend(qkv[:, 0:D], qkv[:, D:2 * D], qkv[:, 2 * D:3 * D],
                selfb_ref, sa_wo_ref[0], sa_bo_ref[0].astype(f32), T)
    h = layer_norm(h + sa, 0)

    # ---- cross attention (fused K/V projection of encoder states) ----------
    h_bf = h.astype(bf16)
    q_all = (jnp.dot(h_bf, ca_wq_ref[0], preferred_element_type=f32)
             + ca_bq_ref[0].astype(f32))                                # [B*T, D]
    kv = (jnp.dot(enc, ca_wkv_ref[0], preferred_element_type=f32)
          + ca_bkv_ref[0].astype(f32))                                  # [B*S,2D]
    ca = attend(q_all, kv[:, 0:D], kv[:, D:2 * D],
                crossb_ref, ca_wo_ref[0], ca_bo_ref[0].astype(f32), S)
    h = layer_norm(h + ca, 1)

    # ---- position-wise feed forward (dropout = identity at inference) ------
    h_bf = h.astype(bf16)
    f1 = jnp.maximum(jnp.dot(h_bf, ff_w1_ref[0], preferred_element_type=f32)
                     + ff_b1_ref[0].astype(f32), 0.0)                   # [B*T, F]
    f2 = (jnp.dot(f1.astype(bf16), ff_w2_ref[0], preferred_element_type=f32)
          + ff_b2_ref[0].astype(f32))                                   # [B*T, D]
    h = layer_norm(h + f2, 2)

    o_ref[...] = h.reshape(B, T, D).astype(o_ref.dtype)


# ------------------------------ model (glue) -------------------------------

def decoder_forward(dp, tgt, enc_hidden, encoder_mask, tgt_mask,
                    *, n_heads, d_model):
    B, T = tgt.shape
    S = enc_hidden.shape[1]
    D = d_model

    # embedding * sqrt(d_model) + positional encoding; dropout(0.2) -> identity
    x = (dp["embedding"][tgt] * math.sqrt(d_model)
         + dp["pe"][None, :T, :]).astype(jnp.float32)                  # [B,T,D]

    # tiny int32 pad vectors; masks are built in-kernel (no HBM mask tensors).
    # (Note: these sub-(8,128) blocks pad to one VMEM tile each — negligible.)
    tpad = ((tgt != 0) if tgt_mask is None else (tgt_mask != 0)).astype(jnp.int32)
    if encoder_mask is None:
        epad = jnp.ones((B, S), jnp.int32)
    else:
        epad = encoder_mask.astype(jnp.int32)

    stack = dp["stack"]
    weights = [stack[name] for name in _STACK_ORDER]
    n_layers = stack["sa_wqkv"].shape[0]

    data_specs = [
        pl.BlockSpec((B, T, D), lambda l: (0, 0, 0)),   # x (read at layer 0)
        pl.BlockSpec((B, S, D), lambda l: (0, 0, 0)),   # encoder hidden (bf16)
        pl.BlockSpec((B, T), lambda l: (0, 0)),         # tgt pad vector
        pl.BlockSpec((B, S), lambda l: (0, 0)),         # src pad vector
    ]
    # every stack weight is 3-D: (n_layers, a, b) -> stream one layer per step
    weight_specs = [pl.BlockSpec((1,) + w.shape[1:], lambda l: (l, 0, 0))
                    for w in weights]

    hidden = pl.pallas_call(
        functools.partial(_decoder_stack_kernel, n_heads=n_heads, batch=B),
        out_shape=jax.ShapeDtypeStruct((B, T, D), jnp.float32),
        grid=(n_layers,),
        in_specs=data_specs + weight_specs,
        out_specs=pl.BlockSpec((B, T, D), lambda l: (0, 0, 0)),
        scratch_shapes=[pltpu.VMEM((B, T, T), jnp.float32),   # self-attn bias
                        pltpu.VMEM((B, T, S), jnp.float32)],  # cross-attn bias
        compiler_params=pltpu.CompilerParams(
            dimension_semantics=("arbitrary",),
            vmem_limit_bytes=_vmem_limit_bytes()),
    )(x, enc_hidden.astype(jnp.bfloat16), tpad, epad, *weights)

    logits = linear(hidden.reshape(B * T, D), dp["out"]["w"], dp["out"]["b"])
    return logits.reshape(B, T, -1)


def encoder_stub_forward(p, src, src_mask, *, d_model):
    # TODO(synk): deterministic stand-in for the external pretrained encoder;
    # returns a `last_hidden_state` of shape [B, S, d_model].
    B, S = src.shape
    h = p["embedding"][src]                                            # [B,S,D]
    h = linear(h.reshape(B * S, d_model),
               p["proj"]["w"], p["proj"]["b"]).reshape(B, S, d_model)
    return h


def translator_forward(params, src, tgt, src_mask=None, tgt_mask=None,
                       *, n_heads, d_model):
    enc_hidden = encoder_stub_forward(params["encoder"], src, src_mask,
                                      d_model=d_model)
    return decoder_forward(params["decoder"], tgt, enc_hidden, src_mask,
                           tgt_mask, n_heads=n_heads, d_model=d_model)


# --------------------------- parameter init --------------------------------

def init_linear(key, in_dim, out_dim):
    k1, k2 = jax.random.split(key)
    bound = 1.0 / math.sqrt(in_dim)
    return {
        # matmul weights stored bf16 (streamed bf16); biases stay f32
        "w": jax.random.uniform(k1, (in_dim, out_dim), jnp.float32,
                                -bound, bound).astype(jnp.bfloat16),
        "b": jax.random.uniform(k2, (out_dim,), jnp.float32, -bound, bound),
    }


def init_decoder_stack(key, n_layers, d_model, d_ff):
    L, D, F = n_layers, d_model, d_ff
    bd = 1.0 / math.sqrt(D)     # fan-in = d_model (q/k/v/o, ff_w1)
    bf = 1.0 / math.sqrt(F)     # fan-in = d_ff (ff_w2)
    ks = jax.random.split(key, 14)

    def uw(k, shape, bound):    # bf16 matmul weight
        return jax.random.uniform(k, shape, jnp.float32,
                                  -bound, bound).astype(jnp.bfloat16)

    def ub(k, shape, bound):    # f32 bias
        return jax.random.uniform(k, shape, jnp.float32, -bound, bound)

    return {
        "sa_wqkv": uw(ks[0], (L, D, 3 * D), bd), "sa_bqkv": ub(ks[1], (L, 1, 3 * D), bd),
        "sa_wo":   uw(ks[2], (L, D, D), bd),     "sa_bo":   ub(ks[3], (L, 1, D), bd),
        "ca_wq":   uw(ks[4], (L, D, D), bd),     "ca_bq":   ub(ks[5], (L, 1, D), bd),
        "ca_wkv":  uw(ks[6], (L, D, 2 * D), bd), "ca_bkv":  ub(ks[7], (L, 1, 2 * D), bd),
        "ca_wo":   uw(ks[8], (L, D, D), bd),     "ca_bo":   ub(ks[9], (L, 1, D), bd),
        "ff_w1":   uw(ks[10], (L, D, F), bd),    "ff_b1":   ub(ks[11], (L, 1, F), bd),
        "ff_w2":   uw(ks[12], (L, F, D), bf),    "ff_b2":   ub(ks[13], (L, 1, D), bf),
        "ln_g":    jnp.ones((L, 3, D), jnp.float32),
        "ln_b":    jnp.zeros((L, 3, D), jnp.float32),
    }


def make_positional_encoding(max_len, d_model):
    position = jnp.arange(max_len, dtype=jnp.float32)[:, None]
    div_term = jnp.exp(jnp.arange(0, d_model, 2, dtype=jnp.float32)
                       * (-math.log(10000.0) / d_model))
    pe = jnp.zeros((max_len, d_model), jnp.float32)
    pe = pe.at[:, 0::2].set(jnp.sin(position * div_term))
    pe = pe.at[:, 1::2].set(jnp.cos(position * div_term))
    return pe


def init_translator(key, de_vocab, en_vocab, d_model, n_heads, n_layers, d_ff,
                    max_len=512):
    k_enc, k_dec = jax.random.split(key)
    ke1, ke2 = jax.random.split(k_enc)
    encoder = {
        "embedding": 0.02 * jax.random.normal(ke1, (de_vocab, d_model), jnp.float32),
        "proj": init_linear(ke2, d_model, d_model),
    }
    kd1, kd2, kd3 = jax.random.split(k_dec, 3)
    decoder = {
        "embedding": jax.random.normal(kd1, (en_vocab, d_model), jnp.float32),
        "pe": make_positional_encoding(max_len, d_model),
        "stack": init_decoder_stack(kd2, n_layers, d_model, d_ff),
        "out": init_linear(kd3, d_model, en_vocab),
    }
    return {"encoder": encoder, "decoder": decoder}


# --------------------------------- main -------------------------------------

if __name__ == "__main__":
    # NOTE: toy config for a quick run.  Production configs should keep
    # d_model / d_ff multiples of 128, T/S multiples of 8, dk multiple of 8
    # for lane/sublane-friendly layouts.
    B, S, T = 2, 8, 8
    d_model, n_heads, n_layers, d_ff = 32, 4, 2, 64
    de_vocab, en_vocab = 48, 40

    key = jax.random.PRNGKey(0)
    k_params, k_src, k_tgt = jax.random.split(key, 3)
    params = init_translator(k_params, de_vocab, en_vocab, d_model, n_heads,
                             n_layers, d_ff)

    src = jax.random.randint(k_src, (B, S), 1, de_vocab)     # avoid pad idx 0
    tgt = jax.random.randint(k_tgt, (B, T), 1, en_vocab)
    src_mask = jnp.ones((B, S), dtype=jnp.int32)

    fwd = jax.jit(functools.partial(translator_forward,
                                    n_heads=n_heads, d_model=d_model))
    logits = fwd(params, src, tgt, src_mask, None)
    jax.block_until_ready(logits)
    assert logits.shape == (B, T, en_vocab), logits.shape
    assert bool(jnp.all(jnp.isfinite(logits)))
    print("KERNEL_OK")
</pallas_src>

<mosaic_0001>
module attributes {stable_mosaic.version = 11 : i64} {
  func.func @_decoder_stack_kernel(%arg0: i32, %arg1: memref<2x8x32xf32, #tpu.memory_space<vmem>>, %arg2: memref<2x8x32xbf16, #tpu.memory_space<vmem>>, %arg3: memref<2x8xi32, #tpu.memory_space<vmem>>, %arg4: memref<2x8xi32, #tpu.memory_space<vmem>>, %arg5: memref<1x32x96xbf16, #tpu.memory_space<vmem>>, %arg6: memref<1x1x96xf32, #tpu.memory_space<vmem>>, %arg7: memref<1x32x32xbf16, #tpu.memory_space<vmem>>, %arg8: memref<1x1x32xf32, #tpu.memory_space<vmem>>, %arg9: memref<1x32x32xbf16, #tpu.memory_space<vmem>>, %arg10: memref<1x1x32xf32, #tpu.memory_space<vmem>>, %arg11: memref<1x32x64xbf16, #tpu.memory_space<vmem>>, %arg12: memref<1x1x64xf32, #tpu.memory_space<vmem>>, %arg13: memref<1x32x32xbf16, #tpu.memory_space<vmem>>, %arg14: memref<1x1x32xf32, #tpu.memory_space<vmem>>, %arg15: memref<1x32x64xbf16, #tpu.memory_space<vmem>>, %arg16: memref<1x1x64xf32, #tpu.memory_space<vmem>>, %arg17: memref<1x64x32xbf16, #tpu.memory_space<vmem>>, %arg18: memref<1x1x32xf32, #tpu.memory_space<vmem>>, %arg19: memref<1x3x32xf32, #tpu.memory_space<vmem>>, %arg20: memref<1x3x32xf32, #tpu.memory_space<vmem>>, %arg21: memref<2x8x32xf32, #tpu.memory_space<vmem>>, %arg22: memref<2x8x8xf32, #tpu.memory_space<vmem>>, %arg23: memref<2x8x8xf32, #tpu.memory_space<vmem>>) attributes {dimension_semantics = [#tpu.dimension_semantics<arbitrary>], iteration_bounds = array<i64: 2>, scalar_prefetch = 0 : i64, scratch_operands = 2 : i64, tpu.core_type = #tpu.core_type<tc>, window_params = [{pipeline_mode = #tpu.pipeline_mode<synchronous>, transform_indices = @transform_0, window_bounds = array<i64: 2, 8, 32>}, {pipeline_mode = #tpu.pipeline_mode<synchronous>, transform_indices = @transform_1, window_bounds = array<i64: 2, 8, 32>}, {pipeline_mode = #tpu.pipeline_mode<synchronous>, transform_indices = @transform_2, window_bounds = array<i64: 2, 8>}, {pipeline_mode = #tpu.pipeline_mode<synchronous>, transform_indices = @transform_3, window_bounds = array<i64: 2, 8>}, {transform_indices = @transform_4, window_bounds = array<i64: 1, 32, 96>}, {transform_indices = @transform_5, window_bounds = array<i64: 1, 1, 96>}, {transform_indices = @transform_6, window_bounds = array<i64: 1, 32, 32>}, {transform_indices = @transform_7, window_bounds = array<i64: 1, 1, 32>}, {transform_indices = @transform_8, window_bounds = array<i64: 1, 32, 32>}, {transform_indices = @transform_9, window_bounds = array<i64: 1, 1, 32>}, {transform_indices = @transform_10, window_bounds = array<i64: 1, 32, 64>}, {transform_indices = @transform_11, window_bounds = array<i64: 1, 1, 64>}, {transform_indices = @transform_12, window_bounds = array<i64: 1, 32, 32>}, {transform_indices = @transform_13, window_bounds = array<i64: 1, 1, 32>}, {transform_indices = @transform_14, window_bounds = array<i64: 1, 32, 64>}, {transform_indices = @transform_15, window_bounds = array<i64: 1, 1, 64>}, {transform_indices = @transform_16, window_bounds = array<i64: 1, 64, 32>}, {transform_indices = @transform_17, window_bounds = array<i64: 1, 1, 32>}, {transform_indices = @transform_18, window_bounds = array<i64: 1, 3, 32>}, {transform_indices = @transform_19, window_bounds = array<i64: 1, 3, 32>}, {pipeline_mode = #tpu.pipeline_mode<synchronous>, transform_indices = @transform_20, window_bounds = array<i64: 2, 8, 32>}]} {
    %c0_i32 = arith.constant 0 : i32
    %0 = arith.cmpi eq, %arg0, %c0_i32 : i32
    %1 = arith.extui %0 : i1 to i32
    %c0_i32_0 = arith.constant 0 : i32
    %2 = arith.cmpi ne, %1, %c0_i32_0 : i32
    scf.if %2 {
      %c0_158 = arith.constant 0 : index
      %c0_159 = arith.constant 0 : index
      %c0_160 = arith.constant 0 : index
      %452 = vector.load %arg1[%c0_158, %c0_159, %c0_160] : memref<2x8x32xf32, #tpu.memory_space<vmem>>, vector<2x8x32xf32>
      %c0_161 = arith.constant 0 : index
      %c0_162 = arith.constant 0 : index
      %c0_163 = arith.constant 0 : index
      %453 = vector.load %arg21[%c0_161, %c0_162, %c0_163] : memref<2x8x32xf32, #tpu.memory_space<vmem>>, vector<2x8x32xf32>
      tpu.vector_store %arg21[%c0_161, %c0_162, %c0_163], %452 {strides = array<i32>} : memref<2x8x32xf32, #tpu.memory_space<vmem>>, vector<2x8x32xf32>,
      %454 = tpu.iota {dimensions = array<i32: 0>} : vector<8x8xi32>
      %455 = tpu.iota {dimensions = array<i32: 1>} : vector<8x8xi32>
      %456 = arith.cmpi sle, %455, %454 : vector<8x8xi32>
      %457 = vector.shape_cast %456 : vector<8x8xi1> to vector<1x8x8xi1>
      %c0_164 = arith.constant 0 : index
      %c0_165 = arith.constant 0 : index
      %458 = vector.load %arg3[%c0_164, %c0_165] : memref<2x8xi32, #tpu.memory_space<vmem>>, vector<2x8xi32>
      %c0_i32_166 = arith.constant 0 : i32
      %459 = vector.broadcast %c0_i32_166 : i32 to vector<2x8xi32>
      %460 = arith.cmpi ne, %458, %459 : vector<2x8xi32>
      %461 = vector.shape_cast %460 : vector<2x8xi1> to vector<2x1x8xi1>
      %462 = vector.broadcast %457 : vector<1x8x8xi1> to vector<2x8x8xi1>
      %463 = vector.broadcast %461 : vector<2x1x8xi1> to vector<2x8x8xi1>
      %464 = arith.andi %462, %463 : vector<2x8x8xi1>
      %cst_167 = arith.constant 0.000000e+00 : f32
      %cst_168 = arith.constant -1.000000e+09 : f32
      %465 = vector.broadcast %cst_167 : f32 to vector<2x8x8xf32>
      %466 = vector.broadcast %cst_168 : f32 to vector<2x8x8xf32>
      %467 = arith.select %464, %465, %466 : vector<2x8x8xi1>, vector<2x8x8xf32>
      %c0_169 = arith.constant 0 : index
      %c0_170 = arith.constant 0 : index
      %c0_171 = arith.constant 0 : index
      %468 = vector.load %arg22[%c0_169, %c0_170, %c0_171] : memref<2x8x8xf32, #tpu.memory_space<vmem>>, vector<2x8x8xf32>
      tpu.vector_store %arg22[%c0_169, %c0_170, %c0_171], %467 {strides = array<i32>} : memref<2x8x8xf32, #tpu.memory_space<vmem>>, vector<2x8x8xf32>,
      %c0_172 = arith.constant 0 : index
      %c0_173 = arith.constant 0 : index
      %469 = vector.load %arg4[%c0_172, %c0_173] : memref<2x8xi32, #tpu.memory_space<vmem>>, vector<2x8xi32>
      %c0_i32_174 = arith.constant 0 : i32
      %470 = vector.broadcast %c0_i32_174 : i32 to vector<2x8xi32>
      %471 = arith.cmpi ne, %469, %470 : vector<2x8xi32>
      %472 = vector.shape_cast %471 : vector<2x8xi1> to vector<2x1x8xi1>
      %473 = vector.shape_cast %472 : vector<2x1x8xi1> to vector<2x1x8xi1>
      %474 = vector.broadcast %473 : vector<2x1x8xi1> to vector<2x8x8xi1>
      %cst_175 = arith.constant 0.000000e+00 : f32
      %cst_176 = arith.constant -1.000000e+09 : f32
      %475 = vector.broadcast %cst_175 : f32 to vector<2x8x8xf32>
      %476 = vector.broadcast %cst_176 : f32 to vector<2x8x8xf32>
      %477 = arith.select %474, %475, %476 : vector<2x8x8xi1>, vector<2x8x8xf32>
      %c0_177 = arith.constant 0 : index
      %c0_178 = arith.constant 0 : index
      %c0_179 = arith.constant 0 : index
      %478 = vector.load %arg23[%c0_177, %c0_178, %c0_179] : memref<2x8x8xf32, #tpu.memory_space<vmem>>, vector<2x8x8xf32>
      tpu.vector_store %arg23[%c0_177, %c0_178, %c0_179], %477 {strides = array<i32>} : memref<2x8x8xf32, #tpu.memory_space<vmem>>, vector<2x8x8xf32>,
    } else {
    }
    %c0 = arith.constant 0 : index
    %c0_1 = arith.constant 0 : index
    %c0_2 = arith.constant 0 : index
    %3 = vector.load %arg21[%c0, %c0_1, %c0_2] : memref<2x8x32xf32, #tpu.memory_space<vmem>>, vector<2x8x32xf32>
    %4 = vector.shape_cast %3 : vector<2x8x32xf32> to vector<16x32xf32>
    %c0_3 = arith.constant 0 : index
    %c0_4 = arith.constant 0 : index
    %c0_5 = arith.constant 0 : index
    %5 = vector.load %arg2[%c0_3, %c0_4, %c0_5] : memref<2x8x32xbf16, #tpu.memory_space<vmem>>, vector<2x8x32xbf16>
    %6 = vector.shape_cast %5 : vector<2x8x32xbf16> to vector<16x32xbf16>
    %c0_6 = arith.constant 0 : index
    %c0_7 = arith.constant 0 : index
    %c0_8 = arith.constant 0 : index
    %7 = vector.load %arg19[%c0_6, %c0_7, %c0_8] : memref<1x3x32xf32, #tpu.memory_space<vmem>>, vector<1x3x32xf32>
    %8 = vector.shape_cast %7 : vector<1x3x32xf32> to vector<3x32xf32>
    %c0_9 = arith.constant 0 : index
    %c0_10 = arith.constant 0 : index
    %c0_11 = arith.constant 0 : index
    %9 = vector.load %arg20[%c0_9, %c0_10, %c0_11] : memref<1x3x32xf32, #tpu.memory_space<vmem>>, vector<1x3x32xf32>
    %10 = vector.shape_cast %9 : vector<1x3x32xf32> to vector<3x32xf32>
    %11 = arith.truncf %4 : vector<16x32xf32> to vector<16x32xbf16>
    %c0_12 = arith.constant 0 : index
    %c0_13 = arith.constant 0 : index
    %c0_14 = arith.constant 0 : index
    %12 = vector.load %arg5[%c0_12, %c0_13, %c0_14] : memref<1x32x96xbf16, #tpu.memory_space<vmem>>, vector<1x32x96xbf16>
    %13 = vector.shape_cast %12 : vector<1x32x96xbf16> to vector<32x96xbf16>
    %cst = arith.constant dense<0.000000e+00> : vector<16x96xf32>
    %14 = tpu.matmul %11, %13, %cst {dimension_numbers = #tpu.dot_dimension_numbers<[1], [0], [0], [1], [0, 0, 1, 1], [], []>} : vector<16x32xbf16>, vector<32x96xbf16>, vector<16x96xf32> -> vector<16x96xf32>
    %c0_15 = arith.constant 0 : index
    %c0_16 = arith.constant 0 : index
    %c0_17 = arith.constant 0 : index
    %15 = vector.load %arg6[%c0_15, %c0_16, %c0_17] : memref<1x1x96xf32, #tpu.memory_space<vmem>>, vector<1x1x96xf32>
    %16 = vector.shape_cast %15 : vector<1x1x96xf32> to vector<1x96xf32>
    %17 = vector.broadcast %16 : vector<1x96xf32> to vector<16x96xf32>
    %18 = arith.addf %14, %17 : vector<16x96xf32>
    %19 = vector.extract_strided_slice %18 {offsets = [0, 0], sizes = [16, 32], strides = [1, 1]} : vector<16x96xf32> to vector<16x32xf32>
    %20 = vector.extract_strided_slice %18 {offsets = [0, 32], sizes = [16, 32], strides = [1, 1]} : vector<16x96xf32> to vector<16x32xf32>
    %21 = vector.extract_strided_slice %18 {offsets = [0, 64], sizes = [16, 32], strides = [1, 1]} : vector<16x96xf32> to vector<16x32xf32>
    %c0_18 = arith.constant 0 : index
    %c0_19 = arith.constant 0 : index
    %c0_20 = arith.constant 0 : index
    %22 = vector.load %arg7[%c0_18, %c0_19, %c0_20] : memref<1x32x32xbf16, #tpu.memory_space<vmem>>, vector<1x32x32xbf16>
    %23 = vector.shape_cast %22 : vector<1x32x32xbf16> to vector<32x32xbf16>
    %c0_21 = arith.constant 0 : index
    %c0_22 = arith.constant 0 : index
    %c0_23 = arith.constant 0 : index
    %24 = vector.load %arg8[%c0_21, %c0_22, %c0_23] : memref<1x1x32xf32, #tpu.memory_space<vmem>>, vector<1x1x32xf32>
    %25 = vector.shape_cast %24 : vector<1x1x32xf32> to vector<1x32xf32>
    %26 = vector.extract_strided_slice %19 {offsets = [0, 0], sizes = [8, 32], strides = [1, 1]} : vector<16x32xf32> to vector<8x32xf32>
    %cst_24 = arith.constant 0.353553385 : f32
    %27 = vector.broadcast %cst_24 : f32 to vector<8x32xf32>
    %28 = arith.mulf %26, %27 : vector<8x32xf32>
    %29 = arith.truncf %28 : vector<8x32xf32> to vector<8x32xbf16>
    %30 = vector.extract_strided_slice %20 {offsets = [0, 0], sizes = [8, 32], strides = [1, 1]} : vector<16x32xf32> to vector<8x32xf32>
    %31 = arith.truncf %30 : vector<8x32xf32> to vector<8x32xbf16>
    %32 = vector.extract_strided_slice %21 {offsets = [0, 0], sizes = [8, 32], strides = [1, 1]} : vector<16x32xf32> to vector<8x32xf32>
    %33 = arith.truncf %32 : vector<8x32xf32> to vector<8x32xbf16>
    %c0_25 = arith.constant 0 : index
    %c0_26 = arith.constant 0 : index
    %c0_27 = arith.constant 0 : index
    %34 = vector.load %arg22[%c0_25, %c0_26, %c0_27] : memref<2x8x8xf32, #tpu.memory_space<vmem>>, vector<1x8x8xf32>
    %35 = vector.shape_cast %34 : vector<1x8x8xf32> to vector<8x8xf32>
    %36 = vector.extract_strided_slice %29 {offsets = [0, 0], sizes = [8, 8], strides = [1, 1]} : vector<8x32xbf16> to vector<8x8xbf16>
    %37 = vector.extract_strided_slice %31 {offsets = [0, 0], sizes = [8, 8], strides = [1, 1]} : vector<8x32xbf16> to vector<8x8xbf16>
    %38 = vector.extract_strided_slice %33 {offsets = [0, 0], sizes = [8, 8], strides = [1, 1]} : vector<8x32xbf16> to vector<8x8xbf16>
    %cst_28 = arith.constant dense<0.000000e+00> : vector<8x8xf32>
    %39 = tpu.matmul %36, %37, %cst_28 {dimension_numbers = #tpu.dot_dimension_numbers<[1], [1], [0], [0], [0, 0, 1, 0], [], []>} : vector<8x8xbf16>, vector<8x8xbf16>, vector<8x8xf32> -> vector<8x8xf32>
    %40 = arith.addf %39, %35 : vector<8x8xf32>
    %cst_29 = arith.constant dense<0xFF800000> : vector<8xf32>
    %41 = vector.multi_reduction <maximumf>, %40, %cst_29 [1] : vector<8x8xf32> to vector<8xf32>
    %42 = vector.shape_cast %41 : vector<8xf32> to vector<8x1xf32>
    %43 = vector.broadcast %42 : vector<8x1xf32> to vector<8x8xf32>
    %44 = arith.subf %40, %43 : vector<8x8xf32>
    %45 = math.exp %44 : vector<8x8xf32>
    %cst_30 = arith.constant dense<0.000000e+00> : vector<8xf32>
    %46 = vector.multi_reduction <add>, %45, %cst_30 [1] : vector<8x8xf32> to vector<8xf32>
    %47 = vector.shape_cast %46 : vector<8xf32> to vector<8x1xf32>
    %48 = vector.broadcast %47 : vector<8x1xf32> to vector<8x8xf32>
    %49 = arith.divf %45, %48 : vector<8x8xf32>
    %50 = arith.truncf %49 : vector<8x8xf32> to vector<8x8xbf16>
    %cst_31 = arith.constant dense<0.000000e+00> : vector<8x8xf32>
    %51 = tpu.matmul %50, %38, %cst_31 {dimension_numbers = #tpu.dot_dimension_numbers<[1], [0], [0], [1], [0, 0, 1, 1], [], []>} : vector<8x8xbf16>, vector<8x8xbf16>, vector<8x8xf32> -> vector<8x8xf32>
    %52 = vector.extract_strided_slice %29 {offsets = [0, 8], sizes = [8, 8], strides = [1, 1]} : vector<8x32xbf16> to vector<8x8xbf16>
    %53 = vector.extract_strided_slice %31 {offsets = [0, 8], sizes = [8, 8], strides = [1, 1]} : vector<8x32xbf16> to vector<8x8xbf16>
    %54 = vector.extract_strided_slice %33 {offsets = [0, 8], sizes = [8, 8], strides = [1, 1]} : vector<8x32xbf16> to vector<8x8xbf16>
    %cst_32 = arith.constant dense<0.000000e+00> : vector<8x8xf32>
    %55 = tpu.matmul %52, %53, %cst_32 {dimension_numbers = #tpu.dot_dimension_numbers<[1], [1], [0], [0], [0, 0, 1, 0], [], []>} : vector<8x8xbf16>, vector<8x8xbf16>, vector<8x8xf32> -> vector<8x8xf32>
    %56 = arith.addf %55, %35 : vector<8x8xf32>
    %cst_33 = arith.constant dense<0xFF800000> : vector<8xf32>
    %57 = vector.multi_reduction <maximumf>, %56, %cst_33 [1] : vector<8x8xf32> to vector<8xf32>
    %58 = vector.shape_cast %57 : vector<8xf32> to vector<8x1xf32>
    %59 = vector.broadcast %58 : vector<8x1xf32> to vector<8x8xf32>
    %60 = arith.subf %56, %59 : vector<8x8xf32>
    %61 = math.exp %60 : vector<8x8xf32>
    %cst_34 = arith.constant dense<0.000000e+00> : vector<8xf32>
    %62 = vector.multi_reduction <add>, %61, %cst_34 [1] : vector<8x8xf32> to vector<8xf32>
    %63 = vector.shape_cast %62 : vector<8xf32> to vector<8x1xf32>
    %64 = vector.broadcast %63 : vector<8x1xf32> to vector<8x8xf32>
    %65 = arith.divf %61, %64 : vector<8x8xf32>
    %66 = arith.truncf %65 : vector<8x8xf32> to vector<8x8xbf16>
    %cst_35 = arith.constant dense<0.000000e+00> : vector<8x8xf32>
    %67 = tpu.matmul %66, %54, %cst_35 {dimension_numbers = #tpu.dot_dimension_numbers<[1], [0], [0], [1], [0, 0, 1, 1], [], []>} : vector<8x8xbf16>, vector<8x8xbf16>, vector<8x8xf32> -> vector<8x8xf32>
    %68 = vector.extract_strided_slice %29 {offsets = [0, 16], sizes = [8, 8], strides = [1, 1]} : vector<8x32xbf16> to vector<8x8xbf16>
    %69 = vector.extract_strided_slice %31 {offsets = [0, 16], sizes = [8, 8], strides = [1, 1]} : vector<8x32xbf16> to vector<8x8xbf16>
    %70 = vector.extract_strided_slice %33 {offsets = [0, 16], sizes = [8, 8], strides = [1, 1]} : vector<8x32xbf16> to vector<8x8xbf16>
    %cst_36 = arith.constant dense<0.000000e+00> : vector<8x8xf32>
    %71 = tpu.matmul %68, %69, %cst_36 {dimension_numbers = #tpu.dot_dimension_numbers<[1], [1], [0], [0], [0, 0, 1, 0], [], []>} : vector<8x8xbf16>, vector<8x8xbf16>, vector<8x8xf32> -> vector<8x8xf32>
    %72 = arith.addf %71, %35 : vector<8x8xf32>
    %cst_37 = arith.constant dense<0xFF800000> : vector<8xf32>
    %73 = vector.multi_reduction <maximumf>, %72, %cst_37 [1] : vector<8x8xf32> to vector<8xf32>
    %74 = vector.shape_cast %73 : vector<8xf32> to vector<8x1xf32>
    %75 = vector.broadcast %74 : vector<8x1xf32> to vector<8x8xf32>
    %76 = arith.subf %72, %75 : vector<8x8xf32>
    %77 = math.exp %76 : vector<8x8xf32>
    %cst_38 = arith.constant dense<0.000000e+00> : vector<8xf32>
    %78 = vector.multi_reduction <add>, %77, %cst_38 [1] : vector<8x8xf32> to vector<8xf32>
    %79 = vector.shape_cast %78 : vector<8xf32> to vector<8x1xf32>
    %80 = vector.broadcast %79 : vector<8x1xf32> to vector<8x8xf32>
    %81 = arith.divf %77, %80 : vector<8x8xf32>
    %82 = arith.truncf %81 : vector<8x8xf32> to vector<8x8xbf16>
    %cst_39 = arith.constant dense<0.000000e+00> : vector<8x8xf32>
    %83 = tpu.matmul %82, %70, %cst_39 {dimension_numbers = #tpu.dot_dimension_numbers<[1], [0], [0], [1], [0, 0, 1, 1], [], []>} : vector<8x8xbf16>, vector<8x8xbf16>, vector<8x8xf32> -> vector<8x8xf32>
    %84 = vector.extract_strided_slice %29 {offsets = [0, 24], sizes = [8, 8], strides = [1, 1]} : vector<8x32xbf16> to vector<8x8xbf16>
    %85 = vector.extract_strided_slice %31 {offsets = [0, 24], sizes = [8, 8], strides = [1, 1]} : vector<8x32xbf16> to vector<8x8xbf16>
    %86 = vector.extract_strided_slice %33 {offsets = [0, 24], sizes = [8, 8], strides = [1, 1]} : vector<8x32xbf16> to vector<8x8xbf16>
    %cst_40 = arith.constant dense<0.000000e+00> : vector<8x8xf32>
    %87 = tpu.matmul %84, %85, %cst_40 {dimension_numbers = #tpu.dot_dimension_numbers<[1], [1], [0], [0], [0, 0, 1, 0], [], []>} : vector<8x8xbf16>, vector<8x8xbf16>, vector<8x8xf32> -> vector<8x8xf32>
    %88 = arith.addf %87, %35 : vector<8x8xf32>
    %cst_41 = arith.constant dense<0xFF800000> : vector<8xf32>
    %89 = vector.multi_reduction <maximumf>, %88, %cst_41 [1] : vector<8x8xf32> to vector<8xf32>
    %90 = vector.shape_cast %89 : vector<8xf32> to vector<8x1xf32>
    %91 = vector.broadcast %90 : vector<8x1xf32> to vector<8x8xf32>
    %92 = arith.subf %88, %91 : vector<8x8xf32>
    %93 = math.exp %92 : vector<8x8xf32>
    %cst_42 = arith.constant dense<0.000000e+00> : vector<8xf32>
    %94 = vector.multi_reduction <add>, %93, %cst_42 [1] : vector<8x8xf32> to vector<8xf32>
    %95 = vector.shape_cast %94 : vector<8xf32> to vector<8x1xf32>
    %96 = vector.broadcast %95 : vector<8x1xf32> to vector<8x8xf32>
    %97 = arith.divf %93, %96 : vector<8x8xf32>
    %98 = arith.truncf %97 : vector<8x8xf32> to vector<8x8xbf16>
    %cst_43 = arith.constant dense<0.000000e+00> : vector<8x8xf32>
    %99 = tpu.matmul %98, %86, %cst_43 {dimension_numbers = #tpu.dot_dimension_numbers<[1], [0], [0], [1], [0, 0, 1, 1], [], []>} : vector<8x8xbf16>, vector<8x8xbf16>, vector<8x8xf32> -> vector<8x8xf32>
    %100 = tpu.concatenate %51, %67, %83, %99 in 1 : vector<8x8xf32>, vector<8x8xf32>, vector<8x8xf32>, vector<8x8xf32> -> vector<8x32xf32>
    %101 = vector.extract_strided_slice %19 {offsets = [8, 0], sizes = [8, 32], strides = [1, 1]} : vector<16x32xf32> to vector<8x32xf32>
    %cst_44 = arith.constant 0.353553385 : f32
    %102 = vector.broadcast %cst_44 : f32 to vector<8x32xf32>
    %103 = arith.mulf %101, %102 : vector<8x32xf32>
    %104 = arith.truncf %103 : vector<8x32xf32> to vector<8x32xbf16>
    %105 = vector.extract_strided_slice %20 {offsets = [8, 0], sizes = [8, 32], strides = [1, 1]} : vector<16x32xf32> to vector<8x32xf32>
    %106 = arith.truncf %105 : vector<8x32xf32> to vector<8x32xbf16>
    %107 = vector.extract_strided_slice %21 {offsets = [8, 0], sizes = [8, 32], strides = [1, 1]} : vector<16x32xf32> to vector<8x32xf32>
    %108 = arith.truncf %107 : vector<8x32xf32> to vector<8x32xbf16>
    %c1 = arith.constant 1 : index
    %c0_45 = arith.constant 0 : index
    %c0_46 = arith.constant 0 : index
    %109 = vector.load %arg22[%c1, %c0_45, %c0_46] : memref<2x8x8xf32, #tpu.memory_space<vmem>>, vector<1x8x8xf32>
    %110 = vector.shape_cast %109 : vector<1x8x8xf32> to vector<8x8xf32>
    %111 = vector.extract_strided_slice %104 {offsets = [0, 0], sizes = [8, 8], strides = [1, 1]} : vector<8x32xbf16> to vector<8x8xbf16>
    %112 = vector.extract_strided_slice %106 {offsets = [0, 0], sizes = [8, 8], strides = [1, 1]} : vector<8x32xbf16> to vector<8x8xbf16>
    %113 = vector.extract_strided_slice %108 {offsets = [0, 0], sizes = [8, 8], strides = [1, 1]} : vector<8x32xbf16> to vector<8x8xbf16>
    %cst_47 = arith.constant dense<0.000000e+00> : vector<8x8xf32>
    %114 = tpu.matmul %111, %112, %cst_47 {dimension_numbers = #tpu.dot_dimension_numbers<[1], [1], [0], [0], [0, 0, 1, 0], [], []>} : vector<8x8xbf16>, vector<8x8xbf16>, vector<8x8xf32> -> vector<8x8xf32>
    %115 = arith.addf %114, %110 : vector<8x8xf32>
    %cst_48 = arith.constant dense<0xFF800000> : vector<8xf32>
    %116 = vector.multi_reduction <maximumf>, %115, %cst_48 [1] : vector<8x8xf32> to vector<8xf32>
    %117 = vector.shape_cast %116 : vector<8xf32> to vector<8x1xf32>
    %118 = vector.broadcast %117 : vector<8x1xf32> to vector<8x8xf32>
    %119 = arith.subf %115, %118 : vector<8x8xf32>
    %120 = math.exp %119 : vector<8x8xf32>
    %cst_49 = arith.constant dense<0.000000e+00> : vector<8xf32>
    %121 = vector.multi_reduction <add>, %120, %cst_49 [1] : vector<8x8xf32> to vector<8xf32>
    %122 = vector.shape_cast %121 : vector<8xf32> to vector<8x1xf32>
    %123 = vector.broadcast %122 : vector<8x1xf32> to vector<8x8xf32>
    %124 = arith.divf %120, %123 : vector<8x8xf32>
    %125 = arith.truncf %124 : vector<8x8xf32> to vector<8x8xbf16>
    %cst_50 = arith.constant dense<0.000000e+00> : vector<8x8xf32>
    %126 = tpu.matmul %125, %113, %cst_50 {dimension_numbers = #tpu.dot_dimension_numbers<[1], [0], [0], [1], [0, 0, 1, 1], [], []>} : vector<8x8xbf16>, vector<8x8xbf16>, vector<8x8xf32> -> vector<8x8xf32>
    %127 = vector.extract_strided_slice %104 {offsets = [0, 8], sizes = [8, 8], strides = [1, 1]} : vector<8x32xbf16> to vector<8x8xbf16>
    %128 = vector.extract_strided_slice %106 {offsets = [0, 8], sizes = [8, 8], strides = [1, 1]} : vector<8x32xbf16> to vector<8x8xbf16>
    %129 = vector.extract_strided_slice %108 {offsets = [0, 8], sizes = [8, 8], strides = [1, 1]} : vector<8x32xbf16> to vector<8x8xbf16>
    %cst_51 = arith.constant dense<0.000000e+00> : vector<8x8xf32>
    %130 = tpu.matmul %127, %128, %cst_51 {dimension_numbers = #tpu.dot_dimension_numbers<[1], [1], [0], [0], [0, 0, 1, 0], [], []>} : vector<8x8xbf16>, vector<8x8xbf16>, vector<8x8xf32> -> vector<8x8xf32>
    %131 = arith.addf %130, %110 : vector<8x8xf32>
    %cst_52 = arith.constant dense<0xFF800000> : vector<8xf32>
    %132 = vector.multi_reduction <maximumf>, %131, %cst_52 [1] : vector<8x8xf32> to vector<8xf32>
    %133 = vector.shape_cast %132 : vector<8xf32> to vector<8x1xf32>
    %134 = vector.broadcast %133 : vector<8x1xf32> to vector<8x8xf32>
    %135 = arith.subf %131, %134 : vector<8x8xf32>
    %136 = math.exp %135 : vector<8x8xf32>
    %cst_53 = arith.constant dense<0.000000e+00> : vector<8xf32>
    %137 = vector.multi_reduction <add>, %136, %cst_53 [1] : vector<8x8xf32> to vector<8xf32>
    %138 = vector.shape_cast %137 : vector<8xf32> to vector<8x1xf32>
    %139 = vector.broadcast %138 : vector<8x1xf32> to vector<8x8xf32>
    %140 = arith.divf %136, %139 : vector<8x8xf32>
    %141 = arith.truncf %140 : vector<8x8xf32> to vector<8x8xbf16>
    %cst_54 = arith.constant dense<0.000000e+00> : vector<8x8xf32>
    %142 = tpu.matmul %141, %129, %cst_54 {dimension_numbers = #tpu.dot_dimension_numbers<[1], [0], [0], [1], [0, 0, 1, 1], [], []>} : vector<8x8xbf16>, vector<8x8xbf16>, vector<8x8xf32> -> vector<8x8xf32>
    %143 = vector.extract_strided_slice %104 {offsets = [0, 16], sizes = [8, 8], strides = [1, 1]} : vector<8x32xbf16> to vector<8x8xbf16>
    %144 = vector.extract_strided_slice %106 {offsets = [0, 16], sizes = [8, 8], strides = [1, 1]} : vector<8x32xbf16> to vector<8x8xbf16>
    %145 = vector.extract_strided_slice %108 {offsets = [0, 16], sizes = [8, 8], strides = [1, 1]} : vector<8x32xbf16> to vector<8x8xbf16>
    %cst_55 = arith.constant dense<0.000000e+00> : vector<8x8xf32>
    %146 = tpu.matmul %143, %144, %cst_55 {dimension_numbers = #tpu.dot_dimension_numbers<[1], [1], [0], [0], [0, 0, 1, 0], [], []>} : vector<8x8xbf16>, vector<8x8xbf16>, vector<8x8xf32> -> vector<8x8xf32>
    %147 = arith.addf %146, %110 : vector<8x8xf32>
    %cst_56 = arith.constant dense<0xFF800000> : vector<8xf32>
    %148 = vector.multi_reduction <maximumf>, %147, %cst_56 [1] : vector<8x8xf32> to vector<8xf32>
    %149 = vector.shape_cast %148 : vector<8xf32> to vector<8x1xf32>
    %150 = vector.broadcast %149 : vector<8x1xf32> to vector<8x8xf32>
    %151 = arith.subf %147, %150 : vector<8x8xf32>
    %152 = math.exp %151 : vector<8x8xf32>
    %cst_57 = arith.constant dense<0.000000e+00> : vector<8xf32>
    %153 = vector.multi_reduction <add>, %152, %cst_57 [1] : vector<8x8xf32> to vector<8xf32>
    %154 = vector.shape_cast %153 : vector<8xf32> to vector<8x1xf32>
    %155 = vector.broadcast %154 : vector<8x1xf32> to vector<8x8xf32>
    %156 = arith.divf %152, %155 : vector<8x8xf32>
    %157 = arith.truncf %156 : vector<8x8xf32> to vector<8x8xbf16>
    %cst_58 = arith.constant dense<0.000000e+00> : vector<8x8xf32>
    %158 = tpu.matmul %157, %145, %cst_58 {dimension_numbers = #tpu.dot_dimension_numbers<[1], [0], [0], [1], [0, 0, 1, 1], [], []>} : vector<8x8xbf16>, vector<8x8xbf16>, vector<8x8xf32> -> vector<8x8xf32>
    %159 = vector.extract_strided_slice %104 {offsets = [0, 24], sizes = [8, 8], strides = [1, 1]} : vector<8x32xbf16> to vector<8x8xbf16>
    %160 = vector.extract_strided_slice %106 {offsets = [0, 24], sizes = [8, 8], strides = [1, 1]} : vector<8x32xbf16> to vector<8x8xbf16>
    %161 = vector.extract_strided_slice %108 {offsets = [0, 24], sizes = [8, 8], strides = [1, 1]} : vector<8x32xbf16> to vector<8x8xbf16>
    %cst_59 = arith.constant dense<0.000000e+00> : vector<8x8xf32>
    %162 = tpu.matmul %159, %160, %cst_59 {dimension_numbers = #tpu.dot_dimension_numbers<[1], [1], [0], [0], [0, 0, 1, 0], [], []>} : vector<8x8xbf16>, vector<8x8xbf16>, vector<8x8xf32> -> vector<8x8xf32>
    %163 = arith.addf %162, %110 : vector<8x8xf32>
    %cst_60 = arith.constant dense<0xFF800000> : vector<8xf32>
    %164 = vector.multi_reduction <maximumf>, %163, %cst_60 [1] : vector<8x8xf32> to vector<8xf32>
    %165 = vector.shape_cast %164 : vector<8xf32> to vector<8x1xf32>
    %166 = vector.broadcast %165 : vector<8x1xf32> to vector<8x8xf32>
    %167 = arith.subf %163, %166 : vector<8x8xf32>
    %168 = math.exp %167 : vector<8x8xf32>
    %cst_61 = arith.constant dense<0.000000e+00> : vector<8xf32>
    %169 = vector.multi_reduction <add>, %168, %cst_61 [1] : vector<8x8xf32> to vector<8xf32>
    %170 = vector.shape_cast %169 : vector<8xf32> to vector<8x1xf32>
    %171 = vector.broadcast %170 : vector<8x1xf32> to vector<8x8xf32>
    %172 = arith.divf %168, %171 : vector<8x8xf32>
    %173 = arith.truncf %172 : vector<8x8xf32> to vector<8x8xbf16>
    %cst_62 = arith.constant dense<0.000000e+00> : vector<8x8xf32>
    %174 = tpu.matmul %173, %161, %cst_62 {dimension_numbers = #tpu.dot_dimension_numbers<[1], [0], [0], [1], [0, 0, 1, 1], [], []>} : vector<8x8xbf16>, vector<8x8xbf16>, vector<8x8xf32> -> vector<8x8xf32>
    %175 = tpu.concatenate %126, %142, %158, %174 in 1 : vector<8x8xf32>, vector<8x8xf32>, vector<8x8xf32>, vector<8x8xf32> -> vector<8x32xf32>
    %176 = tpu.concatenate %100, %175 in 0 : vector<8x32xf32>, vector<8x32xf32> -> vector<16x32xf32>
    %177 = arith.truncf %176 : vector<16x32xf32> to vector<16x32xbf16>
    %cst_63 = arith.constant dense<0.000000e+00> : vector<16x32xf32>
    %178 = tpu.matmul %177, %23, %cst_63 {dimension_numbers = #tpu.dot_dimension_numbers<[1], [0], [0], [1], [0, 0, 1, 1], [], []>} : vector<16x32xbf16>, vector<32x32xbf16>, vector<16x32xf32> -> vector<16x32xf32>
    %179 = vector.broadcast %25 : vector<1x32xf32> to vector<16x32xf32>
    %180 = arith.addf %178, %179 : vector<16x32xf32>
    %181 = arith.addf %4, %180 : vector<16x32xf32>
    %cst_64 = arith.constant dense<0.000000e+00> : vector<16xf32>
    %182 = vector.multi_reduction <add>, %181, %cst_64 [1] : vector<16x32xf32> to vector<16xf32>
    %183 = vector.shape_cast %182 : vector<16xf32> to vector<16x1xf32>
    %cst_65 = arith.constant 3.200000e+01 : f32
    %184 = vector.broadcast %cst_65 : f32 to vector<16x1xf32>
    %185 = arith.divf %183, %184 : vector<16x1xf32>
    %186 = vector.broadcast %185 : vector<16x1xf32> to vector<16x32xf32>
    %187 = arith.subf %181, %186 : vector<16x32xf32>
    %188 = arith.mulf %187, %187 : vector<16x32xf32>
    %cst_66 = arith.constant dense<0.000000e+00> : vector<16xf32>
    %189 = vector.multi_reduction <add>, %188, %cst_66 [1] : vector<16x32xf32> to vector<16xf32>
    %190 = vector.shape_cast %189 : vector<16xf32> to vector<16x1xf32>
    %cst_67 = arith.constant 3.200000e+01 : f32
    %191 = vector.broadcast %cst_67 : f32 to vector<16x1xf32>
    %192 = arith.divf %190, %191 : vector<16x1xf32>
    %193 = vector.broadcast %185 : vector<16x1xf32> to vector<16x32xf32>
    %194 = arith.subf %181, %193 : vector<16x32xf32>
    %cst_68 = arith.constant 9.99999974E-6 : f32
    %195 = vector.broadcast %cst_68 : f32 to vector<16x1xf32>
    %196 = arith.addf %192, %195 : vector<16x1xf32>
    %197 = math.rsqrt %196 : vector<16x1xf32>
    %198 = vector.broadcast %197 : vector<16x1xf32> to vector<16x32xf32>
    %199 = arith.mulf %194, %198 : vector<16x32xf32>
    %200 = vector.extract_strided_slice %8 {offsets = [0, 0], sizes = [1, 32], strides = [1, 1]} : vector<3x32xf32> to vector<1x32xf32>
    %201 = vector.broadcast %200 : vector<1x32xf32> to vector<16x32xf32>
    %202 = arith.mulf %199, %201 : vector<16x32xf32>
    %203 = vector.extract_strided_slice %10 {offsets = [0, 0], sizes = [1, 32], strides = [1, 1]} : vector<3x32xf32> to vector<1x32xf32>
    %204 = vector.broadcast %203 : vector<1x32xf32> to vector<16x32xf32>
    %205 = arith.addf %202, %204 : vector<16x32xf32>
    %206 = arith.truncf %205 : vector<16x32xf32> to vector<16x32xbf16>
    %c0_69 = arith.constant 0 : index
    %c0_70 = arith.constant 0 : index
    %c0_71 = arith.constant 0 : index
    %207 = vector.load %arg9[%c0_69, %c0_70, %c0_71] : memref<1x32x32xbf16, #tpu.memory_space<vmem>>, vector<1x32x32xbf16>
    %208 = vector.shape_cast %207 : vector<1x32x32xbf16> to vector<32x32xbf16>
    %cst_72 = arith.constant dense<0.000000e+00> : vector<16x32xf32>
    %209 = tpu.matmul %206, %208, %cst_72 {dimension_numbers = #tpu.dot_dimension_numbers<[1], [0], [0], [1], [0, 0, 1, 1], [], []>} : vector<16x32xbf16>, vector<32x32xbf16>, vector<16x32xf32> -> vector<16x32xf32>
    %c0_73 = arith.constant 0 : index
    %c0_74 = arith.constant 0 : index
    %c0_75 = arith.constant 0 : index
    %210 = vector.load %arg10[%c0_73, %c0_74, %c0_75] : memref<1x1x32xf32, #tpu.memory_space<vmem>>, vector<1x1x32xf32>
    %211 = vector.shape_cast %210 : vector<1x1x32xf32> to vector<1x32xf32>
    %212 = vector.broadcast %211 : vector<1x32xf32> to vector<16x32xf32>
    %213 = arith.addf %209, %212 : vector<16x32xf32>
    %c0_76 = arith.constant 0 : index
    %c0_77 = arith.constant 0 : index
    %c0_78 = arith.constant 0 : index
    %214 = vector.load %arg11[%c0_76, %c0_77, %c0_78] : memref<1x32x64xbf16, #tpu.memory_space<vmem>>, vector<1x32x64xbf16>
    %215 = vector.shape_cast %214 : vector<1x32x64xbf16> to vector<32x64xbf16>
    %cst_79 = arith.constant dense<0.000000e+00> : vector<16x64xf32>
    %216 = tpu.matmul %6, %215, %cst_79 {dimension_numbers = #tpu.dot_dimension_numbers<[1], [0], [0], [1], [0, 0, 1, 1], [], []>} : vector<16x32xbf16>, vector<32x64xbf16>, vector<16x64xf32> -> vector<16x64xf32>
    %c0_80 = arith.constant 0 : index
    %c0_81 = arith.constant 0 : index
    %c0_82 = arith.constant 0 : index
    %217 = vector.load %arg12[%c0_80, %c0_81, %c0_82] : memref<1x1x64xf32, #tpu.memory_space<vmem>>, vector<1x1x64xf32>
    %218 = vector.shape_cast %217 : vector<1x1x64xf32> to vector<1x64xf32>
    %219 = vector.broadcast %218 : vector<1x64xf32> to vector<16x64xf32>
    %220 = arith.addf %216, %219 : vector<16x64xf32>
    %221 = vector.extract_strided_slice %220 {offsets = [0, 0], sizes = [16, 32], strides = [1, 1]} : vector<16x64xf32> to vector<16x32xf32>
    %222 = vector.extract_strided_slice %220 {offsets = [0, 32], sizes = [16, 32], strides = [1, 1]} : vector<16x64xf32> to vector<16x32xf32>
    %c0_83 = arith.constant 0 : index
    %c0_84 = arith.constant 0 : index
    %c0_85 = arith.constant 0 : index
    %223 = vector.load %arg13[%c0_83, %c0_84, %c0_85] : memref<1x32x32xbf16, #tpu.memory_space<vmem>>, vector<1x32x32xbf16>
    %224 = vector.shape_cast %223 : vector<1x32x32xbf16> to vector<32x32xbf16>
    %c0_86 = arith.constant 0 : index
    %c0_87 = arith.constant 0 : index
    %c0_88 = arith.constant 0 : index
    %225 = vector.load %arg14[%c0_86, %c0_87, %c0_88] : memref<1x1x32xf32, #tpu.memory_space<vmem>>, vector<1x1x32xf32>
    %226 = vector.shape_cast %225 : vector<1x1x32xf32> to vector<1x32xf32>
    %227 = vector.extract_strided_slice %213 {offsets = [0, 0], sizes = [8, 32], strides = [1, 1]} : vector<16x32xf32> to vector<8x32xf32>
    %cst_89 = arith.constant 0.353553385 : f32
    %228 = vector.broadcast %cst_89 : f32 to vector<8x32xf32>
    %229 = arith.mulf %227, %228 : vector<8x32xf32>
    %230 = arith.truncf %229 : vector<8x32xf32> to vector<8x32xbf16>
    %231 = vector.extract_strided_slice %221 {offsets = [0, 0], sizes = [8, 32], strides = [1, 1]} : vector<16x32xf32> to vector<8x32xf32>
    %232 = arith.truncf %231 : vector<8x32xf32> to vector<8x32xbf16>
    %233 = vector.extract_strided_slice %222 {offsets = [0, 0], sizes = [8, 32], strides = [1, 1]} : vector<16x32xf32> to vector<8x32xf32>
    %234 = arith.truncf %233 : vector<8x32xf32> to vector<8x32xbf16>
    %c0_90 = arith.constant 0 : index
    %c0_91 = arith.constant 0 : index
    %c0_92 = arith.constant 0 : index
    %235 = vector.load %arg23[%c0_90, %c0_91, %c0_92] : memref<2x8x8xf32, #tpu.memory_space<vmem>>, vector<1x8x8xf32>
    %236 = vector.shape_cast %235 : vector<1x8x8xf32> to vector<8x8xf32>
    %237 = vector.extract_strided_slice %230 {offsets = [0, 0], sizes = [8, 8], strides = [1, 1]} : vector<8x32xbf16> to vector<8x8xbf16>
    %238 = vector.extract_strided_slice %232 {offsets = [0, 0], sizes = [8, 8], strides = [1, 1]} : vector<8x32xbf16> to vector<8x8xbf16>
    %239 = vector.extract_strided_slice %234 {offsets = [0, 0], sizes = [8, 8], strides = [1, 1]} : vector<8x32xbf16> to vector<8x8xbf16>
    %cst_93 = arith.constant dense<0.000000e+00> : vector<8x8xf32>
    %240 = tpu.matmul %237, %238, %cst_93 {dimension_numbers = #tpu.dot_dimension_numbers<[1], [1], [0], [0], [0, 0, 1, 0], [], []>} : vector<8x8xbf16>, vector<8x8xbf16>, vector<8x8xf32> -> vector<8x8xf32>
    %241 = arith.addf %240, %236 : vector<8x8xf32>
    %cst_94 = arith.constant dense<0xFF800000> : vector<8xf32>
    %242 = vector.multi_reduction <maximumf>, %241, %cst_94 [1] : vector<8x8xf32> to vector<8xf32>
    %243 = vector.shape_cast %242 : vector<8xf32> to vector<8x1xf32>
    %244 = vector.broadcast %243 : vector<8x1xf32> to vector<8x8xf32>
    %245 = arith.subf %241, %244 : vector<8x8xf32>
    %246 = math.exp %245 : vector<8x8xf32>
    %cst_95 = arith.constant dense<0.000000e+00> : vector<8xf32>
    %247 = vector.multi_reduction <add>, %246, %cst_95 [1] : vector<8x8xf32> to vector<8xf32>
    %248 = vector.shape_cast %247 : vector<8xf32> to vector<8x1xf32>
    %249 = vector.broadcast %248 : vector<8x1xf32> to vector<8x8xf32>
    %250 = arith.divf %246, %249 : vector<8x8xf32>
    %251 = arith.truncf %250 : vector<8x8xf32> to vector<8x8xbf16>
    %cst_96 = arith.constant dense<0.000000e+00> : vector<8x8xf32>
    %252 = tpu.matmul %251, %239, %cst_96 {dimension_numbers = #tpu.dot_dimension_numbers<[1], [0], [0], [1], [0, 0, 1, 1], [], []>} : vector<8x8xbf16>, vector<8x8xbf16>, vector<8x8xf32> -> vector<8x8xf32>
    %253 = vector.extract_strided_slice %230 {offsets = [0, 8], sizes = [8, 8], strides = [1, 1]} : vector<8x32xbf16> to vector<8x8xbf16>
    %254 = vector.extract_strided_slice %232 {offsets = [0, 8], sizes = [8, 8], strides = [1, 1]} : vector<8x32xbf16> to vector<8x8xbf16>
    %255 = vector.extract_strided_slice %234 {offsets = [0, 8], sizes = [8, 8], strides = [1, 1]} : vector<8x32xbf16> to vector<8x8xbf16>
    %cst_97 = arith.constant dense<0.000000e+00> : vector<8x8xf32>
    %256 = tpu.matmul %253, %254, %cst_97 {dimension_numbers = #tpu.dot_dimension_numbers<[1], [1], [0], [0], [0, 0, 1, 0], [], []>} : vector<8x8xbf16>, vector<8x8xbf16>, vector<8x8xf32> -> vector<8x8xf32>
    %257 = arith.addf %256, %236 : vector<8x8xf32>
    %cst_98 = arith.constant dense<0xFF800000> : vector<8xf32>
    %258 = vector.multi_reduction <maximumf>, %257, %cst_98 [1] : vector<8x8xf32> to vector<8xf32>
    %259 = vector.shape_cast %258 : vector<8xf32> to vector<8x1xf32>
    %260 = vector.broadcast %259 : vector<8x1xf32> to vector<8x8xf32>
    %261 = arith.subf %257, %260 : vector<8x8xf32>
    %262 = math.exp %261 : vector<8x8xf32>
    %cst_99 = arith.constant dense<0.000000e+00> : vector<8xf32>
    %263 = vector.multi_reduction <add>, %262, %cst_99 [1] : vector<8x8xf32> to vector<8xf32>
    %264 = vector.shape_cast %263 : vector<8xf32> to vector<8x1xf32>
    %265 = vector.broadcast %264 : vector<8x1xf32> to vector<8x8xf32>
    %266 = arith.divf %262, %265 : vector<8x8xf32>
    %267 = arith.truncf %266 : vector<8x8xf32> to vector<8x8xbf16>
    %cst_100 = arith.constant dense<0.000000e+00> : vector<8x8xf32>
    %268 = tpu.matmul %267, %255, %cst_100 {dimension_numbers = #tpu.dot_dimension_numbers<[1], [0], [0], [1], [0, 0, 1, 1], [], []>} : vector<8x8xbf16>, vector<8x8xbf16>, vector<8x8xf32> -> vector<8x8xf32>
    %269 = vector.extract_strided_slice %230 {offsets = [0, 16], sizes = [8, 8], strides = [1, 1]} : vector<8x32xbf16> to vector<8x8xbf16>
    %270 = vector.extract_strided_slice %232 {offsets = [0, 16], sizes = [8, 8], strides = [1, 1]} : vector<8x32xbf16> to vector<8x8xbf16>
    %271 = vector.extract_strided_slice %234 {offsets = [0, 16], sizes = [8, 8], strides = [1, 1]} : vector<8x32xbf16> to vector<8x8xbf16>
    %cst_101 = arith.constant dense<0.000000e+00> : vector<8x8xf32>
    %272 = tpu.matmul %269, %270, %cst_101 {dimension_numbers = #tpu.dot_dimension_numbers<[1], [1], [0], [0], [0, 0, 1, 0], [], []>} : vector<8x8xbf16>, vector<8x8xbf16>, vector<8x8xf32> -> vector<8x8xf32>
    %273 = arith.addf %272, %236 : vector<8x8xf32>
    %cst_102 = arith.constant dense<0xFF800000> : vector<8xf32>
    %274 = vector.multi_reduction <maximumf>, %273, %cst_102 [1] : vector<8x8xf32> to vector<8xf32>
    %275 = vector.shape_cast %274 : vector<8xf32> to vector<8x1xf32>
    %276 = vector.broadcast %275 : vector<8x1xf32> to vector<8x8xf32>
    %277 = arith.subf %273, %276 : vector<8x8xf32>
    %278 = math.exp %277 : vector<8x8xf32>
    %cst_103 = arith.constant dense<0.000000e+00> : vector<8xf32>
    %279 = vector.multi_reduction <add>, %278, %cst_103 [1] : vector<8x8xf32> to vector<8xf32>
    %280 = vector.shape_cast %279 : vector<8xf32> to vector<8x1xf32>
    %281 = vector.broadcast %280 : vector<8x1xf32> to vector<8x8xf32>
    %282 = arith.divf %278, %281 : vector<8x8xf32>
    %283 = arith.truncf %282 : vector<8x8xf32> to vector<8x8xbf16>
    %cst_104 = arith.constant dense<0.000000e+00> : vector<8x8xf32>
    %284 = tpu.matmul %283, %271, %cst_104 {dimension_numbers = #tpu.dot_dimension_numbers<[1], [0], [0], [1], [0, 0, 1, 1], [], []>} : vector<8x8xbf16>, vector<8x8xbf16>, vector<8x8xf32> -> vector<8x8xf32>
    %285 = vector.extract_strided_slice %230 {offsets = [0, 24], sizes = [8, 8], strides = [1, 1]} : vector<8x32xbf16> to vector<8x8xbf16>
    %286 = vector.extract_strided_slice %232 {offsets = [0, 24], sizes = [8, 8], strides = [1, 1]} : vector<8x32xbf16> to vector<8x8xbf16>
    %287 = vector.extract_strided_slice %234 {offsets = [0, 24], sizes = [8, 8], strides = [1, 1]} : vector<8x32xbf16> to vector<8x8xbf16>
    %cst_105 = arith.constant dense<0.000000e+00> : vector<8x8xf32>
    %288 = tpu.matmul %285, %286, %cst_105 {dimension_numbers = #tpu.dot_dimension_numbers<[1], [1], [0], [0], [0, 0, 1, 0], [], []>} : vector<8x8xbf16>, vector<8x8xbf16>, vector<8x8xf32> -> vector<8x8xf32>
    %289 = arith.addf %288, %236 : vector<8x8xf32>
    %cst_106 = arith.constant dense<0xFF800000> : vector<8xf32>
    %290 = vector.multi_reduction <maximumf>, %289, %cst_106 [1] : vector<8x8xf32> to vector<8xf32>
    %291 = vector.shape_cast %290 : vector<8xf32> to vector<8x1xf32>
    %292 = vector.broadcast %291 : vector<8x1xf32> to vector<8x8xf32>
    %293 = arith.subf %289, %292 : vector<8x8xf32>
    %294 = math.exp %293 : vector<8x8xf32>
    %cst_107 = arith.constant dense<0.000000e+00> : vector<8xf32>
    %295 = vector.multi_reduction <add>, %294, %cst_107 [1] : vector<8x8xf32> to vector<8xf32>
    %296 = vector.shape_cast %295 : vector<8xf32> to vector<8x1xf32>
    %297 = vector.broadcast %296 : vector<8x1xf32> to vector<8x8xf32>
    %298 = arith.divf %294, %297 : vector<8x8xf32>
    %299 = arith.truncf %298 : vector<8x8xf32> to vector<8x8xbf16>
    %cst_108 = arith.constant dense<0.000000e+00> : vector<8x8xf32>
    %300 = tpu.matmul %299, %287, %cst_108 {dimension_numbers = #tpu.dot_dimension_numbers<[1], [0], [0], [1], [0, 0, 1, 1], [], []>} : vector<8x8xbf16>, vector<8x8xbf16>, vector<8x8xf32> -> vector<8x8xf32>
    %301 = tpu.concatenate %252, %268, %284, %300 in 1 : vector<8x8xf32>, vector<8x8xf32>, vector<8x8xf32>, vector<8x8xf32> -> vector<8x32xf32>
    %302 = vector.extract_strided_slice %213 {offsets = [8, 0], sizes = [8, 32], strides = [1, 1]} : vector<16x32xf32> to vector<8x32xf32>
    %cst_109 = arith.constant 0.353553385 : f32
    %303 = vector.broadcast %cst_109 : f32 to vector<8x32xf32>
    %304 = arith.mulf %302, %303 : vector<8x32xf32>
    %305 = arith.truncf %304 : vector<8x32xf32> to vector<8x32xbf16>
    %306 = vector.extract_strided_slice %221 {offsets = [8, 0], sizes = [8, 32], strides = [1, 1]} : vector<16x32xf32> to vector<8x32xf32>
    %307 = arith.truncf %306 : vector<8x32xf32> to vector<8x32xbf16>
    %308 = vector.extract_strided_slice %222 {offsets = [8, 0], sizes = [8, 32], strides = [1, 1]} : vector<16x32xf32> to vector<8x32xf32>
    %309 = arith.truncf %308 : vector<8x32xf32> to vector<8x32xbf16>
    %c1_110 = arith.constant 1 : index
    %c0_111 = arith.constant 0 : index
    %c0_112 = arith.constant 0 : index
    %310 = vector.load %arg23[%c1_110, %c0_111, %c0_112] : memref<2x8x8xf32, #tpu.memory_space<vmem>>, vector<1x8x8xf32>
    %311 = vector.shape_cast %310 : vector<1x8x8xf32> to vector<8x8xf32>
    %312 = vector.extract_strided_slice %305 {offsets = [0, 0], sizes = [8, 8], strides = [1, 1]} : vector<8x32xbf16> to vector<8x8xbf16>
    %313 = vector.extract_strided_slice %307 {offsets = [0, 0], sizes = [8, 8], strides = [1, 1]} : vector<8x32xbf16> to vector<8x8xbf16>
    %314 = vector.extract_strided_slice %309 {offsets = [0, 0], sizes = [8, 8], strides = [1, 1]} : vector<8x32xbf16> to vector<8x8xbf16>
    %cst_113 = arith.constant dense<0.000000e+00> : vector<8x8xf32>
    %315 = tpu.matmul %312, %313, %cst_113 {dimension_numbers = #tpu.dot_dimension_numbers<[1], [1], [0], [0], [0, 0, 1, 0], [], []>} : vector<8x8xbf16>, vector<8x8xbf16>, vector<8x8xf32> -> vector<8x8xf32>
    %316 = arith.addf %315, %311 : vector<8x8xf32>
    %cst_114 = arith.constant dense<0xFF800000> : vector<8xf32>
    %317 = vector.multi_reduction <maximumf>, %316, %cst_114 [1] : vector<8x8xf32> to vector<8xf32>
    %318 = vector.shape_cast %317 : vector<8xf32> to vector<8x1xf32>
    %319 = vector.broadcast %318 : vector<8x1xf32> to vector<8x8xf32>
    %320 = arith.subf %316, %319 : vector<8x8xf32>
    %321 = math.exp %320 : vector<8x8xf32>
    %cst_115 = arith.constant dense<0.000000e+00> : vector<8xf32>
    %322 = vector.multi_reduction <add>, %321, %cst_115 [1] : vector<8x8xf32> to vector<8xf32>
    %323 = vector.shape_cast %322 : vector<8xf32> to vector<8x1xf32>
    %324 = vector.broadcast %323 : vector<8x1xf32> to vector<8x8xf32>
    %325 = arith.divf %321, %324 : vector<8x8xf32>
    %326 = arith.truncf %325 : vector<8x8xf32> to vector<8x8xbf16>
    %cst_116 = arith.constant dense<0.000000e+00> : vector<8x8xf32>
    %327 = tpu.matmul %326, %314, %cst_116 {dimension_numbers = #tpu.dot_dimension_numbers<[1], [0], [0], [1], [0, 0, 1, 1], [], []>} : vector<8x8xbf16>, vector<8x8xbf16>, vector<8x8xf32> -> vector<8x8xf32>
    %328 = vector.extract_strided_slice %305 {offsets = [0, 8], sizes = [8, 8], strides = [1, 1]} : vector<8x32xbf16> to vector<8x8xbf16>
    %329 = vector.extract_strided_slice %307 {offsets = [0, 8], sizes = [8, 8], strides = [1, 1]} : vector<8x32xbf16> to vector<8x8xbf16>
    %330 = vector.extract_strided_slice %309 {offsets = [0, 8], sizes = [8, 8], strides = [1, 1]} : vector<8x32xbf16> to vector<8x8xbf16>
    %cst_117 = arith.constant dense<0.000000e+00> : vector<8x8xf32>
    %331 = tpu.matmul %328, %329, %cst_117 {dimension_numbers = #tpu.dot_dimension_numbers<[1], [1], [0], [0], [0, 0, 1, 0], [], []>} : vector<8x8xbf16>, vector<8x8xbf16>, vector<8x8xf32> -> vector<8x8xf32>
    %332 = arith.addf %331, %311 : vector<8x8xf32>
    %cst_118 = arith.constant dense<0xFF800000> : vector<8xf32>
    %333 = vector.multi_reduction <maximumf>, %332, %cst_118 [1] : vector<8x8xf32> to vector<8xf32>
    %334 = vector.shape_cast %333 : vector<8xf32> to vector<8x1xf32>
    %335 = vector.broadcast %334 : vector<8x1xf32> to vector<8x8xf32>
    %336 = arith.subf %332, %335 : vector<8x8xf32>
    %337 = math.exp %336 : vector<8x8xf32>
    %cst_119 = arith.constant dense<0.000000e+00> : vector<8xf32>
    %338 = vector.multi_reduction <add>, %337, %cst_119 [1] : vector<8x8xf32> to vector<8xf32>
    %339 = vector.shape_cast %338 : vector<8xf32> to vector<8x1xf32>
    %340 = vector.broadcast %339 : vector<8x1xf32> to vector<8x8xf32>
    %341 = arith.divf %337, %340 : vector<8x8xf32>
    %342 = arith.truncf %341 : vector<8x8xf32> to vector<8x8xbf16>
    %cst_120 = arith.constant dense<0.000000e+00> : vector<8x8xf32>
    %343 = tpu.matmul %342, %330, %cst_120 {dimension_numbers = #tpu.dot_dimension_numbers<[1], [0], [0], [1], [0, 0, 1, 1], [], []>} : vector<8x8xbf16>, vector<8x8xbf16>, vector<8x8xf32> -> vector<8x8xf32>
    %344 = vector.extract_strided_slice %305 {offsets = [0, 16], sizes = [8, 8], strides = [1, 1]} : vector<8x32xbf16> to vector<8x8xbf16>
    %345 = vector.extract_strided_slice %307 {offsets = [0, 16], sizes = [8, 8], strides = [1, 1]} : vector<8x32xbf16> to vector<8x8xbf16>
    %346 = vector.extract_strided_slice %309 {offsets = [0, 16], sizes = [8, 8], strides = [1, 1]} : vector<8x32xbf16> to vector<8x8xbf16>
    %cst_121 = arith.constant dense<0.000000e+00> : vector<8x8xf32>
    %347 = tpu.matmul %344, %345, %cst_121 {dimension_numbers = #tpu.dot_dimension_numbers<[1], [1], [0], [0], [0, 0, 1, 0], [], []>} : vector<8x8xbf16>, vector<8x8xbf16>, vector<8x8xf32> -> vector<8x8xf32>
    %348 = arith.addf %347, %311 : vector<8x8xf32>
    %cst_122 = arith.constant dense<0xFF800000> : vector<8xf32>
    %349 = vector.multi_reduction <maximumf>, %348, %cst_122 [1] : vector<8x8xf32> to vector<8xf32>
    %350 = vector.shape_cast %349 : vector<8xf32> to vector<8x1xf32>
    %351 = vector.broadcast %350 : vector<8x1xf32> to vector<8x8xf32>
    %352 = arith.subf %348, %351 : vector<8x8xf32>
    %353 = math.exp %352 : vector<8x8xf32>
    %cst_123 = arith.constant dense<0.000000e+00> : vector<8xf32>
    %354 = vector.multi_reduction <add>, %353, %cst_123 [1] : vector<8x8xf32> to vector<8xf32>
    %355 = vector.shape_cast %354 : vector<8xf32> to vector<8x1xf32>
    %356 = vector.broadcast %355 : vector<8x1xf32> to vector<8x8xf32>
    %357 = arith.divf %353, %356 : vector<8x8xf32>
    %358 = arith.truncf %357 : vector<8x8xf32> to vector<8x8xbf16>
    %cst_124 = arith.constant dense<0.000000e+00> : vector<8x8xf32>
    %359 = tpu.matmul %358, %346, %cst_124 {dimension_numbers = #tpu.dot_dimension_numbers<[1], [0], [0], [1], [0, 0, 1, 1], [], []>} : vector<8x8xbf16>, vector<8x8xbf16>, vector<8x8xf32> -> vector<8x8xf32>
    %360 = vector.extract_strided_slice %305 {offsets = [0, 24], sizes = [8, 8], strides = [1, 1]} : vector<8x32xbf16> to vector<8x8xbf16>
    %361 = vector.extract_strided_slice %307 {offsets = [0, 24], sizes = [8, 8], strides = [1, 1]} : vector<8x32xbf16> to vector<8x8xbf16>
    %362 = vector.extract_strided_slice %309 {offsets = [0, 24], sizes = [8, 8], strides = [1, 1]} : vector<8x32xbf16> to vector<8x8xbf16>
    %cst_125 = arith.constant dense<0.000000e+00> : vector<8x8xf32>
    %363 = tpu.matmul %360, %361, %cst_125 {dimension_numbers = #tpu.dot_dimension_numbers<[1], [1], [0], [0], [0, 0, 1, 0], [], []>} : vector<8x8xbf16>, vector<8x8xbf16>, vector<8x8xf32> -> vector<8x8xf32>
    %364 = arith.addf %363, %311 : vector<8x8xf32>
    %cst_126 = arith.constant dense<0xFF800000> : vector<8xf32>
    %365 = vector.multi_reduction <maximumf>, %364, %cst_126 [1] : vector<8x8xf32> to vector<8xf32>
    %366 = vector.shape_cast %365 : vector<8xf32> to vector<8x1xf32>
    %367 = vector.broadcast %366 : vector<8x1xf32> to vector<8x8xf32>
    %368 = arith.subf %364, %367 : vector<8x8xf32>
    %369 = math.exp %368 : vector<8x8xf32>
    %cst_127 = arith.constant dense<0.000000e+00> : vector<8xf32>
    %370 = vector.multi_reduction <add>, %369, %cst_127 [1] : vector<8x8xf32> to vector<8xf32>
    %371 = vector.shape_cast %370 : vector<8xf32> to vector<8x1xf32>
    %372 = vector.broadcast %371 : vector<8x1xf32> to vector<8x8xf32>
    %373 = arith.divf %369, %372 : vector<8x8xf32>
    %374 = arith.truncf %373 : vector<8x8xf32> to vector<8x8xbf16>
    %cst_128 = arith.constant dense<0.000000e+00> : vector<8x8xf32>
    %375 = tpu.matmul %374, %362, %cst_128 {dimension_numbers = #tpu.dot_dimension_numbers<[1], [0], [0], [1], [0, 0, 1, 1], [], []>} : vector<8x8xbf16>, vector<8x8xbf16>, vector<8x8xf32> -> vector<8x8xf32>
    %376 = tpu.concatenate %327, %343, %359, %375 in 1 : vector<8x8xf32>, vector<8x8xf32>, vector<8x8xf32>, vector<8x8xf32> -> vector<8x32xf32>
    %377 = tpu.concatenate %301, %376 in 0 : vector<8x32xf32>, vector<8x32xf32> -> vector<16x32xf32>
    %378 = arith.truncf %377 : vector<16x32xf32> to vector<16x32xbf16>
    %cst_129 = arith.constant dense<0.000000e+00> : vector<16x32xf32>
    %379 = tpu.matmul %378, %224, %cst_129 {dimension_numbers = #tpu.dot_dimension_numbers<[1], [0], [0], [1], [0, 0, 1, 1], [], []>} : vector<16x32xbf16>, vector<32x32xbf16>, vector<16x32xf32> -> vector<16x32xf32>
    %380 = vector.broadcast %226 : vector<1x32xf32> to vector<16x32xf32>
    %381 = arith.addf %379, %380 : vector<16x32xf32>
    %382 = arith.addf %205, %381 : vector<16x32xf32>
    %cst_130 = arith.constant dense<0.000000e+00> : vector<16xf32>
    %383 = vector.multi_reduction <add>, %382, %cst_130 [1] : vector<16x32xf32> to vector<16xf32>
    %384 = vector.shape_cast %383 : vector<16xf32> to vector<16x1xf32>
    %cst_131 = arith.constant 3.200000e+01 : f32
    %385 = vector.broadcast %cst_131 : f32 to vector<16x1xf32>
    %386 = arith.divf %384, %385 : vector<16x1xf32>
    %387 = vector.broadcast %386 : vector<16x1xf32> to vector<16x32xf32>
    %388 = arith.subf %382, %387 : vector<16x32xf32>
    %389 = arith.mulf %388, %388 : vector<16x32xf32>
    %cst_132 = arith.constant dense<0.000000e+00> : vector<16xf32>
    %390 = vector.multi_reduction <add>, %389, %cst_132 [1] : vector<16x32xf32> to vector<16xf32>
    %391 = vector.shape_cast %390 : vector<16xf32> to vector<16x1xf32>
    %cst_133 = arith.constant 3.200000e+01 : f32
    %392 = vector.broadcast %cst_133 : f32 to vector<16x1xf32>
    %393 = arith.divf %391, %392 : vector<16x1xf32>
    %394 = vector.broadcast %386 : vector<16x1xf32> to vector<16x32xf32>
    %395 = arith.subf %382, %394 : vector<16x32xf32>
    %cst_134 = arith.constant 9.99999974E-6 : f32
    %396 = vector.broadcast %cst_134 : f32 to vector<16x1xf32>
    %397 = arith.addf %393, %396 : vector<16x1xf32>
    %398 = math.rsqrt %397 : vector<16x1xf32>
    %399 = vector.broadcast %398 : vector<16x1xf32> to vector<16x32xf32>
    %400 = arith.mulf %395, %399 : vector<16x32xf32>
    %401 = vector.extract_strided_slice %8 {offsets = [1, 0], sizes = [1, 32], strides = [1, 1]} : vector<3x32xf32> to vector<1x32xf32>
    %402 = vector.broadcast %401 : vector<1x32xf32> to vector<16x32xf32>
    %403 = arith.mulf %400, %402 : vector<16x32xf32>
    %404 = vector.extract_strided_slice %10 {offsets = [1, 0], sizes = [1, 32], strides = [1, 1]} : vector<3x32xf32> to vector<1x32xf32>
    %405 = vector.broadcast %404 : vector<1x32xf32> to vector<16x32xf32>
    %406 = arith.addf %403, %405 : vector<16x32xf32>
    %407 = arith.truncf %406 : vector<16x32xf32> to vector<16x32xbf16>
    %c0_135 = arith.constant 0 : index
    %c0_136 = arith.constant 0 : index
    %c0_137 = arith.constant 0 : index
    %408 = vector.load %arg15[%c0_135, %c0_136, %c0_137] : memref<1x32x64xbf16, #tpu.memory_space<vmem>>, vector<1x32x64xbf16>
    %409 = vector.shape_cast %408 : vector<1x32x64xbf16> to vector<32x64xbf16>
    %cst_138 = arith.constant dense<0.000000e+00> : vector<16x64xf32>
    %410 = tpu.matmul %407, %409, %cst_138 {dimension_numbers = #tpu.dot_dimension_numbers<[1], [0], [0], [1], [0, 0, 1, 1], [], []>} : vector<16x32xbf16>, vector<32x64xbf16>, vector<16x64xf32> -> vector<16x64xf32>
    %c0_139 = arith.constant 0 : index
    %c0_140 = arith.constant 0 : index
    %c0_141 = arith.constant 0 : index
    %411 = vector.load %arg16[%c0_139, %c0_140, %c0_141] : memref<1x1x64xf32, #tpu.memory_space<vmem>>, vector<1x1x64xf32>
    %412 = vector.shape_cast %411 : vector<1x1x64xf32> to vector<1x64xf32>
    %413 = vector.broadcast %412 : vector<1x64xf32> to vector<16x64xf32>
    %414 = arith.addf %410, %413 : vector<16x64xf32>
    %cst_142 = arith.constant 0.000000e+00 : f32
    %415 = vector.broadcast %cst_142 : f32 to vector<16x64xf32>
    %416 = arith.maximumf %414, %415 : vector<16x64xf32>
    %417 = arith.truncf %416 : vector<16x64xf32> to vector<16x64xbf16>
    %c0_143 = arith.constant 0 : index
    %c0_144 = arith.constant 0 : index
    %c0_145 = arith.constant 0 : index
    %418 = vector.load %arg17[%c0_143, %c0_144, %c0_145] : memref<1x64x32xbf16, #tpu.memory_space<vmem>>, vector<1x64x32xbf16>
    %419 = vector.shape_cast %418 : vector<1x64x32xbf16> to vector<64x32xbf16>
    %cst_146 = arith.constant dense<0.000000e+00> : vector<16x32xf32>
    %420 = tpu.matmul %417, %419, %cst_146 {dimension_numbers = #tpu.dot_dimension_numbers<[1], [0], [0], [1], [0, 0, 1, 1], [], []>} : vector<16x64xbf16>, vector<64x32xbf16>, vector<16x32xf32> -> vector<16x32xf32>
    %c0_147 = arith.constant 0 : index
    %c0_148 = arith.constant 0 : index
    %c0_149 = arith.constant 0 : index
    %421 = vector.load %arg18[%c0_147, %c0_148, %c0_149] : memref<1x1x32xf32, #tpu.memory_space<vmem>>, vector<1x1x32xf32>
    %422 = vector.shape_cast %421 : vector<1x1x32xf32> to vector<1x32xf32>
    %423 = vector.broadcast %422 : vector<1x32xf32> to vector<16x32xf32>
    %424 = arith.addf %420, %423 : vector<16x32xf32>
    %425 = arith.addf %406, %424 : vector<16x32xf32>
    %cst_150 = arith.constant dense<0.000000e+00> : vector<16xf32>
    %426 = vector.multi_reduction <add>, %425, %cst_150 [1] : vector<16x32xf32> to vector<16xf32>
    %427 = vector.shape_cast %426 : vector<16xf32> to vector<16x1xf32>
    %cst_151 = arith.constant 3.200000e+01 : f32
    %428 = vector.broadcast %cst_151 : f32 to vector<16x1xf32>
    %429 = arith.divf %427, %428 : vector<16x1xf32>
    %430 = vector.broadcast %429 : vector<16x1xf32> to vector<16x32xf32>
    %431 = arith.subf %425, %430 : vector<16x32xf32>
    %432 = arith.mulf %431, %431 : vector<16x32xf32>
    %cst_152 = arith.constant dense<0.000000e+00> : vector<16xf32>
    %433 = vector.multi_reduction <add>, %432, %cst_152 [1] : vector<16x32xf32> to vector<16xf32>
    %434 = vector.shape_cast %433 : vector<16xf32> to vector<16x1xf32>
    %cst_153 = arith.constant 3.200000e+01 : f32
    %435 = vector.broadcast %cst_153 : f32 to vector<16x1xf32>
    %436 = arith.divf %434, %435 : vector<16x1xf32>
    %437 = vector.broadcast %429 : vector<16x1xf32> to vector<16x32xf32>
    %438 = arith.subf %425, %437 : vector<16x32xf32>
    %cst_154 = arith.constant 9.99999974E-6 : f32
    %439 = vector.broadcast %cst_154 : f32 to vector<16x1xf32>
    %440 = arith.addf %436, %439 : vector<16x1xf32>
    %441 = math.rsqrt %440 : vector<16x1xf32>
    %442 = vector.broadcast %441 : vector<16x1xf32> to vector<16x32xf32>
    %443 = arith.mulf %438, %442 : vector<16x32xf32>
    %444 = vector.extract_strided_slice %8 {offsets = [2, 0], sizes = [1, 32], strides = [1, 1]} : vector<3x32xf32> to vector<1x32xf32>
    %445 = vector.broadcast %444 : vector<1x32xf32> to vector<16x32xf32>
    %446 = arith.mulf %443, %445 : vector<16x32xf32>
    %447 = vector.extract_strided_slice %10 {offsets = [2, 0], sizes = [1, 32], strides = [1, 1]} : vector<3x32xf32> to vector<1x32xf32>
    %448 = vector.broadcast %447 : vector<1x32xf32> to vector<16x32xf32>
    %449 = arith.addf %446, %448 : vector<16x32xf32>
    %450 = vector.shape_cast %449 : vector<16x32xf32> to vector<2x8x32xf32>
    %c0_155 = arith.constant 0 : index
    %c0_156 = arith.constant 0 : index
    %c0_157 = arith.constant 0 : index
    %451 = vector.load %arg21[%c0_155, %c0_156, %c0_157] : memref<2x8x32xf32, #tpu.memory_space<vmem>>, vector<2x8x32xf32>
    tpu.vector_store %arg21[%c0_155, %c0_156, %c0_157], %450 {strides = array<i32>} : memref<2x8x32xf32, #tpu.memory_space<vmem>>, vector<2x8x32xf32>,
    return
  }
  func.func @transform_0(%arg0: i32) -> (i32, i32, i32) {
    %c0_i32 = arith.constant 0 : i32
    %c0_i32_0 = arith.constant 0 : i32
    %c0_i32_1 = arith.constant 0 : i32
    %c0_i32_2 = arith.constant 0 : i32
    return %c0_i32, %c0_i32_0, %c0_i32_1 : i32, i32, i32
  }
  func.func @transform_1(%arg0: i32) -> (i32, i32, i32) {
    %c0_i32 = arith.constant 0 : i32
    %c0_i32_0 = arith.constant 0 : i32
    %c0_i32_1 = arith.constant 0 : i32
    %c0_i32_2 = arith.constant 0 : i32
    return %c0_i32, %c0_i32_0, %c0_i32_1 : i32, i32, i32
  }
  func.func @transform_2(%arg0: i32) -> (i32, i32) {
    %c0_i32 = arith.constant 0 : i32
    %c0_i32_0 = arith.constant 0 : i32
    %c0_i32_1 = arith.constant 0 : i32
    return %c0_i32, %c0_i32_0 : i32, i32
  }
  func.func @transform_3(%arg0: i32) -> (i32, i32) {
    %c0_i32 = arith.constant 0 : i32
    %c0_i32_0 = arith.constant 0 : i32
    %c0_i32_1 = arith.constant 0 : i32
    return %c0_i32, %c0_i32_0 : i32, i32
  }
  func.func @transform_4(%arg0: i32) -> (i32, i32, i32) {
    %c0_i32 = arith.constant 0 : i32
    %c0_i32_0 = arith.constant 0 : i32
    %c0_i32_1 = arith.constant 0 : i32
    return %arg0, %c0_i32, %c0_i32_0 : i32, i32, i32
  }
  func.func @transform_5(%arg0: i32) -> (i32, i32, i32) {
    %c0_i32 = arith.constant 0 : i32
    %c0_i32_0 = arith.constant 0 : i32
    %c0_i32_1 = arith.constant 0 : i32
    return %arg0, %c0_i32, %c0_i32_0 : i32, i32, i32
  }
  func.func @transform_6(%arg0: i32) -> (i32, i32, i32) {
    %c0_i32 = arith.constant 0 : i32
    %c0_i32_0 = arith.constant 0 : i32
    %c0_i32_1 = arith.constant 0 : i32
    return %arg0, %c0_i32, %c0_i32_0 : i32, i32, i32
  }
  func.func @transform_7(%arg0: i32) -> (i32, i32, i32) {
    %c0_i32 = arith.constant 0 : i32
    %c0_i32_0 = arith.constant 0 : i32
    %c0_i32_1 = arith.constant 0 : i32
    return %arg0, %c0_i32, %c0_i32_0 : i32, i32, i32
  }
  func.func @transform_8(%arg0: i32) -> (i32, i32, i32) {
    %c0_i32 = arith.constant 0 : i32
    %c0_i32_0 = arith.constant 0 : i32
    %c0_i32_1 = arith.constant 0 : i32
    return %arg0, %c0_i32, %c0_i32_0 : i32, i32, i32
  }
  func.func @transform_9(%arg0: i32) -> (i32, i32, i32) {
    %c0_i32 = arith.constant 0 : i32
    %c0_i32_0 = arith.constant 0 : i32
    %c0_i32_1 = arith.constant 0 : i32
    return %arg0, %c0_i32, %c0_i32_0 : i32, i32, i32
  }
  func.func @transform_10(%arg0: i32) -> (i32, i32, i32) {
    %c0_i32 = arith.constant 0 : i32
    %c0_i32_0 = arith.constant 0 : i32
    %c0_i32_1 = arith.constant 0 : i32
    return %arg0, %c0_i32, %c0_i32_0 : i32, i32, i32
  }
  func.func @transform_11(%arg0: i32) -> (i32, i32, i32) {
    %c0_i32 = arith.constant 0 : i32
    %c0_i32_0 = arith.constant 0 : i32
    %c0_i32_1 = arith.constant 0 : i32
    return %arg0, %c0_i32, %c0_i32_0 : i32, i32, i32
  }
  func.func @transform_12(%arg0: i32) -> (i32, i32, i32) {
    %c0_i32 = arith.constant 0 : i32
    %c0_i32_0 = arith.constant 0 : i32
    %c0_i32_1 = arith.constant 0 : i32
    return %arg0, %c0_i32, %c0_i32_0 : i32, i32, i32
  }
  func.func @transform_13(%arg0: i32) -> (i32, i32, i32) {
    %c0_i32 = arith.constant 0 : i32
    %c0_i32_0 = arith.constant 0 : i32
    %c0_i32_1 = arith.constant 0 : i32
    return %arg0, %c0_i32, %c0_i32_0 : i32, i32, i32
  }
  func.func @transform_14(%arg0: i32) -> (i32, i32, i32) {
    %c0_i32 = arith.constant 0 : i32
    %c0_i32_0 = arith.constant 0 : i32
    %c0_i32_1 = arith.constant 0 : i32
    return %arg0, %c0_i32, %c0_i32_0 : i32, i32, i32
  }
  func.func @transform_15(%arg0: i32) -> (i32, i32, i32) {
    %c0_i32 = arith.constant 0 : i32
    %c0_i32_0 = arith.constant 0 : i32
    %c0_i32_1 = arith.constant 0 : i32
    return %arg0, %c0_i32, %c0_i32_0 : i32, i32, i32
  }
  func.func @transform_16(%arg0: i32) -> (i32, i32, i32) {
    %c0_i32 = arith.constant 0 : i32
    %c0_i32_0 = arith.constant 0 : i32
    %c0_i32_1 = arith.constant 0 : i32
    return %arg0, %c0_i32, %c0_i32_0 : i32, i32, i32
  }
  func.func @transform_17(%arg0: i32) -> (i32, i32, i32) {
    %c0_i32 = arith.constant 0 : i32
    %c0_i32_0 = arith.constant 0 : i32
    %c0_i32_1 = arith.constant 0 : i32
    return %arg0, %c0_i32, %c0_i32_0 : i32, i32, i32
  }
  func.func @transform_18(%arg0: i32) -> (i32, i32, i32) {
    %c0_i32 = arith.constant 0 : i32
    %c0_i32_0 = arith.constant 0 : i32
    %c0_i32_1 = arith.constant 0 : i32
    return %arg0, %c0_i32, %c0_i32_0 : i32, i32, i32
  }
  func.func @transform_19(%arg0: i32) -> (i32, i32, i32) {
    %c0_i32 = arith.constant 0 : i32
    %c0_i32_0 = arith.constant 0 : i32
    %c0_i32_1 = arith.constant 0 : i32
    return %arg0, %c0_i32, %c0_i32_0 : i32, i32, i32
  }
  func.func @transform_20(%arg0: i32) -> (i32, i32, i32) {
    %c0_i32 = arith.constant 0 : i32
    %c0_i32_0 = arith.constant 0 : i32
    %c0_i32_1 = arith.constant 0 : i32
    %c0_i32_2 = arith.constant 0 : i32
    return %c0_i32, %c0_i32_0, %c0_i32_1 : i32, i32, i32
  }
}

module attributes {stable_mosaic.version = 11 : i64} {
  func.func @_linear_kernel(%arg0: i32, %arg1: i32, %arg2: i32, %arg3: memref<16x32xf32, #tpu.memory_space<vmem>>, %arg4: memref<32x40xbf16, #tpu.memory_space<vmem>>, %arg5: memref<1x40xf32, #tpu.memory_space<vmem>>, %arg6: memref<16x40xf32, #tpu.memory_space<vmem>>, %arg7: memref<16x40xf32, #tpu.memory_space<vmem>>) attributes {dimension_semantics = [#tpu.dimension_semantics<parallel>, #tpu.dimension_semantics<parallel>, #tpu.dimension_semantics<arbitrary>], iteration_bounds = array<i64: 1, 1, 1>, scalar_prefetch = 0 : i64, scratch_operands = 1 : i64, tpu.core_type = #tpu.core_type<tc>, window_params = [{transform_indices = @transform_0, window_bounds = array<i64: 16, 32>}, {transform_indices = @transform_1, window_bounds = array<i64: 32, 40>}, {transform_indices = @transform_2, window_bounds = array<i64: 1, 40>}, {transform_indices = @transform_3, window_bounds = array<i64: 16, 40>}]} {
    %c0_i32 = arith.constant 0 : i32
    %0 = arith.cmpi eq, %arg2, %c0_i32 : i32
    %1 = arith.extui %0 : i1 to i32
    %c0_i32_0 = arith.constant 0 : i32
    %2 = arith.cmpi ne, %1, %c0_i32_0 : i32
    scf.if %2 {
      %cst_10 = arith.constant 0.000000e+00 : f32
      %13 = vector.broadcast %cst_10 : f32 to vector<16x40xf32>
      %c0_11 = arith.constant 0 : index
      %c0_12 = arith.constant 0 : index
      %14 = vector.load %arg7[%c0_11, %c0_12] : memref<16x40xf32, #tpu.memory_space<vmem>>, vector<16x40xf32>
      tpu.vector_store %arg7[%c0_11, %c0_12], %13 {strides = array<i32>} : memref<16x40xf32, #tpu.memory_space<vmem>>, vector<16x40xf32>,
    } else {
    }
    %c0 = arith.constant 0 : index
    %c0_1 = arith.constant 0 : index
    %3 = vector.load %arg7[%c0, %c0_1] : memref<16x40xf32, #tpu.memory_space<vmem>>, vector<16x40xf32>
    %c0_2 = arith.constant 0 : index
    %c0_3 = arith.constant 0 : index
    %4 = vector.load %arg3[%c0_2, %c0_3] : memref<16x32xf32, #tpu.memory_space<vmem>>, vector<16x32xf32>
    %5 = arith.truncf %4 : vector<16x32xf32> to vector<16x32xbf16>
    %c0_4 = arith.constant 0 : index
    %c0_5 = arith.constant 0 : index
    %6 = vector.load %arg4[%c0_4, %c0_5] : memref<32x40xbf16, #tpu.memory_space<vmem>>, vector<32x40xbf16>
    %cst = arith.constant dense<0.000000e+00> : vector<16x40xf32>
    %7 = tpu.matmul %5, %6, %cst {dimension_numbers = #tpu.dot_dimension_numbers<[1], [0], [0], [1], [0, 0, 1, 1], [], []>} : vector<16x32xbf16>, vector<32x40xbf16>, vector<16x40xf32> -> vector<16x40xf32>
    %8 = arith.addf %3, %7 : vector<16x40xf32>
    %c0_6 = arith.constant 0 : index
    %c0_7 = arith.constant 0 : index
    %9 = vector.load %arg7[%c0_6, %c0_7] : memref<16x40xf32, #tpu.memory_space<vmem>>, vector<16x40xf32>
    tpu.vector_store %arg7[%c0_6, %c0_7], %8 {strides = array<i32>} : memref<16x40xf32, #tpu.memory_space<vmem>>, vector<16x40xf32>,
    %c0_i32_8 = arith.constant 0 : i32
    %10 = arith.cmpi eq, %arg2, %c0_i32_8 : i32
    %11 = arith.extui %10 : i1 to i32
    %c0_i32_9 = arith.constant 0 : i32
    %12 = arith.cmpi ne, %11, %c0_i32_9 : i32
    scf.if %12 {
      %c0_10 = arith.constant 0 : index
      %c0_11 = arith.constant 0 : index
      %13 = vector.load %arg7[%c0_10, %c0_11] : memref<16x40xf32, #tpu.memory_space<vmem>>, vector<16x40xf32>
      %c0_12 = arith.constant 0 : index
      %c0_13 = arith.constant 0 : index
      %14 = vector.load %arg5[%c0_12, %c0_13] : memref<1x40xf32, #tpu.memory_space<vmem>>, vector<1x40xf32>
      %15 = vector.broadcast %14 : vector<1x40xf32> to vector<16x40xf32>
      %16 = arith.addf %13, %15 : vector<16x40xf32>
      %c0_14 = arith.constant 0 : index
      %c0_15 = arith.constant 0 : index
      %17 = vector.load %arg6[%c0_14, %c0_15] : memref<16x40xf32, #tpu.memory_space<vmem>>, vector<16x40xf32>
      tpu.vector_store %arg6[%c0_14, %c0_15], %16 {strides = array<i32>} : memref<16x40xf32, #tpu.memory_space<vmem>>, vector<16x40xf32>,
    } else {
    }
    return
  }
  func.func @transform_0(%arg0: i32, %arg1: i32, %arg2: i32) -> (i32, i32) {
    %c0_i32 = arith.constant 0 : i32
    return %arg0, %arg2 : i32, i32
  }
  func.func @transform_1(%arg0: i32, %arg1: i32, %arg2: i32) -> (i32, i32) {
    %c0_i32 = arith.constant 0 : i32
    return %arg2, %arg1 : i32, i32
  }
  func.func @transform_2(%arg0: i32, %arg1: i32, %arg2: i32) -> (i32, i32) {
    %c0_i32 = arith.constant 0 : i32
    %c0_i32_0 = arith.constant 0 : i32
    return %c0_i32, %arg1 : i32, i32
  }
  func.func @transform_3(%arg0: i32, %arg1: i32, %arg2: i32) -> (i32, i32) {
    %c0_i32 = arith.constant 0 : i32
    return %arg0, %arg1 : i32, i32
  }
}

module attributes {stable_mosaic.version = 11 : i64} {
  func.func @_linear_kernel(%arg0: i32, %arg1: i32, %arg2: i32, %arg3: memref<16x32xf32, #tpu.memory_space<vmem>>, %arg4: memref<32x32xbf16, #tpu.memory_space<vmem>>, %arg5: memref<1x32xf32, #tpu.memory_space<vmem>>, %arg6: memref<16x32xf32, #tpu.memory_space<vmem>>, %arg7: memref<16x32xf32, #tpu.memory_space<vmem>>) attributes {dimension_semantics = [#tpu.dimension_semantics<parallel>, #tpu.dimension_semantics<parallel>, #tpu.dimension_semantics<arbitrary>], iteration_bounds = array<i64: 1, 1, 1>, scalar_prefetch = 0 : i64, scratch_operands = 1 : i64, tpu.core_type = #tpu.core_type<tc>, window_params = [{transform_indices = @transform_0, window_bounds = array<i64: 16, 32>}, {transform_indices = @transform_1, window_bounds = array<i64: 32, 32>}, {transform_indices = @transform_2, window_bounds = array<i64: 1, 32>}, {transform_indices = @transform_3, window_bounds = array<i64: 16, 32>}]} {
    %c0_i32 = arith.constant 0 : i32
    %0 = arith.cmpi eq, %arg2, %c0_i32 : i32
    %1 = arith.extui %0 : i1 to i32
    %c0_i32_0 = arith.constant 0 : i32
    %2 = arith.cmpi ne, %1, %c0_i32_0 : i32
    scf.if %2 {
      %cst_10 = arith.constant 0.000000e+00 : f32
      %13 = vector.broadcast %cst_10 : f32 to vector<16x32xf32>
      %c0_11 = arith.constant 0 : index
      %c0_12 = arith.constant 0 : index
      %14 = vector.load %arg7[%c0_11, %c0_12] : memref<16x32xf32, #tpu.memory_space<vmem>>, vector<16x32xf32>
      tpu.vector_store %arg7[%c0_11, %c0_12], %13 {strides = array<i32>} : memref<16x32xf32, #tpu.memory_space<vmem>>, vector<16x32xf32>,
    } else {
    }
    %c0 = arith.constant 0 : index
    %c0_1 = arith.constant 0 : index
    %3 = vector.load %arg7[%c0, %c0_1] : memref<16x32xf32, #tpu.memory_space<vmem>>, vector<16x32xf32>
    %c0_2 = arith.constant 0 : index
    %c0_3 = arith.constant 0 : index
    %4 = vector.load %arg3[%c0_2, %c0_3] : memref<16x32xf32, #tpu.memory_space<vmem>>, vector<16x32xf32>
    %5 = arith.truncf %4 : vector<16x32xf32> to vector<16x32xbf16>
    %c0_4 = arith.constant 0 : index
    %c0_5 = arith.constant 0 : index
    %6 = vector.load %arg4[%c0_4, %c0_5] : memref<32x32xbf16, #tpu.memory_space<vmem>>, vector<32x32xbf16>
    %cst = arith.constant dense<0.000000e+00> : vector<16x32xf32>
    %7 = tpu.matmul %5, %6, %cst {dimension_numbers = #tpu.dot_dimension_numbers<[1], [0], [0], [1], [0, 0, 1, 1], [], []>} : vector<16x32xbf16>, vector<32x32xbf16>, vector<16x32xf32> -> vector<16x32xf32>
    %8 = arith.addf %3, %7 : vector<16x32xf32>
    %c0_6 = arith.constant 0 : index
    %c0_7 = arith.constant 0 : index
    %9 = vector.load %arg7[%c0_6, %c0_7] : memref<16x32xf32, #tpu.memory_space<vmem>>, vector<16x32xf32>
    tpu.vector_store %arg7[%c0_6, %c0_7], %8 {strides = array<i32>} : memref<16x32xf32, #tpu.memory_space<vmem>>, vector<16x32xf32>,
    %c0_i32_8 = arith.constant 0 : i32
    %10 = arith.cmpi eq, %arg2, %c0_i32_8 : i32
    %11 = arith.extui %10 : i1 to i32
    %c0_i32_9 = arith.constant 0 : i32
    %12 = arith.cmpi ne, %11, %c0_i32_9 : i32
    scf.if %12 {
      %c0_10 = arith.constant 0 : index
      %c0_11 = arith.constant 0 : index
      %13 = vector.load %arg7[%c0_10, %c0_11] : memref<16x32xf32, #tpu.memory_space<vmem>>, vector<16x32xf32>
      %c0_12 = arith.constant 0 : index
      %c0_13 = arith.constant 0 : index
      %14 = vector.load %arg5[%c0_12, %c0_13] : memref<1x32xf32, #tpu.memory_space<vmem>>, vector<1x32xf32>
      %15 = vector.broadcast %14 : vector<1x32xf32> to vector<16x32xf32>
      %16 = arith.addf %13, %15 : vector<16x32xf32>
      %c0_14 = arith.constant 0 : index
      %c0_15 = arith.constant 0 : index
      %17 = vector.load %arg6[%c0_14, %c0_15] : memref<16x32xf32, #tpu.memory_space<vmem>>, vector<16x32xf32>
      tpu.vector_store %arg6[%c0_14, %c0_15], %16 {strides = array<i32>} : memref<16x32xf32, #tpu.memory_space<vmem>>, vector<16x32xf32>,
    } else {
    }
    return
  }
  func.func @transform_0(%arg0: i32, %arg1: i32, %arg2: i32) -> (i32, i32) {
    %c0_i32 = arith.constant 0 : i32
    return %arg0, %arg2 : i32, i32
  }
  func.func @transform_1(%arg0: i32, %arg1: i32, %arg2: i32) -> (i32, i32) {
    %c0_i32 = arith.constant 0 : i32
    return %arg2, %arg1 : i32, i32
  }
  func.func @transform_2(%arg0: i32, %arg1: i32, %arg2: i32) -> (i32, i32) {
    %c0_i32 = arith.constant 0 : i32
    %c0_i32_0 = arith.constant 0 : i32
    return %c0_i32, %arg1 : i32, i32
  }
  func.func @transform_3(%arg0: i32, %arg1: i32, %arg2: i32) -> (i32, i32) {
    %c0_i32 = arith.constant 0 : i32
    return %arg0, %arg1 : i32, i32
  }
}

</mosaic_0001>

<llo_original>
// kernel: translator_forward.5
$region0: #{translator_forward.5}
  #allocation0 [shape = 'u32[]', space=smem, size = 0x4, offset = 0x4, fixed_abs, tag = 'smem constant byte address 0x4 - core index']
  #allocation1 [shape = 'u32[144,128]{1,0:T(1,128)}', space=vmem, size = 0x12000, scoped, tag = 'internal scratch']
  #allocation2 [shape = 'f32[16,40]{1,0:T(8,128)}', space=vmem, size = 0x2000, scoped, tag = 'scratch operand']
  %s0 = inlined_call_operand.vmem [shape: f32[16,32], index: 0, kind: input, shape index: {}]
  %s1 = inlined_call_operand.vmem [shape: bf16[32,40], index: 1, kind: input, shape index: {}]
  %s2 = inlined_call_operand.vmem [shape: f32[1,40], index: 2, kind: input, shape index: {}]
  %s3 = inlined_call_operand.hbm [shape: f32[16,40], index: 3, kind: output, shape index: {}]
  %s4 = sld [smem:[#allocation0]]
  $region30: #{translator_forward.5} parent=0
    _
  %s6 = ssub.s32 1, %s4
  %s7 = scalar_select 0, %s6, %s4
  $region1: #{translator_forward.5} parent=0
    #allocation3 [shape = 'u8[8192]{0}', space=vmem, size = 0x2000, scoped, tag = 'output window, operand 0, single buffered']
    #allocation4 [shape = 's32[1]{0}', space=sflag, size = 0x4, scoped, tag = 'scoped memory for translator_forward.5']
    %8 = vsyncpa [#allocation4], 0
    // Predicated region
    $region2: #{translator_forward.5} parent=1 // pred_check
      _
    $region3: #{translator_forward.5} parent=1 // pred_check_branch
      %10 = sbr.rel (0) target = $region5
    $region4: #{translator_forward.5} parent=1 // pred_region
      _
    $region5: #{translator_forward.5} parent=1 // pred_fallthru
      _
    // Predicated region
    $region6: #{translator_forward.5} parent=1 // pred_check
      _
    $region7: #{translator_forward.5} parent=1 // pred_check_branch
      %12 = sbr.rel (0) target = $region9
    $region8: #{translator_forward.5} parent=1 // pred_region
      _
    $region9: #{translator_forward.5} parent=1 // pred_fallthru
      _
    // Predicated region
    $region10: #{translator_forward.5} parent=1 // pred_check
      _
    $region11: #{translator_forward.5} parent=1 // pred_check_branch
      %14 = sbr.rel (0) target = $region13
    $region12: #{translator_forward.5} parent=1 // pred_region
      _
    $region13: #{translator_forward.5} parent=1 // pred_fallthru
      _
    %p16 = scmp.eq.s32.totalorder 0, 0
    // Predicated region
    $region14: #{translator_forward.5} parent=1 // pred_check
      %p17 = pneg %p16
    $region15: #{translator_forward.5} parent=1 // pred_check_branch
      %19 = sbr.rel (%p17) target = $region17
    $region16: #{translator_forward.5} parent=1 // pred_region
      %vm20 = vcmask 326656
      %21 = vst.msk [vmem:[#allocation2] sm:$0xff] %vm20, 0.0
      %22 = vst.msk [vmem:[#allocation2 + $0x8] sm:$0xff] %vm20, 0.0
    $region17: #{translator_forward.5} parent=1 // pred_fallthru
      _
    %v23 = vld [vmem:[#allocation2] sm:$0xff]
    %v24 = vld [vmem:[#allocation2 + $0x8] sm:$0xff]
    %v25 = vld [vmem:[%s0] sm:$0xff]
    %v26 = vld [vmem:[%s0 + $0x8] sm:$0xff]
    %v27 = vpack.c.bf16 %v26, %v25
    %v28 = vld [vmem:[%s1] sm:$0xf]
    %v29 = vld [vmem:[%s1 + $0x4] sm:$0xf]
    %v30 = vld [vmem:[%s1 + $0x8] sm:$0xf]
    %v31 = vld [vmem:[%s1 + $0xc] sm:$0xf]
    %v36 = vunpack.c.l.b16 %v28
    %v37 = vunpack.c.l.b16 %v29
    %v38 = vunpack.c.l.b16 %v30
    %v39 = vunpack.c.l.b16 %v31
    %v40 = vpack.c.b16 %v37, %v36
    %v41 = vpack.c.b16 %v39, %v38
    %vm44 = vcmask 261120
    %v46 = vsel %vm44, %v27, 0
    %48 = vmatprep.subr.bf16.mxu0 0
    %49 = vmatpush1.bf16.msra.mxu0 0
    %50 = vmatprep.subr.bf16.mxu0 0
    %51 = vmatpush1.bf16.msra.mxu0 0
    %52 = vmatprep.subr.bf16.mxu0 0
    %53 = vmatpush1.bf16.msra.mxu0 0
    %54 = vmatprep.subr.bf16.mxu0 0
    %55 = vmatpush1.bf16.msra.mxu0 0
    %56 = vmatprep.subr.bf16.mxu0 0
    %57 = vmatpush1.bf16.msra.mxu0 0
    %58 = vmatprep.subr.bf16.mxu0 0
    %59 = vmatpush1.bf16.msra.mxu0 0
    %60 = vmatprep.subr.bf16.mxu0 0
    %61 = vmatpush1.bf16.msra.mxu0 %v41
    %62 = vmatprep.subr.bf16.mxu0 0
    %63 = vmatpush1.bf16.msra.mxu0 %v40
    %64 = vmatprep.subr.bf16.mxu0 0
    %65 = vmatpush2.bf16.msra.mxu0 0
    %66 = vmatprep.subr.bf16.mxu0 0
    %67 = vmatpush2.bf16.msra.mxu0 0
    %68 = vmatprep.subr.bf16.mxu0 0
    %69 = vmatpush2.bf16.msra.mxu0 0
    %70 = vmatprep.subr.bf16.mxu0 0
    %71 = vmatpush2.bf16.msra.mxu0 0
    %72 = vmatprep.subr.bf16.mxu0 0
    %73 = vmatpush2.bf16.msra.mxu0 0
    %74 = vmatprep.subr.bf16.mxu0 0
    %75 = vmatpush2.bf16.msra.mxu0 0
    %76 = vmatprep.subr.bf16.mxu0 0
    %77 = vmatpush2.bf16.msra.mxu0 0
    %78 = vmatprep.subr.bf16.mxu0 0
    %79 = vmatpush2.bf16.msra.mxu0 0
    %80 = vmatprep.mubr.bf16.mxu0 0
    %81 = vmatmul.mubr.bf16.gmra.mxu0 %v46
    %v82 = vpop.f32.mrf.mxu0
    %v83 = vadd.f32 0.0, %v82
    %v84 = vpop.f32.mrf.mxu0
    %v85 = vpop.f32.mrf.mxu0
    %v86 = vadd.f32 0.0, %v85
    %v87 = vpop.f32.mrf.mxu0
    %88 = vdwg.mxu0
    %v89 = vadd.f32 %v23, %v83
    %v90 = vadd.f32 %v24, %v86
    %vm91 = vcmask 326656
    %92 = vst.msk [vmem:[#allocation2] sm:$0xff] %vm91, %v89
    %93 = vst.msk [vmem:[#allocation2 + $0x8] sm:$0xff] %vm91, %v90
    // Predicated region
    $region18: #{translator_forward.5} parent=1 // pred_check
      %p94 = pneg %p16
    $region19: #{translator_forward.5} parent=1 // pred_check_branch
      %96 = sbr.rel (%p94) target = $region21
    $region20: #{translator_forward.5} parent=1 // pred_region
      %v97 = vld [vmem:[#allocation2] sm:$0xff]
      %v98 = vld [vmem:[#allocation2 + $0x8] sm:$0xff]
      %v99 = vld [vmem:[%s2] sm:$0x1]
      %v101 = vlaneseq
      %v102 = vshrl.u32 %v101, 7
      %v103 = vsub.s32 0, %v102
      %v104 = vrot.slane %v99, %v103
      %v106 = vadd.f32 %v97, %v104
      %v107 = vadd.f32 %v98, %v104
      %108 = vst.msk [vmem:[#allocation3] sm:$0xff] %vm91, %v106
      %109 = vst.msk [vmem:[#allocation3 + $0x8] sm:$0xff] %vm91, %v107
    $region21: #{translator_forward.5} parent=1 // pred_fallthru
      _
    // Predicated region
    $region22: #{translator_forward.5} parent=1 // pred_check
      _
    $region23: #{translator_forward.5} parent=1 // pred_check_branch
      %111 = sbr.rel (0) target = $region25
    $region24: #{translator_forward.5} parent=1 // pred_region
      %s113 = ssub.s32 256, 256
      %114 = vsyncadd [#allocation4], %s113
      %s115 = sshll.u32 [#allocation3], 4
      %s116 = int_to_ptr.vmem [resolvable:$true] %s115
      %121 = dma.vmem_to_hbm [thread:$0]  %s116, 256, %s3, [#allocation4], 128, 128, 8
    $region25: #{translator_forward.5} parent=1 // pred_fallthru
      _
    // Predicated region
    $region26: #{translator_forward.5} parent=1 // pred_check
      _
    $region27: #{translator_forward.5} parent=1 // pred_check_branch
      %123 = sbr.rel (0) target = $region29
    $region28: #{translator_forward.5} parent=1 // pred_region
      %124 = dma.done [#allocation4], 256
    $region29: #{translator_forward.5} parent=1 // pred_fallthru
      _
    %125 = vsyncpa [#allocation4], 1

// kernel: translator_forward.3
$region0: #{translator_forward.3}
  #allocation0 [shape = 'u32[]', space=smem, size = 0x4, offset = 0x4, fixed_abs, tag = 'smem constant byte address 0x4 - core index']
  #allocation1 [shape = 'u32[144,128]{1,0:T(1,128)}', space=vmem, size = 0x12000, scoped, tag = 'internal scratch']
  #allocation2 [shape = 'f32[16,32]{1,0:T(8,128)}', space=vmem, size = 0x2000, scoped, tag = 'scratch operand']
  %s0 = inlined_call_operand.vmem [shape: f32[16,32], index: 0, kind: input, shape index: {}]
  %s1 = inlined_call_operand.vmem [shape: bf16[32,32], index: 1, kind: input, shape index: {}]
  %s2 = inlined_call_operand.vmem [shape: f32[1,32], index: 2, kind: input, shape index: {}]
  %s3 = inlined_call_operand.vmem [shape: f32[16,32], index: 3, kind: output, shape index: {}]
  %s4 = sld [smem:[#allocation0]]
  $region30: #{translator_forward.3} parent=0
    _
  %s6 = ssub.s32 1, %s4
  %s7 = scalar_select 0, %s6, %s4
  // Predicated region
  $region2: #{translator_forward.3} parent=0 // pred_check
    _
  $region3: #{translator_forward.3} parent=0 // pred_check_branch
    %9 = sbr.rel (0) target = $region5
  $region4: #{translator_forward.3} parent=0 // pred_region
    _
  $region5: #{translator_forward.3} parent=0 // pred_fallthru
    _
  // Predicated region
  $region6: #{translator_forward.3} parent=0 // pred_check
    _
  $region7: #{translator_forward.3} parent=0 // pred_check_branch
    %11 = sbr.rel (0) target = $region9
  $region8: #{translator_forward.3} parent=0 // pred_region
    _
  $region9: #{translator_forward.3} parent=0 // pred_fallthru
    _
  // Predicated region
  $region10: #{translator_forward.3} parent=0 // pred_check
    _
  $region11: #{translator_forward.3} parent=0 // pred_check_branch
    %13 = sbr.rel (0) target = $region13
  $region12: #{translator_forward.3} parent=0 // pred_region
    _
  $region13: #{translator_forward.3} parent=0 // pred_fallthru
    _
  %p15 = scmp.eq.s32.totalorder 0, 0
  // Predicated region
  $region14: #{translator_forward.3} parent=0 // pred_check
    %p16 = pneg %p15
  $region15: #{translator_forward.3} parent=0 // pred_check_branch
    %18 = sbr.rel (%p16) target = $region17
  $region16: #{translator_forward.3} parent=0 // pred_region
    %vm19 = vcmask 261120
    %20 = vst.msk [vmem:[#allocation2] sm:$0xff] %vm19, 0.0
    %21 = vst.msk [vmem:[#allocation2 + $0x8] sm:$0xff] %vm19, 0.0
  $region17: #{translator_forward.3} parent=0 // pred_fallthru
    _
  %v22 = vld [vmem:[#allocation2] sm:$0xff]
  %v23 = vld [vmem:[#allocation2 + $0x8] sm:$0xff]
  %v24 = vld [vmem:[%s0] sm:$0xff]
  %v25 = vld [vmem:[%s0 + $0x8] sm:$0xff]
  %v26 = vpack.c.bf16 %v25, %v24
  %v27 = vld [vmem:[%s1] sm:$0xf]
  %v28 = vld [vmem:[%s1 + $0x4] sm:$0xf]
  %v29 = vld [vmem:[%s1 + $0x8] sm:$0xf]
  %v30 = vld [vmem:[%s1 + $0xc] sm:$0xf]
  %v35 = vunpack.c.l.b16 %v27
  %v36 = vunpack.c.l.b16 %v28
  %v37 = vunpack.c.l.b16 %v29
  %v38 = vunpack.c.l.b16 %v30
  %v39 = vpack.c.b16 %v36, %v35
  %v40 = vpack.c.b16 %v38, %v37
  %vm43 = vcmask 261120
  %v45 = vsel %vm43, %v26, 0
  %47 = vmatprep.subr.bf16.mxu0 0
  %48 = vmatpush1.bf16.msra.mxu0 0
  %49 = vmatprep.subr.bf16.mxu0 0
  %50 = vmatpush1.bf16.msra.mxu0 0
  %51 = vmatprep.subr.bf16.mxu0 0
  %52 = vmatpush1.bf16.msra.mxu0 0
  %53 = vmatprep.subr.bf16.mxu0 0
  %54 = vmatpush1.bf16.msra.mxu0 0
  %55 = vmatprep.subr.bf16.mxu0 0
  %56 = vmatpush1.bf16.msra.mxu0 0
  %57 = vmatprep.subr.bf16.mxu0 0
  %58 = vmatpush1.bf16.msra.mxu0 0
  %59 = vmatprep.subr.bf16.mxu0 0
  %60 = vmatpush1.bf16.msra.mxu0 %v40
  %61 = vmatprep.subr.bf16.mxu0 0
  %62 = vmatpush1.bf16.msra.mxu0 %v39
  %63 = vmatprep.subr.bf16.mxu0 0
  %64 = vmatpush2.bf16.msra.mxu0 0
  %65 = vmatprep.subr.bf16.mxu0 0
  %66 = vmatpush2.bf16.msra.mxu0 0
  %67 = vmatprep.subr.bf16.mxu0 0
  %68 = vmatpush2.bf16.msra.mxu0 0
  %69 = vmatprep.subr.bf16.mxu0 0
  %70 = vmatpush2.bf16.msra.mxu0 0
  %71 = vmatprep.subr.bf16.mxu0 0
  %72 = vmatpush2.bf16.msra.mxu0 0
  %73 = vmatprep.subr.bf16.mxu0 0
  %74 = vmatpush2.bf16.msra.mxu0 0
  %75 = vmatprep.subr.bf16.mxu0 0
  %76 = vmatpush2.bf16.msra.mxu0 0
  %77 = vmatprep.subr.bf16.mxu0 0
  %78 = vmatpush2.bf16.msra.mxu0 0
  %79 = vmatprep.mubr.bf16.mxu0 0
  %80 = vmatmul.mubr.bf16.gmra.mxu0 %v45
  %v81 = vpop.f32.mrf.mxu0
  %v82 = vadd.f32 0.0, %v81
  %v83 = vpop.f32.mrf.mxu0
  %v84 = vpop.f32.mrf.mxu0
  %v85 = vadd.f32 0.0, %v84
  %v86 = vpop.f32.mrf.mxu0
  %87 = vdwg.mxu0
  %v88 = vadd.f32 %v22, %v82
  %v89 = vadd.f32 %v23, %v85
  %90 = vst.msk [vmem:[#allocation2] sm:$0xff] %vm43, %v88
  %91 = vst.msk [vmem:[#allocation2 + $0x8] sm:$0xff] %vm43, %v89
  // Predicated region
  $region18: #{translator_forward.3} parent=0 // pred_check
    %p92 = pneg %p15
  $region19: #{translator_forward.3} parent=0 // pred_check_branch
    %94 = sbr.rel (%p92) target = $region21
  $region20: #{translator_forward.3} parent=0 // pred_region
    %v95 = vld [vmem:[#allocation2] sm:$0xff]
    %v96 = vld [vmem:[#allocation2 + $0x8] sm:$0xff]
    %v97 = vld [vmem:[%s2] sm:$0x1]
    %v99 = vlaneseq
    %v100 = vshrl.u32 %v99, 7
    %v101 = vsub.s32 0, %v100
    %v102 = vrot.slane %v97, %v101
    %v104 = vadd.f32 %v95, %v102
    %v105 = vadd.f32 %v96, %v102
    %106 = vst.msk [vmem:[%s3] sm:$0xff] %vm43, %v104
    %107 = vst.msk [vmem:[%s3 + $0x8] sm:$0xff] %vm43, %v105
  $region21: #{translator_forward.3} parent=0 // pred_fallthru
    _
  // Predicated region
  $region22: #{translator_forward.3} parent=0 // pred_check
    _
  $region23: #{translator_forward.3} parent=0 // pred_check_branch
    %109 = sbr.rel (0) target = $region25
  $region24: #{translator_forward.3} parent=0 // pred_region
    _
  $region25: #{translator_forward.3} parent=0 // pred_fallthru
    _
  // Predicated region
  $region26: #{translator_forward.3} parent=0 // pred_check
    _
  $region27: #{translator_forward.3} parent=0 // pred_check_branch
    %111 = sbr.rel (0) target = $region29
  $region28: #{translator_forward.3} parent=0 // pred_region
    _
  $region29: #{translator_forward.3} parent=0 // pred_fallthru
    _

// kernel: translator_forward.4
$region0: #{translator_forward.4}
  #allocation0 [shape = 'u32[]', space=smem, size = 0x4, offset = 0x4, fixed_abs, tag = 'smem constant byte address 0x4 - core index']
  #allocation1 [shape = 'u32[144,128]{1,0:T(1,128)}', space=vmem, size = 0x12000, scoped, tag = 'internal scratch']
  #allocation2 [shape = 'f32[2,8,8]{2,1,0:T(8,128)}', space=vmem, size = 0x2000, scoped, tag = 'scratch operand']
  #allocation3 [shape = 'f32[2,8,8]{2,1,0:T(8,128)}', space=vmem, size = 0x2000, scoped, tag = 'scratch operand']
  %s0 = inlined_call_operand.vmem [shape: f32[2,8,32], index: 0, kind: input, shape index: {}]
  %s1 = inlined_call_operand.vmem [shape: bf16[2,8,32], index: 1, kind: input, shape index: {}]
  %s2 = inlined_call_operand.vmem [shape: s32[2,8], index: 2, kind: input, shape index: {}]
  %s3 = inlined_call_operand.vmem [shape: s32[2,8], index: 3, kind: input, shape index: {}]
  %s4 = inlined_call_operand.vmem [shape: bf16[2,32,96], index: 4, kind: input, shape index: {}]
  %s5 = inlined_call_operand.vmem [shape: f32[2,1,96], index: 5, kind: input, shape index: {}]
  %s6 = inlined_call_operand.vmem [shape: bf16[2,32,32], index: 6, kind: input, shape index: {}]
  %s7 = inlined_call_operand.vmem [shape: f32[2,1,32], index: 7, kind: input, shape index: {}]
  %s8 = inlined_call_operand.vmem [shape: bf16[2,32,32], index: 8, kind: input, shape index: {}]
  %s9 = inlined_call_operand.vmem [shape: f32[2,1,32], index: 9, kind: input, shape index: {}]
  %s10 = inlined_call_operand.vmem [shape: bf16[2,32,64], index: 10, kind: input, shape index: {}]
  %s11 = inlined_call_operand.vmem [shape: f32[2,1,64], index: 11, kind: input, shape index: {}]
  %s12 = inlined_call_operand.vmem [shape: bf16[2,32,32], index: 12, kind: input, shape index: {}]
  %s13 = inlined_call_operand.vmem [shape: f32[2,1,32], index: 13, kind: input, shape index: {}]
  %s14 = inlined_call_operand.vmem [shape: bf16[2,32,64], index: 14, kind: input, shape index: {}]
  %s15 = inlined_call_operand.vmem [shape: f32[2,1,64], index: 15, kind: input, shape index: {}]
  %s16 = inlined_call_operand.vmem [shape: bf16[2,64,32], index: 16, kind: input, shape index: {}]
  %s17 = inlined_call_operand.vmem [shape: f32[2,1,32], index: 17, kind: input, shape index: {}]
  %s18 = inlined_call_operand.vmem [shape: f32[2,3,32], index: 18, kind: input, shape index: {}]
  %s19 = inlined_call_operand.vmem [shape: f32[2,3,32], index: 19, kind: input, shape index: {}]
  %s20 = inlined_call_operand.vmem [shape: f32[2,8,32], index: 20, kind: output, shape index: {}]
  %s21 = sld [smem:[#allocation0]]
  $region117: #{translator_forward.4} parent=0
    _
  %s23 = ssub.s32 1, %s21
  %s24 = scalar_select 0, %s23, %s21
  loop: start=0, step=1, limit=4
  $region2: #{translator_forward.4} parent=0 // loop_pre_header
    _
  $region3: #{translator_forward.4} parent=0 // loop_header
    %s26 = sphi 0, %s30
    %p27 = scmp.ge.s32.totalorder %s26, 4
    %s34 = sphi 0, %s34
    %s36 = sphi 0, %s34
    %s37 = sphi 0, %s36
    %s51 = sphi 0, %s37
    %s55 = sphi 0, %s55
    %s57 = sphi 0, %s55
    %s58 = sphi 0, %s57
    %s72 = sphi 0, %s58
    %s76 = sphi 0, %s76
    %s78 = sphi 0, %s76
    %s79 = sphi 0, %s78
    %s93 = sphi 0, %s79
    %s97 = sphi 0, %s97
    %s99 = sphi 0, %s97
    %s100 = sphi 0, %s99
    %s114 = sphi 0, %s100
    %s120 = sphi 0, %s122
    %s123 = sphi 0, %s120
    %s124 = sphi 0, %s123
    %s140 = sphi 0, %s124
    %s146 = sphi 0, %s148
    %s149 = sphi 0, %s146
    %s150 = sphi 0, %s149
    %s166 = sphi 0, %s150
    %s172 = sphi 0, %s174
    %s175 = sphi 0, %s172
    %s176 = sphi 0, %s175
    %s192 = sphi 0, %s176
    %s198 = sphi 0, %s200
    %s201 = sphi 0, %s198
    %s202 = sphi 0, %s201
    %s218 = sphi 0, %s202
    %s224 = sphi 0, %s226
    %s227 = sphi 0, %s224
    %s228 = sphi 0, %s227
    %s244 = sphi 0, %s228
    %s250 = sphi 0, %s252
    %s253 = sphi 0, %s250
    %s254 = sphi 0, %s253
    %s270 = sphi 0, %s254
    %s276 = sphi 0, %s278
    %s279 = sphi 0, %s276
    %s280 = sphi 0, %s279
    %s296 = sphi 0, %s280
    %s302 = sphi 0, %s304
    %s305 = sphi 0, %s302
    %s306 = sphi 0, %s305
    %s322 = sphi 0, %s306
    %s328 = sphi 0, %s330
    %s331 = sphi 0, %s328
    %s332 = sphi 0, %s331
    %s348 = sphi 0, %s332
    %s354 = sphi 0, %s356
    %s357 = sphi 0, %s354
    %s358 = sphi 0, %s357
    %s374 = sphi 0, %s358
    %s380 = sphi 0, %s382
    %s383 = sphi 0, %s380
    %s384 = sphi 0, %s383
    %s400 = sphi 0, %s384
    %s406 = sphi 0, %s408
    %s409 = sphi 0, %s406
    %s410 = sphi 0, %s409
    %s426 = sphi 0, %s410
    %s432 = sphi 0, %s434
    %s435 = sphi 0, %s432
    %s436 = sphi 0, %s435
    %s452 = sphi 0, %s436
    %s458 = sphi 0, %s460
    %s461 = sphi 0, %s458
    %s462 = sphi 0, %s461
    %s478 = sphi 0, %s462
    %s484 = sphi 0, %s486
    %s487 = sphi 0, %s484
    %s488 = sphi 0, %s487
    %s504 = sphi 0, %s488
    %s510 = sphi 0, %s512
    %s513 = sphi 0, %s510
    %s514 = sphi 0, %s513
    %s530 = sphi 0, %s514
    %s534 = sphi 0, %s534
    %s536 = sphi 0, %s534
    %s537 = sphi 0, %s536
    %s551 = sphi 0, %s537
  $region4: #{translator_forward.4} parent=0 // loop_header_branch
    %29 = sbr.rel (%p27) target = $region8
  $region5: #{translator_forward.4} parent=0 // loop_body
    %s31 = ssub.s32 %s26, 1
    %s32 = ssub.s32 %s26, 2
    %s33 = sadd.s32 %s26, 1
    %s35 = sadd.s32 %s34, 1
    %p38 = scmp.eq.s32.totalorder %s26, 1
    %p39 = scmp.ne.s32.totalorder %s34, %s36
    %p40 = scmp.eq.s32.totalorder %s26, 0
    %p41 = por %p39, %p40
    %p42 = scmp.ne.s32.totalorder %s34, %s36
    %p43 = scmp.eq.s32.totalorder %s31, 1
    %p44 = por %p42, %p43
    %p45 = scmp.ne.s32.totalorder %s36, %s37
    %p46 = scmp.eq.s32.totalorder %s31, 0
    %p47 = por %p45, %p46
    %p48 = scmp.ne.s32.totalorder %s36, %s37
    %p49 = scmp.eq.s32.totalorder %s32, 1
    %p50 = por %p48, %p49
    %p52 = scmp.ne.s32.totalorder %s37, %s51
    %p53 = scmp.eq.s32.totalorder %s32, 0
    %p54 = por %p52, %p53
    %s56 = sadd.s32 %s55, 1
    %p59 = scmp.eq.s32.totalorder %s26, 1
    %p60 = scmp.ne.s32.totalorder %s55, %s57
    %p61 = scmp.eq.s32.totalorder %s26, 0
    %p62 = por %p60, %p61
    %p63 = scmp.ne.s32.totalorder %s55, %s57
    %p64 = scmp.eq.s32.totalorder %s31, 1
    %p65 = por %p63, %p64
    %p66 = scmp.ne.s32.totalorder %s57, %s58
    %p67 = scmp.eq.s32.totalorder %s31, 0
    %p68 = por %p66, %p67
    %p69 = scmp.ne.s32.totalorder %s57, %s58
    %p70 = scmp.eq.s32.totalorder %s32, 1
    %p71 = por %p69, %p70
    %p73 = scmp.ne.s32.totalorder %s58, %s72
    %p74 = scmp.eq.s32.totalorder %s32, 0
    %p75 = por %p73, %p74
    %s77 = sadd.s32 %s76, 1
    %p80 = scmp.eq.s32.totalorder %s26, 1
    %p81 = scmp.ne.s32.totalorder %s76, %s78
    %p82 = scmp.eq.s32.totalorder %s26, 0
    %p83 = por %p81, %p82
    %p84 = scmp.ne.s32.totalorder %s76, %s78
    %p85 = scmp.eq.s32.totalorder %s31, 1
    %p86 = por %p84, %p85
    %p87 = scmp.ne.s32.totalorder %s78, %s79
    %p88 = scmp.eq.s32.totalorder %s31, 0
    %p89 = por %p87, %p88
    %p90 = scmp.ne.s32.totalorder %s78, %s79
    %p91 = scmp.eq.s32.totalorder %s32, 1
    %p92 = por %p90, %p91
    %p94 = scmp.ne.s32.totalorder %s79, %s93
    %p95 = scmp.eq.s32.totalorder %s32, 0
    %p96 = por %p94, %p95
    %s98 = sadd.s32 %s97, 1
    %p101 = scmp.eq.s32.totalorder %s26, 1
    %p102 = scmp.ne.s32.totalorder %s97, %s99
    %p103 = scmp.eq.s32.totalorder %s26, 0
    %p104 = por %p102, %p103
    %p105 = scmp.ne.s32.totalorder %s97, %s99
    %p106 = scmp.eq.s32.totalorder %s31, 1
    %p107 = por %p105, %p106
    %p108 = scmp.ne.s32.totalorder %s99, %s100
    %p109 = scmp.eq.s32.totalorder %s31, 0
    %p110 = por %p108, %p109
    %p111 = scmp.ne.s32.totalorder %s99, %s100
    %p112 = scmp.eq.s32.totalorder %s32, 1
    %p113 = por %p111, %p112
    %p115 = scmp.ne.s32.totalorder %s100, %s114
    %p116 = scmp.eq.s32.totalorder %s32, 0
    %p117 = por %p115, %p116
    %s118 = ssub.s32 %s26, %s33
    %p119 = scmp.eq.s32.totalorder %s118, 0
    %s121 = sadd.s32 %s120, 1
    %s122 = scalar_select %p119, %s120, %s121
    %p125 = pneg %p119
    %p126 = scmp.eq.s32.totalorder %s26, 1
    %p127 = por %p125, %p126
    %p128 = scmp.ne.s32.totalorder %s120, %s123
    %p129 = scmp.eq.s32.totalorder %s26, 0
    %p130 = por %p128, %p129
    %p131 = scmp.ne.s32.totalorder %s120, %s123
    %p132 = scmp.eq.s32.totalorder %s31, 1
    %p133 = por %p131, %p132
    %p134 = scmp.ne.s32.totalorder %s123, %s124
    %p135 = scmp.eq.s32.totalorder %s31, 0
    %p136 = por %p134, %p135
    %p137 = scmp.ne.s32.totalorder %s123, %s124
    %p138 = scmp.eq.s32.totalorder %s32, 1
    %p139 = por %p137, %p138
    %p141 = scmp.ne.s32.totalorder %s124, %s140
    %p142 = scmp.eq.s32.totalorder %s32, 0
    %p143 = por %p141, %p142
    %s144 = ssub.s32 %s26, %s33
    %p145 = scmp.eq.s32.totalorder %s144, 0
    %s147 = sadd.s32 %s146, 1
    %s148 = scalar_select %p145, %s146, %s147
    %p151 = pneg %p145
    %p152 = scmp.eq.s32.totalorder %s26, 1
    %p153 = por %p151, %p152
    %p154 = scmp.ne.s32.totalorder %s146, %s149
    %p155 = scmp.eq.s32.totalorder %s26, 0
    %p156 = por %p154, %p155
    %p157 = scmp.ne.s32.totalorder %s146, %s149
    %p158 = scmp.eq.s32.totalorder %s31, 1
    %p159 = por %p157, %p158
    %p160 = scmp.ne.s32.totalorder %s149, %s150
    %p161 = scmp.eq.s32.totalorder %s31, 0
    %p162 = por %p160, %p161
    %p163 = scmp.ne.s32.totalorder %s149, %s150
    %p164 = scmp.eq.s32.totalorder %s32, 1
    %p165 = por %p163, %p164
    %p167 = scmp.ne.s32.totalorder %s150, %s166
    %p168 = scmp.eq.s32.totalorder %s32, 0
    %p169 = por %p167, %p168
    %s170 = ssub.s32 %s26, %s33
    %p171 = scmp.eq.s32.totalorder %s170, 0
    %s173 = sadd.s32 %s172, 1
    %s174 = scalar_select %p171, %s172, %s173
    %p177 = pneg %p171
    %p178 = scmp.eq.s32.totalorder %s26, 1
    %p179 = por %p177, %p178
    %p180 = scmp.ne.s32.totalorder %s172, %s175
    %p181 = scmp.eq.s32.totalorder %s26, 0
    %p182 = por %p180, %p181
    %p183 = scmp.ne.s32.totalorder %s172, %s175
    %p184 = scmp.eq.s32.totalorder %s31, 1
    %p185 = por %p183, %p184
    %p186 = scmp.ne.s32.totalorder %s175, %s176
    %p187 = scmp.eq.s32.totalorder %s31, 0
    %p188 = por %p186, %p187
    %p189 = scmp.ne.s32.totalorder %s175, %s176
    %p190 = scmp.eq.s32.totalorder %s32, 1
    %p191 = por %p189, %p190
    %p193 = scmp.ne.s32.totalorder %s176, %s192
    %p194 = scmp.eq.s32.totalorder %s32, 0
    %p195 = por %p193, %p194
    %s196 = ssub.s32 %s26, %s33
    %p197 = scmp.eq.s32.totalorder %s196, 0
    %s199 = sadd.s32 %s198, 1
    %s200 = scalar_select %p197, %s198, %s199
    %p203 = pneg %p197
    %p204 = scmp.eq.s32.totalorder %s26, 1
    %p205 = por %p203, %p204
    %p206 = scmp.ne.s32.totalorder %s198, %s201
    %p207 = scmp.eq.s32.totalorder %s26, 0
    %p208 = por %p206, %p207
    %p209 = scmp.ne.s32.totalorder %s198, %s201
    %p210 = scmp.eq.s32.totalorder %s31, 1
    %p211 = por %p209, %p210
    %p212 = scmp.ne.s32.totalorder %s201, %s202
    %p213 = scmp.eq.s32.totalorder %s31, 0
    %p214 = por %p212, %p213
    %p215 = scmp.ne.s32.totalorder %s201, %s202
    %p216 = scmp.eq.s32.totalorder %s32, 1
    %p217 = por %p215, %p216
    %p219 = scmp.ne.s32.totalorder %s202, %s218
    %p220 = scmp.eq.s32.totalorder %s32, 0
    %p221 = por %p219, %p220
    %s222 = ssub.s32 %s26, %s33
    %p223 = scmp.eq.s32.totalorder %s222, 0
    %s225 = sadd.s32 %s224, 1
    %s226 = scalar_select %p223, %s224, %s225
    %p229 = pneg %p223
    %p230 = scmp.eq.s32.totalorder %s26, 1
    %p231 = por %p229, %p230
    %p232 = scmp.ne.s32.totalorder %s224, %s227
    %p233 = scmp.eq.s32.totalorder %s26, 0
    %p234 = por %p232, %p233
    %p235 = scmp.ne.s32.totalorder %s224, %s227
    %p236 = scmp.eq.s32.totalorder %s31, 1
    %p237 = por %p235, %p236
    %p238 = scmp.ne.s32.totalorder %s227, %s228
    %p239 = scmp.eq.s32.totalorder %s31, 0
    %p240 = por %p238, %p239
    %p241 = scmp.ne.s32.totalorder %s227, %s228
    %p242 = scmp.eq.s32.totalorder %s32, 1
    %p243 = por %p241, %p242
    %p245 = scmp.ne.s32.totalorder %s228, %s244
    %p246 = scmp.eq.s32.totalorder %s32, 0
    %p247 = por %p245, %p246
    %s248 = ssub.s32 %s26, %s33
    %p249 = scmp.eq.s32.totalorder %s248, 0
    %s251 = sadd.s32 %s250, 1
    %s252 = scalar_select %p249, %s250, %s251
    %p255 = pneg %p249
    %p256 = scmp.eq.s32.totalorder %s26, 1
    %p257 = por %p255, %p256
    %p258 = scmp.ne.s32.totalorder %s250, %s253
    %p259 = scmp.eq.s32.totalorder %s26, 0
    %p260 = por %p258, %p259
    %p261 = scmp.ne.s32.totalorder %s250, %s253
    %p262 = scmp.eq.s32.totalorder %s31, 1
    %p263 = por %p261, %p262
    %p264 = scmp.ne.s32.totalorder %s253, %s254
    %p265 = scmp.eq.s32.totalorder %s31, 0
    %p266 = por %p264, %p265
    %p267 = scmp.ne.s32.totalorder %s253, %s254
    %p268 = scmp.eq.s32.totalorder %s32, 1
    %p269 = por %p267, %p268
    %p271 = scmp.ne.s32.totalorder %s254, %s270
    %p272 = scmp.eq.s32.totalorder %s32, 0
    %p273 = por %p271, %p272
    %s274 = ssub.s32 %s26, %s33
    %p275 = scmp.eq.s32.totalorder %s274, 0
    %s277 = sadd.s32 %s276, 1
    %s278 = scalar_select %p275, %s276, %s277
    %p281 = pneg %p275
    %p282 = scmp.eq.s32.totalorder %s26, 1
    %p283 = por %p281, %p282
    %p284 = scmp.ne.s32.totalorder %s276, %s279
    %p285 = scmp.eq.s32.totalorder %s26, 0
    %p286 = por %p284, %p285
    %p287 = scmp.ne.s32.totalorder %s276, %s279
    %p288 = scmp.eq.s32.totalorder %s31, 1
    %p289 = por %p287, %p288
    %p290 = scmp.ne.s32.totalorder %s279, %s280
    %p291 = scmp.eq.s32.totalorder %s31, 0
    %p292 = por %p290, %p291
    %p293 = scmp.ne.s32.totalorder %s279, %s280
    %p294 = scmp.eq.s32.totalorder %s32, 1
    %p295 = por %p293, %p294
    %p297 = scmp.ne.s32.totalorder %s280, %s296
    %p298 = scmp.eq.s32.totalorder %s32, 0
    %p299 = por %p297, %p298
    %s300 = ssub.s32 %s26, %s33
    %p301 = scmp.eq.s32.totalorder %s300, 0
    %s303 = sadd.s32 %s302, 1
    %s304 = scalar_select %p301, %s302, %s303
    %p307 = pneg %p301
    %p308 = scmp.eq.s32.totalorder %s26, 1
    %p309 = por %p307, %p308
    %p310 = scmp.ne.s32.totalorder %s302, %s305
    %p311 = scmp.eq.s32.totalorder %s26, 0
    %p312 = por %p310, %p311
    %p313 = scmp.ne.s32.totalorder %s302, %s305
    %p314 = scmp.eq.s32.totalorder %s31, 1
    %p315 = por %p313, %p314
    %p316 = scmp.ne.s32.totalorder %s305, %s306
    %p317 = scmp.eq.s32.totalorder %s31, 0
    %p318 = por %p316, %p317
    %p319 = scmp.ne.s32.totalorder %s305, %s306
    %p320 = scmp.eq.s32.totalorder %s32, 1
    %p321 = por %p319, %p320
    %p323 = scmp.ne.s32.totalorder %s306, %s322
    %p324 = scmp.eq.s32.totalorder %s32, 0
    %p325 = por %p323, %p324
    %s326 = ssub.s32 %s26, %s33
    %p327 = scmp.eq.s32.totalorder %s326, 0
    %s329 = sadd.s32 %s328, 1
    %s330 = scalar_select %p327, %s328, %s329
    %p333 = pneg %p327
    %p334 = scmp.eq.s32.totalorder %s26, 1
    %p335 = por %p333, %p334
    %p336 = scmp.ne.s32.totalorder %s328, %s331
    %p337 = scmp.eq.s32.totalorder %s26, 0
    %p338 = por %p336, %p337
    %p339 = scmp.ne.s32.totalorder %s328, %s331
    %p340 = scmp.eq.s32.totalorder %s31, 1
    %p341 = por %p339, %p340
    %p342 = scmp.ne.s32.totalorder %s331, %s332
    %p343 = scmp.eq.s32.totalorder %s31, 0
    %p344 = por %p342, %p343
    %p345 = scmp.ne.s32.totalorder %s331, %s332
    %p346 = scmp.eq.s32.totalorder %s32, 1
    %p347 = por %p345, %p346
    %p349 = scmp.ne.s32.totalorder %s332, %s348
    %p350 = scmp.eq.s32.totalorder %s32, 0
    %p351 = por %p349, %p350
    %s352 = ssub.s32 %s26, %s33
    %p353 = scmp.eq.s32.totalorder %s352, 0
    %s355 = sadd.s32 %s354, 1
    %s356 = scalar_select %p353, %s354, %s355
    %p359 = pneg %p353
    %p360 = scmp.eq.s32.totalorder %s26, 1
    %p361 = por %p359, %p360
    %p362 = scmp.ne.s32.totalorder %s354, %s357
    %p363 = scmp.eq.s32.totalorder %s26, 0
    %p364 = por %p362, %p363
    %p365 = scmp.ne.s32.totalorder %s354, %s357
    %p366 = scmp.eq.s32.totalorder %s31, 1
    %p367 = por %p365, %p366
    %p368 = scmp.ne.s32.totalorder %s357, %s358
    %p369 = scmp.eq.s32.totalorder %s31, 0
    %p370 = por %p368, %p369
    %p371 = scmp.ne.s32.totalorder %s357, %s358
    %p372 = scmp.eq.s32.totalorder %s32, 1
    %p373 = por %p371, %p372
    %p375 = scmp.ne.s32.totalorder %s358, %s374
    %p376 = scmp.eq.s32.totalorder %s32, 0
    %p377 = por %p375, %p376
    %s378 = ssub.s32 %s26, %s33
    %p379 = scmp.eq.s32.totalorder %s378, 0
    %s381 = sadd.s32 %s380, 1
    %s382 = scalar_select %p379, %s380, %s381
    %p385 = pneg %p379
    %p386 = scmp.eq.s32.totalorder %s26, 1
    %p387 = por %p385, %p386
    %p388 = scmp.ne.s32.totalorder %s380, %s383
    %p389 = scmp.eq.s32.totalorder %s26, 0
    %p390 = por %p388, %p389
    %p391 = scmp.ne.s32.totalorder %s380, %s383
    %p392 = scmp.eq.s32.totalorder %s31, 1
    %p393 = por %p391, %p392
    %p394 = scmp.ne.s32.totalorder %s383, %s384
    %p395 = scmp.eq.s32.totalorder %s31, 0
    %p396 = por %p394, %p395
    %p397 = scmp.ne.s32.totalorder %s383, %s384
    %p398 = scmp.eq.s32.totalorder %s32, 1
    %p399 = por %p397, %p398
    %p401 = scmp.ne.s32.totalorder %s384, %s400
    %p402 = scmp.eq.s32.totalorder %s32, 0
    %p403 = por %p401, %p402
    %s404 = ssub.s32 %s26, %s33
    %p405 = scmp.eq.s32.totalorder %s404, 0
    %s407 = sadd.s32 %s406, 1
    %s408 = scalar_select %p405, %s406, %s407
    %p411 = pneg %p405
    %p412 = scmp.eq.s32.totalorder %s26, 1
    %p413 = por %p411, %p412
    %p414 = scmp.ne.s32.totalorder %s406, %s409
    %p415 = scmp.eq.s32.totalorder %s26, 0
    %p416 = por %p414, %p415
    %p417 = scmp.ne.s32.totalorder %s406, %s409
    %p418 = scmp.eq.s32.totalorder %s31, 1
    %p419 = por %p417, %p418
    %p420 = scmp.ne.s32.totalorder %s409, %s410
    %p421 = scmp.eq.s32.totalorder %s31, 0
    %p422 = por %p420, %p421
    %p423 = scmp.ne.s32.totalorder %s409, %s410
    %p424 = scmp.eq.s32.totalorder %s32, 1
    %p425 = por %p423, %p424
    %p427 = scmp.ne.s32.totalorder %s410, %s426
    %p428 = scmp.eq.s32.totalorder %s32, 0
    %p429 = por %p427, %p428
    %s430 = ssub.s32 %s26, %s33
    %p431 = scmp.eq.s32.totalorder %s430, 0
    %s433 = sadd.s32 %s432, 1
    %s434 = scalar_select %p431, %s432, %s433
    %p437 = pneg %p431
    %p438 = scmp.eq.s32.totalorder %s26, 1
    %p439 = por %p437, %p438
    %p440 = scmp.ne.s32.totalorder %s432, %s435
    %p441 = scmp.eq.s32.totalorder %s26, 0
    %p442 = por %p440, %p441
    %p443 = scmp.ne.s32.totalorder %s432, %s435
    %p444 = scmp.eq.s32.totalorder %s31, 1
    %p445 = por %p443, %p444
    %p446 = scmp.ne.s32.totalorder %s435, %s436
    %p447 = scmp.eq.s32.totalorder %s31, 0
    %p448 = por %p446, %p447
    %p449 = scmp.ne.s32.totalorder %s435, %s436
    %p450 = scmp.eq.s32.totalorder %s32, 1
    %p451 = por %p449, %p450
    %p453 = scmp.ne.s32.totalorder %s436, %s452
    %p454 = scmp.eq.s32.totalorder %s32, 0
    %p455 = por %p453, %p454
    %s456 = ssub.s32 %s26, %s33
    %p457 = scmp.eq.s32.totalorder %s456, 0
    %s459 = sadd.s32 %s458, 1
    %s460 = scalar_select %p457, %s458, %s459
    %p463 = pneg %p457
    %p464 = scmp.eq.s32.totalorder %s26, 1
    %p465 = por %p463, %p464
    %p466 = scmp.ne.s32.totalorder %s458, %s461
    %p467 = scmp.eq.s32.totalorder %s26, 0
    %p468 = por %p466, %p467
    %p469 = scmp.ne.s32.totalorder %s458, %s461
    %p470 = scmp.eq.s32.totalorder %s31, 1
    %p471 = por %p469, %p470
    %p472 = scmp.ne.s32.totalorder %s461, %s462
    %p473 = scmp.eq.s32.totalorder %s31, 0
    %p474 = por %p472, %p473
    %p475 = scmp.ne.s32.totalorder %s461, %s462
    %p476 = scmp.eq.s32.totalorder %s32, 1
    %p477 = por %p475, %p476
    %p479 = scmp.ne.s32.totalorder %s462, %s478
    %p480 = scmp.eq.s32.totalorder %s32, 0
    %p481 = por %p479, %p480
    %s482 = ssub.s32 %s26, %s33
    %p483 = scmp.eq.s32.totalorder %s482, 0
    %s485 = sadd.s32 %s484, 1
    %s486 = scalar_select %p483, %s484, %s485
    %p489 = pneg %p483
    %p490 = scmp.eq.s32.totalorder %s26, 1
    %p491 = por %p489, %p490
    %p492 = scmp.ne.s32.totalorder %s484, %s487
    %p493 = scmp.eq.s32.totalorder %s26, 0
    %p494 = por %p492, %p493
    %p495 = scmp.ne.s32.totalorder %s484, %s487
    %p496 = scmp.eq.s32.totalorder %s31, 1
    %p497 = por %p495, %p496
    %p498 = scmp.ne.s32.totalorder %s487, %s488
    %p499 = scmp.eq.s32.totalorder %s31, 0
    %p500 = por %p498, %p499
    %p501 = scmp.ne.s32.totalorder %s487, %s488
    %p502 = scmp.eq.s32.totalorder %s32, 1
    %p503 = por %p501, %p502
    %p505 = scmp.ne.s32.totalorder %s488, %s504
    %p506 = scmp.eq.s32.totalorder %s32, 0
    %p507 = por %p505, %p506
    %s508 = ssub.s32 %s26, %s33
    %p509 = scmp.eq.s32.totalorder %s508, 0
    %s511 = sadd.s32 %s510, 1
    %s512 = scalar_select %p509, %s510, %s511
    %p515 = pneg %p509
    %p516 = scmp.eq.s32.totalorder %s26, 1
    %p517 = por %p515, %p516
    %p518 = scmp.ne.s32.totalorder %s510, %s513
    %p519 = scmp.eq.s32.totalorder %s26, 0
    %p520 = por %p518, %p519
    %p521 = scmp.ne.s32.totalorder %s510, %s513
    %p522 = scmp.eq.s32.totalorder %s31, 1
    %p523 = por %p521, %p522
    %p524 = scmp.ne.s32.totalorder %s513, %s514
    %p525 = scmp.eq.s32.totalorder %s31, 0
    %p526 = por %p524, %p525
    %p527 = scmp.ne.s32.totalorder %s513, %s514
    %p528 = scmp.eq.s32.totalorder %s32, 1
    %p529 = por %p527, %p528
    %p531 = scmp.ne.s32.totalorder %s514, %s530
    %p532 = scmp.eq.s32.totalorder %s32, 0
    %p533 = por %p531, %p532
    %s535 = sadd.s32 %s534, 1
    %p538 = scmp.eq.s32.totalorder %s26, 1
    %p539 = scmp.ne.s32.totalorder %s534, %s536
    %p540 = scmp.eq.s32.totalorder %s26, 0
    %p541 = por %p539, %p540
    %p542 = scmp.ne.s32.totalorder %s534, %s536
    %p543 = scmp.eq.s32.totalorder %s31, 1
    %p544 = por %p542, %p543
    %p545 = scmp.ne.s32.totalorder %s536, %s537
    %p546 = scmp.eq.s32.totalorder %s31, 0
    %p547 = por %p545, %p546
    %p548 = scmp.ne.s32.totalorder %s536, %s537
    %p549 = scmp.eq.s32.totalorder %s32, 1
    %p550 = por %p548, %p549
    %p552 = scmp.ne.s32.totalorder %s537, %s551
    %p553 = scmp.eq.s32.totalorder %s32, 0
    %p554 = por %p552, %p553
    %p555 = scmp.le.s32.totalorder 1, %s26
    %p556 = scmp.lt.s32.totalorder %s26, 3
    %p557 = pnand %p555, %p556
    %p558 = pneg %p557
    // Predicated region
    $region9: #{translator_forward.4} parent=5 // pred_check
      _
    $region10: #{translator_forward.4} parent=5 // pred_check_branch
      %560 = sbr.rel (%p557) target = $region12
    $region11: #{translator_forward.4} parent=5 // pred_region
      %s561 = ssub.s32 %s26, 1
      // Predicated region
      $region13: #{translator_forward.4} parent=11 // pred_check
        %p562 = pneg %p47
      $region14: #{translator_forward.4} parent=11 // pred_check_branch
        %564 = sbr.rel (%p562) target = $region16
      $region15: #{translator_forward.4} parent=11 // pred_region
        _
      $region16: #{translator_forward.4} parent=11 // pred_fallthru
        _
      // Predicated region
      $region17: #{translator_forward.4} parent=11 // pred_check
        %p565 = pneg %p68
      $region18: #{translator_forward.4} parent=11 // pred_check_branch
        %567 = sbr.rel (%p565) target = $region20
      $region19: #{translator_forward.4} parent=11 // pred_region
        _
      $region20: #{translator_forward.4} parent=11 // pred_fallthru
        _
      // Predicated region
      $region21: #{translator_forward.4} parent=11 // pred_check
        %p568 = pneg %p89
      $region22: #{translator_forward.4} parent=11 // pred_check_branch
        %570 = sbr.rel (%p568) target = $region24
      $region23: #{translator_forward.4} parent=11 // pred_region
        _
      $region24: #{translator_forward.4} parent=11 // pred_fallthru
        _
      // Predicated region
      $region25: #{translator_forward.4} parent=11 // pred_check
        %p571 = pneg %p110
      $region26: #{translator_forward.4} parent=11 // pred_check_branch
        %573 = sbr.rel (%p571) target = $region28
      $region27: #{translator_forward.4} parent=11 // pred_region
        _
      $region28: #{translator_forward.4} parent=11 // pred_fallthru
        _
    $region12: #{translator_forward.4} parent=5 // pred_fallthru
      _
    %p574 = scmp.lt.s32.totalorder %s26, 2
    // Predicated region
    $region29: #{translator_forward.4} parent=5 // pred_check
      %p575 = pneg %p574
    $region30: #{translator_forward.4} parent=5 // pred_check_branch
      %577 = sbr.rel (%p575) target = $region32
    $region31: #{translator_forward.4} parent=5 // pred_region
      // Predicated region
      $region33: #{translator_forward.4} parent=31 // pred_check
        %p578 = pneg %p130
      $region34: #{translator_forward.4} parent=31 // pred_check_branch
        %580 = sbr.rel (%p578) target = $region36
      $region35: #{translator_forward.4} parent=31 // pred_region
        %p581 = scmp.lt.s32.totalorder %s26, 1
        %s582 = scalar_select %p581, %s26, 1
        %s583 = smul.addr %s582, 4
        %s584 = smul.addr %s583, 4
        %s585 = scalar_lea.vmem %s4, %s584
      $region36: #{translator_forward.4} parent=31 // pred_fallthru
        _
      // Predicated region
      $region37: #{translator_forward.4} parent=31 // pred_check
        %p586 = pneg %p156
      $region38: #{translator_forward.4} parent=31 // pred_check_branch
        %588 = sbr.rel (%p586) target = $region40
      $region39: #{translator_forward.4} parent=31 // pred_region
        %p589 = scmp.lt.s32.totalorder %s26, 1
        %s590 = scalar_select %p589, %s26, 1
        %s591 = scalar_lea.vmem %s5, %s590
      $region40: #{translator_forward.4} parent=31 // pred_fallthru
        _
      // Predicated region
      $region41: #{translator_forward.4} parent=31 // pred_check
        %p592 = pneg %p182
      $region42: #{translator_forward.4} parent=31 // pred_check_branch
        %594 = sbr.rel (%p592) target = $region44
      $region43: #{translator_forward.4} parent=31 // pred_region
        %p595 = scmp.lt.s32.totalorder %s26, 1
        %s596 = scalar_select %p595, %s26, 1
        %s597 = smul.addr %s596, 4
        %s598 = smul.addr %s597, 4
        %s599 = scalar_lea.vmem %s6, %s598
      $region44: #{translator_forward.4} parent=31 // pred_fallthru
        _
      // Predicated region
      $region45: #{translator_forward.4} parent=31 // pred_check
        %p600 = pneg %p208
      $region46: #{translator_forward.4} parent=31 // pred_check_branch
        %602 = sbr.rel (%p600) target = $region48
      $region47: #{translator_forward.4} parent=31 // pred_region
        %p603 = scmp.lt.s32.totalorder %s26, 1
        %s604 = scalar_select %p603, %s26, 1
        %s605 = scalar_lea.vmem %s7, %s604
      $region48: #{translator_forward.4} parent=31 // pred_fallthru
        _
      // Predicated region
      $region49: #{translator_forward.4} parent=31 // pred_check
        %p606 = pneg %p234
      $region50: #{translator_forward.4} parent=31 // pred_check_branch
        %608 = sbr.rel (%p606) target = $region52
      $region51: #{translator_forward.4} parent=31 // pred_region
        %p609 = scmp.lt.s32.totalorder %s26, 1
        %s610 = scalar_select %p609, %s26, 1
        %s611 = smul.addr %s610, 4
        %s612 = smul.addr %s611, 4
        %s613 = scalar_lea.vmem %s8, %s612
      $region52: #{translator_forward.4} parent=31 // pred_fallthru
        _
      // Predicated region
      $region53: #{translator_forward.4} parent=31 // pred_check
        %p614 = pneg %p260
      $region54: #{translator_forward.4} parent=31 // pred_check_branch
        %616 = sbr.rel (%p614) target = $region56
      $region55: #{translator_forward.4} parent=31 // pred_region
        %p617 = scmp.lt.s32.totalorder %s26, 1
        %s618 = scalar_select %p617, %s26, 1
        %s619 = scalar_lea.vmem %s9, %s618
      $region56: #{translator_forward.4} parent=31 // pred_fallthru
        _
      // Predicated region
      $region57: #{translator_forward.4} parent=31 // pred_check
        %p620 = pneg %p286
      $region58: #{translator_forward.4} parent=31 // pred_check_branch
        %622 = sbr.rel (%p620) target = $region60
      $region59: #{translator_forward.4} parent=31 // pred_region
        %p623 = scmp.lt.s32.totalorder %s26, 1
        %s624 = scalar_select %p623, %s26, 1
        %s625 = smul.addr %s624, 4
        %s626 = smul.addr %s625, 4
        %s627 = scalar_lea.vmem %s10, %s626
      $region60: #{translator_forward.4} parent=31 // pred_fallthru
        _
      // Predicated region
      $region61: #{translator_forward.4} parent=31 // pred_check
        %p628 = pneg %p312
      $region62: #{translator_forward.4} parent=31 // pred_check_branch
        %630 = sbr.rel (%p628) target = $region64
      $region63: #{translator_forward.4} parent=31 // pred_region
        %p631 = scmp.lt.s32.totalorder %s26, 1
        %s632 = scalar_select %p631, %s26, 1
        %s633 = scalar_lea.vmem %s11, %s632
      $region64: #{translator_forward.4} parent=31 // pred_fallthru
        _
      // Predicated region
      $region65: #{translator_forward.4} parent=31 // pred_check
        %p634 = pneg %p338
      $region66: #{translator_forward.4} parent=31 // pred_check_branch
        %636 = sbr.rel (%p634) target = $region68
      $region67: #{translator_forward.4} parent=31 // pred_region
        %p637 = scmp.lt.s32.totalorder %s26, 1
        %s638 = scalar_select %p637, %s26, 1
        %s639 = smul.addr %s638, 4
        %s640 = smul.addr %s639, 4
        %s641 = scalar_lea.vmem %s12, %s640
      $region68: #{translator_forward.4} parent=31 // pred_fallthru
        _
      // Predicated region
      $region69: #{translator_forward.4} parent=31 // pred_check
        %p642 = pneg %p364
      $region70: #{translator_forward.4} parent=31 // pred_check_branch
        %644 = sbr.rel (%p642) target = $region72
      $region71: #{translator_forward.4} parent=31 // pred_region
        %p645 = scmp.lt.s32.totalorder %s26, 1
        %s646 = scalar_select %p645, %s26, 1
        %s647 = scalar_lea.vmem %s13, %s646
      $region72: #{translator_forward.4} parent=31 // pred_fallthru
        _
      // Predicated region
      $region73: #{translator_forward.4} parent=31 // pred_check
        %p648 = pneg %p390
      $region74: #{translator_forward.4} parent=31 // pred_check_branch
        %650 = sbr.rel (%p648) target = $region76
      $region75: #{translator_forward.4} parent=31 // pred_region
        %p651 = scmp.lt.s32.totalorder %s26, 1
        %s652 = scalar_select %p651, %s26, 1
        %s653 = smul.addr %s652, 4
        %s654 = smul.addr %s653, 4
        %s655 = scalar_lea.vmem %s14, %s654
      $region76: #{translator_forward.4} parent=31 // pred_fallthru
        _
      // Predicated region
      $region77: #{translator_forward.4} parent=31 // pred_check
        %p656 = pneg %p416
      $region78: #{translator_forward.4} parent=31 // pred_check_branch
        %658 = sbr.rel (%p656) target = $region80
      $region79: #{translator_forward.4} parent=31 // pred_region
        %p659 = scmp.lt.s32.totalorder %s26, 1
        %s660 = scalar_select %p659, %s26, 1
        %s661 = scalar_lea.vmem %s15, %s660
      $region80: #{translator_forward.4} parent=31 // pred_fallthru
        _
      // Predicated region
      $region81: #{translator_forward.4} parent=31 // pred_check
        %p662 = pneg %p442
      $region82: #{translator_forward.4} parent=31 // pred_check_branch
        %664 = sbr.rel (%p662) target = $region84
      $region83: #{translator_forward.4} parent=31 // pred_region
        %p665 = scmp.lt.s32.totalorder %s26, 1
        %s666 = scalar_select %p665, %s26, 1
        %s667 = smul.addr %s666, 8
        %s668 = smul.addr %s667, 4
        %s669 = scalar_lea.vmem %s16, %s668
      $region84: #{translator_forward.4} parent=31 // pred_fallthru
        _
      // Predicated region
      $region85: #{translator_forward.4} parent=31 // pred_check
        %p670 = pneg %p468
      $region86: #{translator_forward.4} parent=31 // pred_check_branch
        %672 = sbr.rel (%p670) target = $region88
      $region87: #{translator_forward.4} parent=31 // pred_region
        %p673 = scmp.lt.s32.totalorder %s26, 1
        %s674 = scalar_select %p673, %s26, 1
        %s675 = scalar_lea.vmem %s17, %s674
      $region88: #{translator_forward.4} parent=31 // pred_fallthru
        _
      // Predicated region
      $region89: #{translator_forward.4} parent=31 // pred_check
        %p676 = pneg %p494
      $region90: #{translator_forward.4} parent=31 // pred_check_branch
        %678 = sbr.rel (%p676) target = $region92
      $region91: #{translator_forward.4} parent=31 // pred_region
        %p679 = scmp.lt.s32.totalorder %s26, 1
        %s680 = scalar_select %p679, %s26, 1
        %s681 = smul.addr %s680, 4
        %s682 = scalar_lea.vmem %s18, %s681
      $region92: #{translator_forward.4} parent=31 // pred_fallthru
        _
      // Predicated region
      $region93: #{translator_forward.4} parent=31 // pred_check
        %p683 = pneg %p520
      $region94: #{translator_forward.4} parent=31 // pred_check_branch
        %685 = sbr.rel (%p683) target = $region96
      $region95: #{translator_forward.4} parent=31 // pred_region
        %p686 = scmp.lt.s32.totalorder %s26, 1
        %s687 = scalar_select %p686, %s26, 1
        %s688 = smul.addr %s687, 4
        %s689 = scalar_lea.vmem %s19, %s688
      $region96: #{translator_forward.4} parent=31 // pred_fallthru
        _
    $region32: #{translator_forward.4} parent=5 // pred_fallthru
      _
    %p690 = scmp.le.s32.totalorder 1, %s26
    %p691 = scmp.lt.s32.totalorder %s26, 3
    %p692 = pnand %p690, %p691
    %p693 = pneg %p692
    // Predicated region
    $region97: #{translator_forward.4} parent=5 // pred_check
      _
    $region98: #{translator_forward.4} parent=5 // pred_check_branch
      %695 = sbr.rel (%p692) target = $region100
    $region99: #{translator_forward.4} parent=5 // pred_region
      %s696 = ssub.s32 %s26, 1
      %p697 = pneg %p47
      %p698 = pneg %p44
      %p699 = pneg %p68
      %p700 = pneg %p65
      %p701 = pneg %p89
      %p702 = pneg %p86
      %p703 = pneg %p110
      %p704 = pneg %p107
      %p705 = scmp.lt.s32.totalorder %s31, 1
      %s706 = scalar_select %p705, %s31, 1
      %s707 = smul.addr %s706, 4
      %s708 = smul.addr %s707, 4
      %s709 = scalar_lea.vmem %s4, %s708
      %p710 = pneg %p136
      %p711 = pneg %p133
      %p712 = scmp.lt.s32.totalorder %s31, 1
      %s713 = scalar_select %p712, %s31, 1
      %s714 = scalar_lea.vmem %s5, %s713
      %p715 = pneg %p162
      %p716 = pneg %p159
      %p717 = scmp.lt.s32.totalorder %s31, 1
      %s718 = scalar_select %p717, %s31, 1
      %s719 = smul.addr %s718, 4
      %s720 = smul.addr %s719, 4
      %s721 = scalar_lea.vmem %s6, %s720
      %p722 = pneg %p188
      %p723 = pneg %p185
      %p724 = scmp.lt.s32.totalorder %s31, 1
      %s725 = scalar_select %p724, %s31, 1
      %s726 = scalar_lea.vmem %s7, %s725
      %p727 = pneg %p214
      %p728 = pneg %p211
      %p729 = scmp.lt.s32.totalorder %s31, 1
      %s730 = scalar_select %p729, %s31, 1
      %s731 = smul.addr %s730, 4
      %s732 = smul.addr %s731, 4
      %s733 = scalar_lea.vmem %s8, %s732
      %p734 = pneg %p240
      %p735 = pneg %p237
      %p736 = scmp.lt.s32.totalorder %s31, 1
      %s737 = scalar_select %p736, %s31, 1
      %s738 = scalar_lea.vmem %s9, %s737
      %p739 = pneg %p266
      %p740 = pneg %p263
      %p741 = scmp.lt.s32.totalorder %s31, 1
      %s742 = scalar_select %p741, %s31, 1
      %s743 = smul.addr %s742, 4
      %s744 = smul.addr %s743, 4
      %s745 = scalar_lea.vmem %s10, %s744
      %p746 = pneg %p292
      %p747 = pneg %p289
      %p748 = scmp.lt.s32.totalorder %s31, 1
      %s749 = scalar_select %p748, %s31, 1
      %s750 = scalar_lea.vmem %s11, %s749
      %p751 = pneg %p318
      %p752 = pneg %p315
      %p753 = scmp.lt.s32.totalorder %s31, 1
      %s754 = scalar_select %p753, %s31, 1
      %s755 = smul.addr %s754, 4
      %s756 = smul.addr %s755, 4
      %s757 = scalar_lea.vmem %s12, %s756
      %p758 = pneg %p344
      %p759 = pneg %p341
      %p760 = scmp.lt.s32.totalorder %s31, 1
      %s761 = scalar_select %p760, %s31, 1
      %s762 = scalar_lea.vmem %s13, %s761
      %p763 = pneg %p370
      %p764 = pneg %p367
      %p765 = scmp.lt.s32.totalorder %s31, 1
      %s766 = scalar_select %p765, %s31, 1
      %s767 = smul.addr %s766, 4
      %s768 = smul.addr %s767, 4
      %s769 = scalar_lea.vmem %s14, %s768
      %p770 = pneg %p396
      %p771 = pneg %p393
      %p772 = scmp.lt.s32.totalorder %s31, 1
      %s773 = scalar_select %p772, %s31, 1
      %s774 = scalar_lea.vmem %s15, %s773
      %p775 = pneg %p422
      %p776 = pneg %p419
      %p777 = scmp.lt.s32.totalorder %s31, 1
      %s778 = scalar_select %p777, %s31, 1
      %s779 = smul.addr %s778, 8
      %s780 = smul.addr %s779, 4
      %s781 = scalar_lea.vmem %s16, %s780
      %p782 = pneg %p448
      %p783 = pneg %p445
      %p784 = scmp.lt.s32.totalorder %s31, 1
      %s785 = scalar_select %p784, %s31, 1
      %s786 = scalar_lea.vmem %s17, %s785
      %p787 = pneg %p474
      %p788 = pneg %p471
      %p789 = scmp.lt.s32.totalorder %s31, 1
      %s790 = scalar_select %p789, %s31, 1
      %s791 = smul.addr %s790, 4
      %s792 = scalar_lea.vmem %s18, %s791
      %p793 = pneg %p500
      %p794 = pneg %p497
      %p795 = scmp.lt.s32.totalorder %s31, 1
      %s796 = scalar_select %p795, %s31, 1
      %s797 = smul.addr %s796, 4
      %s798 = scalar_lea.vmem %s19, %s797
      %p799 = pneg %p526
      %p800 = pneg %p523
      %p801 = pneg %p547
      %p802 = pneg %p544
      %p803 = scmp.lt.s32.totalorder %s31, 1
      %s804 = scalar_select %p803, %s31, 1
      %s805 = smul.addr %s804, 4
      %s806 = smul.addr %s805, 4
      %s807 = scalar_lea.vmem %s4, %s806
      %p808 = scmp.lt.s32.totalorder %s31, 1
      %s809 = scalar_select %p808, %s31, 1
      %s810 = scalar_lea.vmem %s5, %s809
      %p811 = scmp.lt.s32.totalorder %s31, 1
      %s812 = scalar_select %p811, %s31, 1
      %s813 = smul.addr %s812, 4
      %s814 = smul.addr %s813, 4
      %s815 = scalar_lea.vmem %s6, %s814
      %p816 = scmp.lt.s32.totalorder %s31, 1
      %s817 = scalar_select %p816, %s31, 1
      %s818 = scalar_lea.vmem %s7, %s817
      %p819 = scmp.lt.s32.totalorder %s31, 1
      %s820 = scalar_select %p819, %s31, 1
      %s821 = smul.addr %s820, 4
      %s822 = smul.addr %s821, 4
      %s823 = scalar_lea.vmem %s8, %s822
      %p824 = scmp.lt.s32.totalorder %s31, 1
      %s825 = scalar_select %p824, %s31, 1
      %s826 = scalar_lea.vmem %s9, %s825
      %p827 = scmp.lt.s32.totalorder %s31, 1
      %s828 = scalar_select %p827, %s31, 1
      %s829 = smul.addr %s828, 4
      %s830 = smul.addr %s829, 4
      %s831 = scalar_lea.vmem %s10, %s830
      %p832 = scmp.lt.s32.totalorder %s31, 1
      %s833 = scalar_select %p832, %s31, 1
      %s834 = scalar_lea.vmem %s11, %s833
      %p835 = scmp.lt.s32.totalorder %s31, 1
      %s836 = scalar_select %p835, %s31, 1
      %s837 = smul.addr %s836, 4
      %s838 = smul.addr %s837, 4
      %s839 = scalar_lea.vmem %s12, %s838
      %p840 = scmp.lt.s32.totalorder %s31, 1
      %s841 = scalar_select %p840, %s31, 1
      %s842 = scalar_lea.vmem %s13, %s841
      %p843 = scmp.lt.s32.totalorder %s31, 1
      %s844 = scalar_select %p843, %s31, 1
      %s845 = smul.addr %s844, 4
      %s846 = smul.addr %s845, 4
      %s847 = scalar_lea.vmem %s14, %s846
      %p848 = scmp.lt.s32.totalorder %s31, 1
      %s849 = scalar_select %p848, %s31, 1
      %s850 = scalar_lea.vmem %s15, %s849
      %p851 = scmp.lt.s32.totalorder %s31, 1
      %s852 = scalar_select %p851, %s31, 1
      %s853 = smul.addr %s852, 8
      %s854 = smul.addr %s853, 4
      %s855 = scalar_lea.vmem %s16, %s854
      %p856 = scmp.lt.s32.totalorder %s31, 1
      %s857 = scalar_select %p856, %s31, 1
      %s858 = scalar_lea.vmem %s17, %s857
      %p859 = scmp.lt.s32.totalorder %s31, 1
      %s860 = scalar_select %p859, %s31, 1
      %s861 = smul.addr %s860, 4
      %s862 = scalar_lea.vmem %s18, %s861
      %p863 = scmp.lt.s32.totalorder %s31, 1
      %s864 = scalar_select %p863, %s31, 1
      %s865 = smul.addr %s864, 4
      %s866 = scalar_lea.vmem %s19, %s865
      %p868 = scmp.eq.s32.totalorder %s31, 0
      // Predicated region
      $region101: #{translator_forward.4} parent=99 // pred_check
        %p869 = pneg %p868
      $region102: #{translator_forward.4} parent=99 // pred_check_branch
        %871 = sbr.rel (%p869) target = $region104
      $region103: #{translator_forward.4} parent=99 // pred_region
        %v872 = vld [vmem:[%s0] sm:$0xff]
        %v873 = vld [vmem:[%s0 + $0x8] sm:$0xff]
        %vm874 = vcmask 261120
        %875 = vst.msk [vmem:[%s20] sm:$0xff] %vm874, %v872
        %876 = vst.msk [vmem:[%s20 + $0x8] sm:$0xff] %vm874, %v873
        %v877 = vlaneseq
        %v878 = vshrl.u32 %v877, 7
        %v879 = vlaneseq
        %v880 = vand.u32 %v879, 127
        %vm881 = vcmp.le.s32.totalorder %v880, %v878
        %v882 = vld [vmem:[%s2] sm:$0x3]
        %vm883 = vcmp.ne.s32.totalorder %v882, 0
        %v884 = vsel %vm883, 1, 0
        %v886 = vunpack.c.l.s4 1966171168
        %v887 = vunpack.c.0.s8 %v886
        %v888 = vlaneseq
        %v889 = vshrl.u32 %v888, 7
        %v890 = vsub.s32 %v887, %v889
        %v891 = vrot.slane %v884, %v890
        %v892 = vcombine.high %v891, %v891
        %v894 = vunpack.c.l.s4 1966171168
        %v895 = vunpack.c.0.s8 %v894
        %v896 = vlaneseq
        %v897 = vshrl.u32 %v896, 7
        %v898 = vsub.s32 %v895, %v897
        %v899 = vrot.slane %v891, %v898
        %v901 = vunpack.c.l.s4 1966171168
        %v902 = vunpack.c.0.s8 %v901
        %v903 = vlaneseq
        %v904 = vshrl.u32 %v903, 7
        %v905 = vsub.s32 %v902, %v904
        %v906 = vrot.slane %v892, %v905
        %vm907 = vcmp.ne.s32.totalorder %v899, 0
        %vm908 = vcmp.ne.s32.totalorder %v906, 0
        %v909 = vsel %vm881, 1, 0
        %vm910 = vcmp.eq.s32.totalorder %v909, 1
        %v911 = vsel %vm907, 1, 0
        %v912 = vsel %vm908, 1, 0
        %v913 = vlaneseq
        %v914 = vshrl.u32 %v913, 7
        %v915 = vsub.s32 0, %v914
        %v916 = vrot.slane %v911, %v915
        %v917 = vlaneseq
        %v918 = vshrl.u32 %v917, 7
        %v919 = vsub.s32 0, %v918
        %v920 = vrot.slane %v912, %v919
        %vm921 = vcmp.eq.s32.totalorder %v916, 1
        %vm922 = vcmp.eq.s32.totalorder %v920, 1
        %vm923 = vmand %vm910, %vm921
        %vm924 = vmand %vm910, %vm922
        %v925 = vsel %vm923, 0.0, -1e+09
        %v926 = vsel %vm924, 0.0, -1e+09
        %vm927 = vcmask 64512
        %928 = vst.msk [vmem:[#allocation2] sm:$0xff] %vm927, %v925
        %929 = vst.msk [vmem:[#allocation2 + $0x8] sm:$0xff] %vm927, %v926
        %v930 = vld [vmem:[%s3] sm:$0x3]
        %vm931 = vcmp.ne.s32.totalorder %v930, 0
        %v932 = vsel %vm931, 1, 0
        %v934 = vunpack.c.l.s4 1966171168
        %v935 = vunpack.c.0.s8 %v934
        %v936 = vlaneseq
        %v937 = vshrl.u32 %v936, 7
        %v938 = vsub.s32 %v935, %v937
        %v939 = vrot.slane %v932, %v938
        %v940 = vcombine.high %v939, %v939
        %v942 = vunpack.c.l.s4 1966171168
        %v943 = vunpack.c.0.s8 %v942
        %v944 = vlaneseq
        %v945 = vshrl.u32 %v944, 7
        %v946 = vsub.s32 %v943, %v945
        %v947 = vrot.slane %v939, %v946
        %v949 = vunpack.c.l.s4 1966171168
        %v950 = vunpack.c.0.s8 %v949
        %v951 = vlaneseq
        %v952 = vshrl.u32 %v951, 7
        %v953 = vsub.s32 %v950, %v952
        %v954 = vrot.slane %v940, %v953
        %vm955 = vcmp.ne.s32.totalorder %v947, 0
        %vm956 = vcmp.ne.s32.totalorder %v954, 0
        %v957 = vsel %vm955, 1, 0
        %v958 = vsel %vm956, 1, 0
        %v959 = vlaneseq
        %v960 = vshrl.u32 %v959, 7
        %v961 = vsub.s32 0, %v960
        %v962 = vrot.slane %v957, %v961
        %v963 = vlaneseq
        %v964 = vshrl.u32 %v963, 7
        %v965 = vsub.s32 0, %v964
        %v966 = vrot.slane %v958, %v965
        %vm967 = vcmp.eq.s32.totalorder %v962, 1
        %vm968 = vcmp.eq.s32.totalorder %v966, 1
        %v969 = vsel %vm967, 0.0, -1e+09
        %v970 = vsel %vm968, 0.0, -1e+09
        %971 = vst.msk [vmem:[#allocation3] sm:$0xff] %vm927, %v969
        %972 = vst.msk [vmem:[#allocation3 + $0x8] sm:$0xff] %vm927, %v970
      $region104: #{translator_forward.4} parent=99 // pred_fallthru
        _
      %v973 = vld [vmem:[%s20] sm:$0xff]
      %v974 = vld [vmem:[%s20 + $0x8] sm:$0xff]
      %v975 = vld [vmem:[%s1] sm:$0xf]
      %v976 = vld [vmem:[%s1 + $0x4] sm:$0xf]
      %v977 = vld [vmem:[%s862] sm:$0x7]
      %v978 = vld [vmem:[%s866] sm:$0x7]
      %v979 = vpack.c.bf16 %v974, %v973
      %v980 = vld [vmem:[%s807] sm:$0xf]
      %v981 = vld [vmem:[%s807 + $0x4] sm:$0xf]
      %v982 = vld [vmem:[%s807 + $0x8] sm:$0xf]
      %v983 = vld [vmem:[%s807 + $0xc] sm:$0xf]
      %v984 = vld [vmem:[%s810] sm:$0x1]
      %v986 = vlaneseq
      %v987 = vshrl.u32 %v986, 7
      %v988 = vsub.s32 0, %v987
      %v989 = vrot.slane %v984, %v988
      %v995 = vunpack.c.l.b16 %v980
      %v996 = vunpack.c.l.b16 %v981
      %v997 = vunpack.c.l.b16 %v982
      %v998 = vunpack.c.l.b16 %v983
      %v999 = vpack.c.b16 %v996, %v995
      %v1000 = vpack.c.b16 %v998, %v997
      %vm1003 = vcmask 261120
      %v1005 = vsel %vm1003, %v979, 0
      %1007 = vmatprep.subr.bf16.mxu0 0
      %1008 = vmatpush1.bf16.msra.mxu0 0
      %1009 = vmatprep.subr.bf16.mxu0 0
      %1010 = vmatpush1.bf16.msra.mxu0 0
      %1011 = vmatprep.subr.bf16.mxu0 0
      %1012 = vmatpush1.bf16.msra.mxu0 0
      %1013 = vmatprep.subr.bf16.mxu0 0
      %1014 = vmatpush1.bf16.msra.mxu0 0
      %1015 = vmatprep.subr.bf16.mxu0 0
      %1016 = vmatpush1.bf16.msra.mxu0 0
      %1017 = vmatprep.subr.bf16.mxu0 0
      %1018 = vmatpush1.bf16.msra.mxu0 0
      %1019 = vmatprep.subr.bf16.mxu0 0
      %1020 = vmatpush1.bf16.msra.mxu0 %v1000
      %1021 = vmatprep.subr.bf16.mxu0 0
      %1022 = vmatpush1.bf16.msra.mxu0 %v999
      %1023 = vmatprep.subr.bf16.mxu0 0
      %1024 = vmatpush2.bf16.msra.mxu0 0
      %1025 = vmatprep.subr.bf16.mxu0 0
      %1026 = vmatpush2.bf16.msra.mxu0 0
      %1027 = vmatprep.subr.bf16.mxu0 0
      %1028 = vmatpush2.bf16.msra.mxu0 0
      %1029 = vmatprep.subr.bf16.mxu0 0
      %1030 = vmatpush2.bf16.msra.mxu0 0
      %1031 = vmatprep.subr.bf16.mxu0 0
      %1032 = vmatpush2.bf16.msra.mxu0 0
      %1033 = vmatprep.subr.bf16.mxu0 0
      %1034 = vmatpush2.bf16.msra.mxu0 0
      %1035 = vmatprep.subr.bf16.mxu0 0
      %1036 = vmatpush2.bf16.msra.mxu0 0
      %1037 = vmatprep.subr.bf16.mxu0 0
      %1038 = vmatpush2.bf16.msra.mxu0 0
      %1039 = vmatprep.mubr.bf16.mxu0 0
      %1040 = vmatmul.mubr.bf16.gmra.mxu0 %v1005
      %v1041 = vpop.f32.mrf.mxu0
      %v1042 = vadd.f32 %v989, %v1041
      %v1043 = vpop.f32.mrf.mxu0
      %v1044 = vpop.f32.mrf.mxu0
      %v1045 = vadd.f32 %v989, %v1044
      %v1046 = vpop.f32.mrf.mxu0
      %1047 = vdwg.mxu0
      %v1048 = vld [vmem:[%s815] sm:$0xf]
      %v1049 = vld [vmem:[%s815 + $0x4] sm:$0xf]
      %v1050 = vld [vmem:[%s815 + $0x8] sm:$0xf]
      %v1051 = vld [vmem:[%s815 + $0xc] sm:$0xf]
      %v1052 = vld [vmem:[%s818] sm:$0x1]
      %v1053 = vmul.f32 %v1042, 0.35355338
      %v1054 = vpack.c.bf16 %v1053, %v1053
      %v1055 = vpack.c.bf16 %v1042, %v1042
      %v1056 = vld [vmem:[#allocation2] sm:$0xff]
      %1058 = vrot.lane.b32.xlu0 %v1055, 96
      %v1059 = vpop.permute.xlu0 %1058
      %vm1060 = vcmask 64512
      %v1062 = vsel %vm1060, %v1054, 0
      %v1065 = vsel %vm1060, %v1059, 0
      %1067 = vmatprep.subr.bf16.mxu0 0
      %1068 = vmatpush1.bf16.xpose.msra.mxu0 0
      %1069 = vmatprep.subr.bf16.mxu0 0
      %1070 = vmatpush1.bf16.xpose.msra.mxu0 0
      %1071 = vmatprep.subr.bf16.mxu0 0
      %1072 = vmatpush1.bf16.xpose.msra.mxu0 0
      %1073 = vmatprep.subr.bf16.mxu0 0
      %1074 = vmatpush1.bf16.xpose.msra.mxu0 0
      %1075 = vmatprep.subr.bf16.mxu0 0
      %1076 = vmatpush1.bf16.xpose.msra.mxu0 0
      %1077 = vmatprep.subr.bf16.mxu0 0
      %1078 = vmatpush1.bf16.xpose.msra.mxu0 0
      %1079 = vmatprep.subr.bf16.mxu0 0
      %1080 = vmatpush1.bf16.xpose.msra.mxu0 0
      %1081 = vmatprep.subr.bf16.mxu0 0
      %1082 = vmatpush1.bf16.xpose.msra.mxu0 %v1065
      %1083 = vmatprep.subr.bf16.mxu0 0
      %1084 = vmatpush2.bf16.xpose.msra.mxu0 0
      %1085 = vmatprep.subr.bf16.mxu0 0
      %1086 = vmatpush2.bf16.xpose.msra.mxu0 0
      %1087 = vmatprep.subr.bf16.mxu0 0
      %1088 = vmatpush2.bf16.xpose.msra.mxu0 0
      %1089 = vmatprep.subr.bf16.mxu0 0
      %1090 = vmatpush2.bf16.xpose.msra.mxu0 0
      %1091 = vmatprep.subr.bf16.mxu0 0
      %1092 = vmatpush2.bf16.xpose.msra.mxu0 0
      %1093 = vmatprep.subr.bf16.mxu0 0
      %1094 = vmatpush2.bf16.xpose.msra.mxu0 0
      %1095 = vmatprep.subr.bf16.mxu0 0
      %1096 = vmatpush2.bf16.xpose.msra.mxu0 0
      %1097 = vmatprep.subr.bf16.mxu0 0
      %1098 = vmatpush2.bf16.xpose.msra.mxu0 0
      %1099 = vmatprep.mubr.bf16.mxu0 0
      %1100 = vmatmul.mubr.bf16.gmra.mxu0 %v1062
      %v1101 = vpop.f32.mrf.mxu0
      %v1102 = vadd.f32 %v1056, %v1101
      %v1103 = vpop.f32.mrf.mxu0
      %v1104 = vpop.f32.mrf.mxu0
      %v1105 = vpop.f32.mrf.mxu0
      %1106 = vdwg.mxu0
      %v1107 = vsel %vm1060, %v1102, -inf
      %1108 = vmax.xlane.f32.xlu0 %v1107
      %v1109 = vpop.xlane.xlu0 %1108
      %v1110 = vsub.f32 %v1102, %v1109
      %v1111 = vmul.f32 %v1110, 1.442695
      %v1112 = vpow.pop %v1111
      %v1113 = vsel %vm1060, %v1112, 0.0
      %1114 = vadd.xlane.f32.xlu0 %v1113
      %v1115 = vpop.xlane.xlu0 %1114
      %v1116 = vrcp.pop %v1115
      %v1117 = vmul.f32 %v1112, %v1116
      %v1118 = vpack.c.bf16 %v1117, %v1117
      %1119 = vrot.lane.b32.xlu0 %v1055, 64
      %v1120 = vpop.permute.xlu0 %1119
      %v1122 = vsel %vm1060, %v1118, 0
      %vm1124 = vcmask 1043456
      %v1126 = vsel %vm1124, %v1120, 0
      %1128 = vmatprep.subr.bf16.mxu0 0
      %1129 = vmatpush1.bf16.msra.mxu0 0
      %1130 = vmatprep.subr.bf16.mxu0 0
      %1131 = vmatpush1.bf16.msra.mxu0 0
      %1132 = vmatprep.subr.bf16.mxu0 0
      %1133 = vmatpush1.bf16.msra.mxu0 0
      %1134 = vmatprep.subr.bf16.mxu0 0
      %1135 = vmatpush1.bf16.msra.mxu0 0
      %1136 = vmatprep.subr.bf16.mxu0 0
      %1137 = vmatpush1.bf16.msra.mxu0 0
      %1138 = vmatprep.subr.bf16.mxu0 0
      %1139 = vmatpush1.bf16.msra.mxu0 0
      %1140 = vmatprep.subr.bf16.mxu0 0
      %1141 = vmatpush1.bf16.msra.mxu0 0
      %1142 = vmatprep.subr.bf16.mxu0 0
      %1143 = vmatpush1.bf16.msra.mxu0 %v1126
      %1144 = vmatprep.subr.bf16.mxu0 0
      %1145 = vmatpush2.bf16.msra.mxu0 0
      %1146 = vmatprep.subr.bf16.mxu0 0
      %1147 = vmatpush2.bf16.msra.mxu0 0
      %1148 = vmatprep.subr.bf16.mxu0 0
      %1149 = vmatpush2.bf16.msra.mxu0 0
      %1150 = vmatprep.subr.bf16.mxu0 0
      %1151 = vmatpush2.bf16.msra.mxu0 0
      %1152 = vmatprep.subr.bf16.mxu0 0
      %1153 = vmatpush2.bf16.msra.mxu0 0
      %1154 = vmatprep.subr.bf16.mxu0 0
      %1155 = vmatpush2.bf16.msra.mxu0 0
      %1156 = vmatprep.subr.bf16.mxu0 0
      %1157 = vmatpush2.bf16.msra.mxu0 0
      %1158 = vmatprep.subr.bf16.mxu0 0
      %1159 = vmatpush2.bf16.msra.mxu0 0
      %1160 = vmatprep.mubr.bf16.mxu0 0
      %1161 = vmatmul.mubr.bf16.gmra.mxu0 %v1122
      %v1162 = vpop.f32.mrf.mxu0
      %v1163 = vadd.f32 0.0, %v1162
      %v1164 = vpop.f32.mrf.mxu0
      %v1165 = vpop.f32.mrf.mxu0
      %v1166 = vpop.f32.mrf.mxu0
      %1167 = vdwg.mxu0
      %1169 = vrot.lane.b32.xlu0 %v1054, 120
      %v1170 = vpop.permute.xlu0 %1169
      %1171 = vrot.lane.b32.xlu0 %v1055, 88
      %v1172 = vpop.permute.xlu0 %1171
      %v1174 = vsel %vm1060, %v1170, 0
      %v1177 = vsel %vm1060, %v1172, 0
      %1179 = vmatprep.subr.bf16.mxu0 0
      %1180 = vmatpush1.bf16.xpose.msra.mxu0 0
      %1181 = vmatprep.subr.bf16.mxu0 0
      %1182 = vmatpush1.bf16.xpose.msra.mxu0 0
      %1183 = vmatprep.subr.bf16.mxu0 0
      %1184 = vmatpush1.bf16.xpose.msra.mxu0 0
      %1185 = vmatprep.subr.bf16.mxu0 0
      %1186 = vmatpush1.bf16.xpose.msra.mxu0 0
      %1187 = vmatprep.subr.bf16.mxu0 0
      %1188 = vmatpush1.bf16.xpose.msra.mxu0 0
      %1189 = vmatprep.subr.bf16.mxu0 0
      %1190 = vmatpush1.bf16.xpose.msra.mxu0 0
      %1191 = vmatprep.subr.bf16.mxu0 0
      %1192 = vmatpush1.bf16.xpose.msra.mxu0 0
      %1193 = vmatprep.subr.bf16.mxu0 0
      %1194 = vmatpush1.bf16.xpose.msra.mxu0 %v1177
      %1195 = vmatprep.subr.bf16.mxu0 0
      %1196 = vmatpush2.bf16.xpose.msra.mxu0 0
      %1197 = vmatprep.subr.bf16.mxu0 0
      %1198 = vmatpush2.bf16.xpose.msra.mxu0 0
      %1199 = vmatprep.subr.bf16.mxu0 0
      %1200 = vmatpush2.bf16.xpose.msra.mxu0 0
      %1201 = vmatprep.subr.bf16.mxu0 0
      %1202 = vmatpush2.bf16.xpose.msra.mxu0 0
      %1203 = vmatprep.subr.bf16.mxu0 0
      %1204 = vmatpush2.bf16.xpose.msra.mxu0 0
      %1205 = vmatprep.subr.bf16.mxu0 0
      %1206 = vmatpush2.bf16.xpose.msra.mxu0 0
      %1207 = vmatprep.subr.bf16.mxu0 0
      %1208 = vmatpush2.bf16.xpose.msra.mxu0 0
      %1209 = vmatprep.subr.bf16.mxu0 0
      %1210 = vmatpush2.bf16.xpose.msra.mxu0 0
      %1211 = vmatprep.mubr.bf16.mxu0 0
      %1212 = vmatmul.mubr.bf16.gmra.mxu0 %v1174
      %v1213 = vpop.f32.mrf.mxu0
      %v1214 = vadd.f32 %v1056, %v1213
      %v1215 = vpop.f32.mrf.mxu0
      %v1216 = vpop.f32.mrf.mxu0
      %v1217 = vpop.f32.mrf.mxu0
      %1218 = vdwg.mxu0
      %v1219 = vsel %vm1060, %v1214, -inf
      %1220 = vmax.xlane.f32.xlu0 %v1219
      %v1221 = vpop.xlane.xlu0 %1220
      %v1222 = vsub.f32 %v1214, %v1221
      %v1223 = vmul.f32 %v1222, 1.442695
      %v1224 = vpow.pop %v1223
      %v1225 = vsel %vm1060, %v1224, 0.0
      %1226 = vadd.xlane.f32.xlu0 %v1225
      %v1227 = vpop.xlane.xlu0 %1226
      %v1228 = vrcp.pop %v1227
      %v1229 = vmul.f32 %v1224, %v1228
      %v1230 = vpack.c.bf16 %v1229, %v1229
      %1231 = vrot.lane.b32.xlu0 %v1055, 56
      %v1232 = vpop.permute.xlu0 %1231
      %v1234 = vsel %vm1060, %v1230, 0
      %v1237 = vsel %vm1124, %v1232, 0
      %1239 = vmatprep.subr.bf16.mxu0 0
      %1240 = vmatpush1.bf16.msra.mxu0 0
      %1241 = vmatprep.subr.bf16.mxu0 0
      %1242 = vmatpush1.bf16.msra.mxu0 0
      %1243 = vmatprep.subr.bf16.mxu0 0
      %1244 = vmatpush1.bf16.msra.mxu0 0
      %1245 = vmatprep.subr.bf16.mxu0 0
      %1246 = vmatpush1.bf16.msra.mxu0 0
      %1247 = vmatprep.subr.bf16.mxu0 0
      %1248 = vmatpush1.bf16.msra.mxu0 0
      %1249 = vmatprep.subr.bf16.mxu0 0
      %1250 = vmatpush1.bf16.msra.mxu0 0
      %1251 = vmatprep.subr.bf16.mxu0 0
      %1252 = vmatpush1.bf16.msra.mxu0 0
      %1253 = vmatprep.subr.bf16.mxu0 0
      %1254 = vmatpush1.bf16.msra.mxu0 %v1237
      %1255 = vmatprep.subr.bf16.mxu0 0
      %1256 = vmatpush2.bf16.msra.mxu0 0
      %1257 = vmatprep.subr.bf16.mxu0 0
      %1258 = vmatpush2.bf16.msra.mxu0 0
      %1259 = vmatprep.subr.bf16.mxu0 0
      %1260 = vmatpush2.bf16.msra.mxu0 0
      %1261 = vmatprep.subr.bf16.mxu0 0
      %1262 = vmatpush2.bf16.msra.mxu0 0
      %1263 = vmatprep.subr.bf16.mxu0 0
      %1264 = vmatpush2.bf16.msra.mxu0 0
      %1265 = vmatprep.subr.bf16.mxu0 0
      %1266 = vmatpush2.bf16.msra.mxu0 0
      %1267 = vmatprep.subr.bf16.mxu0 0
      %1268 = vmatpush2.bf16.msra.mxu0 0
      %1269 = vmatprep.subr.bf16.mxu0 0
      %1270 = vmatpush2.bf16.msra.mxu0 0
      %1271 = vmatprep.mubr.bf16.mxu0 0
      %1272 = vmatmul.mubr.bf16.gmra.mxu0 %v1234
      %v1273 = vpop.f32.mrf.mxu0
      %v1274 = vadd.f32 0.0, %v1273
      %v1275 = vpop.f32.mrf.mxu0
      %v1276 = vpop.f32.mrf.mxu0
      %v1277 = vpop.f32.mrf.mxu0
      %1278 = vdwg.mxu0
      %1279 = vrot.lane.b32.xlu0 %v1054, 112
      %v1280 = vpop.permute.xlu0 %1279
      %1281 = vrot.lane.b32.xlu0 %v1055, 80
      %v1282 = vpop.permute.xlu0 %1281
      %v1284 = vsel %vm1060, %v1280, 0
      %v1287 = vsel %vm1060, %v1282, 0
      %1289 = vmatprep.subr.bf16.mxu0 0
      %1290 = vmatpush1.bf16.xpose.msra.mxu0 0
      %1291 = vmatprep.subr.bf16.mxu0 0
      %1292 = vmatpush1.bf16.xpose.msra.mxu0 0
      %1293 = vmatprep.subr.bf16.mxu0 0
      %1294 = vmatpush1.bf16.xpose.msra.mxu0 0
      %1295 = vmatprep.subr.bf16.mxu0 0
      %1296 = vmatpush1.bf16.xpose.msra.mxu0 0
      %1297 = vmatprep.subr.bf16.mxu0 0
      %1298 = vmatpush1.bf16.xpose.msra.mxu0 0
      %1299 = vmatprep.subr.bf16.mxu0 0
      %1300 = vmatpush1.bf16.xpose.msra.mxu0 0
      %1301 = vmatprep.subr.bf16.mxu0 0
      %1302 = vmatpush1.bf16.xpose.msra.mxu0 0
      %1303 = vmatprep.subr.bf16.mxu0 0
      %1304 = vmatpush1.bf16.xpose.msra.mxu0 %v1287
      %1305 = vmatprep.subr.bf16.mxu0 0
      %1306 = vmatpush2.bf16.xpose.msra.mxu0 0
      %1307 = vmatprep.subr.bf16.mxu0 0
      %1308 = vmatpush2.bf16.xpose.msra.mxu0 0
      %1309 = vmatprep.subr.bf16.mxu0 0
      %1310 = vmatpush2.bf16.xpose.msra.mxu0 0
      %1311 = vmatprep.subr.bf16.mxu0 0
      %1312 = vmatpush2.bf16.xpose.msra.mxu0 0
      %1313 = vmatprep.subr.bf16.mxu0 0
      %1314 = vmatpush2.bf16.xpose.msra.mxu0 0
      %1315 = vmatprep.subr.bf16.mxu0 0
      %1316 = vmatpush2.bf16.xpose.msra.mxu0 0
      %1317 = vmatprep.subr.bf16.mxu0 0
      %1318 = vmatpush2.bf16.xpose.msra.mxu0 0
      %1319 = vmatprep.subr.bf16.mxu0 0
      %1320 = vmatpush2.bf16.xpose.msra.mxu0 0
      %1321 = vmatprep.mubr.bf16.mxu0 0
      %1322 = vmatmul.mubr.bf16.gmra.mxu0 %v1284
      %v1323 = vpop.f32.mrf.mxu0
      %v1324 = vadd.f32 %v1056, %v1323
      %v1325 = vpop.f32.mrf.mxu0
      %v1326 = vpop.f32.mrf.mxu0
      %v1327 = vpop.f32.mrf.mxu0
      %1328 = vdwg.mxu0
      %v1329 = vsel %vm1060, %v1324, -inf
      %1330 = vmax.xlane.f32.xlu0 %v1329
      %v1331 = vpop.xlane.xlu0 %1330
      %v1332 = vsub.f32 %v1324, %v1331
      %v1333 = vmul.f32 %v1332, 1.442695
      %v1334 = vpow.pop %v1333
      %v1335 = vsel %vm1060, %v1334, 0.0
      %1336 = vadd.xlane.f32.xlu0 %v1335
      %v1337 = vpop.xlane.xlu0 %1336
      %v1338 = vrcp.pop %v1337
      %v1339 = vmul.f32 %v1334, %v1338
      %v1340 = vpack.c.bf16 %v1339, %v1339
      %1341 = vrot.lane.b32.xlu0 %v1055, 48
      %v1342 = vpop.permute.xlu0 %1341
      %v1344 = vsel %vm1060, %v1340, 0
      %v1347 = vsel %vm1124, %v1342, 0
      %1349 = vmatprep.subr.bf16.mxu0 0
      %1350 = vmatpush1.bf16.msra.mxu0 0
      %1351 = vmatprep.subr.bf16.mxu0 0
      %1352 = vmatpush1.bf16.msra.mxu0 0
      %1353 = vmatprep.subr.bf16.mxu0 0
      %1354 = vmatpush1.bf16.msra.mxu0 0
      %1355 = vmatprep.subr.bf16.mxu0 0
      %1356 = vmatpush1.bf16.msra.mxu0 0
      %1357 = vmatprep.subr.bf16.mxu0 0
      %1358 = vmatpush1.bf16.msra.mxu0 0
      %1359 = vmatprep.subr.bf16.mxu0 0
      %1360 = vmatpush1.bf16.msra.mxu0 0
      %1361 = vmatprep.subr.bf16.mxu0 0
      %1362 = vmatpush1.bf16.msra.mxu0 0
      %1363 = vmatprep.subr.bf16.mxu0 0
      %1364 = vmatpush1.bf16.msra.mxu0 %v1347
      %1365 = vmatprep.subr.bf16.mxu0 0
      %1366 = vmatpush2.bf16.msra.mxu0 0
      %1367 = vmatprep.subr.bf16.mxu0 0
      %1368 = vmatpush2.bf16.msra.mxu0 0
      %1369 = vmatprep.subr.bf16.mxu0 0
      %1370 = vmatpush2.bf16.msra.mxu0 0
      %1371 = vmatprep.subr.bf16.mxu0 0
      %1372 = vmatpush2.bf16.msra.mxu0 0
      %1373 = vmatprep.subr.bf16.mxu0 0
      %1374 = vmatpush2.bf16.msra.mxu0 0
      %1375 = vmatprep.subr.bf16.mxu0 0
      %1376 = vmatpush2.bf16.msra.mxu0 0
      %1377 = vmatprep.subr.bf16.mxu0 0
      %1378 = vmatpush2.bf16.msra.mxu0 0
      %1379 = vmatprep.subr.bf16.mxu0 0
      %1380 = vmatpush2.bf16.msra.mxu0 0
      %1381 = vmatprep.mubr.bf16.mxu0 0
      %1382 = vmatmul.mubr.bf16.gmra.mxu0 %v1344
      %v1383 = vpop.f32.mrf.mxu0
      %v1384 = vadd.f32 0.0, %v1383
      %v1385 = vpop.f32.mrf.mxu0
      %v1386 = vpop.f32.mrf.mxu0
      %v1387 = vpop.f32.mrf.mxu0
      %1388 = vdwg.mxu0
      %1389 = vrot.lane.b32.xlu0 %v1054, 104
      %v1390 = vpop.permute.xlu0 %1389
      %1391 = vrot.lane.b32.xlu0 %v1055, 72
      %v1392 = vpop.permute.xlu0 %1391
      %v1394 = vsel %vm1060, %v1390, 0
      %v1397 = vsel %vm1060, %v1392, 0
      %1399 = vmatprep.subr.bf16.mxu0 0
      %1400 = vmatpush1.bf16.xpose.msra.mxu0 0
      %1401 = vmatprep.subr.bf16.mxu0 0
      %1402 = vmatpush1.bf16.xpose.msra.mxu0 0
      %1403 = vmatprep.subr.bf16.mxu0 0
      %1404 = vmatpush1.bf16.xpose.msra.mxu0 0
      %1405 = vmatprep.subr.bf16.mxu0 0
      %1406 = vmatpush1.bf16.xpose.msra.mxu0 0
      %1407 = vmatprep.subr.bf16.mxu0 0
      %1408 = vmatpush1.bf16.xpose.msra.mxu0 0
      %1409 = vmatprep.subr.bf16.mxu0 0
      %1410 = vmatpush1.bf16.xpose.msra.mxu0 0
      %1411 = vmatprep.subr.bf16.mxu0 0
      %1412 = vmatpush1.bf16.xpose.msra.mxu0 0
      %1413 = vmatprep.subr.bf16.mxu0 0
      %1414 = vmatpush1.bf16.xpose.msra.mxu0 %v1397
      %1415 = vmatprep.subr.bf16.mxu0 0
      %1416 = vmatpush2.bf16.xpose.msra.mxu0 0
      %1417 = vmatprep.subr.bf16.mxu0 0
      %1418 = vmatpush2.bf16.xpose.msra.mxu0 0
      %1419 = vmatprep.subr.bf16.mxu0 0
      %1420 = vmatpush2.bf16.xpose.msra.mxu0 0
      %1421 = vmatprep.subr.bf16.mxu0 0
      %1422 = vmatpush2.bf16.xpose.msra.mxu0 0
      %1423 = vmatprep.subr.bf16.mxu0 0
      %1424 = vmatpush2.bf16.xpose.msra.mxu0 0
      %1425 = vmatprep.subr.bf16.mxu0 0
      %1426 = vmatpush2.bf16.xpose.msra.mxu0 0
      %1427 = vmatprep.subr.bf16.mxu0 0
      %1428 = vmatpush2.bf16.xpose.msra.mxu0 0
      %1429 = vmatprep.subr.bf16.mxu0 0
      %1430 = vmatpush2.bf16.xpose.msra.mxu0 0
      %1431 = vmatprep.mubr.bf16.mxu0 0
      %1432 = vmatmul.mubr.bf16.gmra.mxu0 %v1394
      %v1433 = vpop.f32.mrf.mxu0
      %v1434 = vadd.f32 %v1056, %v1433
      %v1435 = vpop.f32.mrf.mxu0
      %v1436 = vpop.f32.mrf.mxu0
      %v1437 = vpop.f32.mrf.mxu0
      %1438 = vdwg.mxu0
      %v1439 = vsel %vm1060, %v1434, -inf
      %1440 = vmax.xlane.f32.xlu0 %v1439
      %v1441 = vpop.xlane.xlu0 %1440
      %v1442 = vsub.f32 %v1434, %v1441
      %v1443 = vmul.f32 %v1442, 1.442695
      %v1444 = vpow.pop %v1443
      %v1445 = vsel %vm1060, %v1444, 0.0
      %1446 = vadd.xlane.f32.xlu0 %v1445
      %v1447 = vpop.xlane.xlu0 %1446
      %v1448 = vrcp.pop %v1447
      %v1449 = vmul.f32 %v1444, %v1448
      %v1450 = vpack.c.bf16 %v1449, %v1449
      %1451 = vrot.lane.b32.xlu0 %v1055, 40
      %v1452 = vpop.permute.xlu0 %1451
      %v1454 = vsel %vm1060, %v1450, 0
      %v1457 = vsel %vm1124, %v1452, 0
      %1459 = vmatprep.subr.bf16.mxu0 0
      %1460 = vmatpush1.bf16.msra.mxu0 0
      %1461 = vmatprep.subr.bf16.mxu0 0
      %1462 = vmatpush1.bf16.msra.mxu0 0
      %1463 = vmatprep.subr.bf16.mxu0 0
      %1464 = vmatpush1.bf16.msra.mxu0 0
      %1465 = vmatprep.subr.bf16.mxu0 0
      %1466 = vmatpush1.bf16.msra.mxu0 0
      %1467 = vmatprep.subr.bf16.mxu0 0
      %1468 = vmatpush1.bf16.msra.mxu0 0
      %1469 = vmatprep.subr.bf16.mxu0 0
      %1470 = vmatpush1.bf16.msra.mxu0 0
      %1471 = vmatprep.subr.bf16.mxu0 0
      %1472 = vmatpush1.bf16.msra.mxu0 0
      %1473 = vmatprep.subr.bf16.mxu0 0
      %1474 = vmatpush1.bf16.msra.mxu0 %v1457
      %1475 = vmatprep.subr.bf16.mxu0 0
      %1476 = vmatpush2.bf16.msra.mxu0 0
      %1477 = vmatprep.subr.bf16.mxu0 0
      %1478 = vmatpush2.bf16.msra.mxu0 0
      %1479 = vmatprep.subr.bf16.mxu0 0
      %1480 = vmatpush2.bf16.msra.mxu0 0
      %1481 = vmatprep.subr.bf16.mxu0 0
      %1482 = vmatpush2.bf16.msra.mxu0 0
      %1483 = vmatprep.subr.bf16.mxu0 0
      %1484 = vmatpush2.bf16.msra.mxu0 0
      %1485 = vmatprep.subr.bf16.mxu0 0
      %1486 = vmatpush2.bf16.msra.mxu0 0
      %1487 = vmatprep.subr.bf16.mxu0 0
      %1488 = vmatpush2.bf16.msra.mxu0 0
      %1489 = vmatprep.subr.bf16.mxu0 0
      %1490 = vmatpush2.bf16.msra.mxu0 0
      %1491 = vmatprep.mubr.bf16.mxu0 0
      %1492 = vmatmul.mubr.bf16.gmra.mxu0 %v1454
      %v1493 = vpop.f32.mrf.mxu0
      %v1494 = vadd.f32 0.0, %v1493
      %v1495 = vpop.f32.mrf.mxu0
      %v1496 = vpop.f32.mrf.mxu0
      %v1497 = vpop.f32.mrf.mxu0
      %1498 = vdwg.mxu0
      %1500 = vrot.lane.b32.xlu0 %v1274, 8
      %v1501 = vpop.permute.xlu0 %1500
      %1504 = vrot.lane.b32.xlu0 %v1384, 16
      %v1505 = vpop.permute.xlu0 %1504
      %1508 = vrot.lane.b32.xlu0 %v1494, 24
      %v1509 = vpop.permute.xlu0 %1508
      %v1511 = vsel %vm1060, %v1163, %v1501
      %vm1512 = vcmask 130048
      %v1513 = vsel %vm1512, %v1511, %v1505
      %vm1514 = vcmask 195584
      %v1515 = vsel %vm1514, %v1513, %v1509
      %v1516 = vmul.f32 %v1045, 0.35355338
      %v1517 = vpack.c.bf16 %v1516, %v1516
      %v1518 = vpack.c.bf16 %v1045, %v1045
      %s1519 = scalar_lea.vmem [#allocation2], 8
      %v1520 = vld [vmem:[%s1519] sm:$0xff]
      %1522 = vrot.lane.b32.xlu0 %v1518, 96
      %v1523 = vpop.permute.xlu0 %1522
      %v1525 = vsel %vm1060, %v1517, 0
      %v1528 = vsel %vm1060, %v1523, 0
      %1530 = vmatprep.subr.bf16.mxu0 0
      %1531 = vmatpush1.bf16.xpose.msra.mxu0 0
      %1532 = vmatprep.subr.bf16.mxu0 0
      %1533 = vmatpush1.bf16.xpose.msra.mxu0 0
      %1534 = vmatprep.subr.bf16.mxu0 0
      %1535 = vmatpush1.bf16.xpose.msra.mxu0 0
      %1536 = vmatprep.subr.bf16.mxu0 0
      %1537 = vmatpush1.bf16.xpose.msra.mxu0 0
      %1538 = vmatprep.subr.bf16.mxu0 0
      %1539 = vmatpush1.bf16.xpose.msra.mxu0 0
      %1540 = vmatprep.subr.bf16.mxu0 0
      %1541 = vmatpush1.bf16.xpose.msra.mxu0 0
      %1542 = vmatprep.subr.bf16.mxu0 0
      %1543 = vmatpush1.bf16.xpose.msra.mxu0 0
      %1544 = vmatprep.subr.bf16.mxu0 0
      %1545 = vmatpush1.bf16.xpose.msra.mxu0 %v1528
      %1546 = vmatprep.subr.bf16.mxu0 0
      %1547 = vmatpush2.bf16.xpose.msra.mxu0 0
      %1548 = vmatprep.subr.bf16.mxu0 0
      %1549 = vmatpush2.bf16.xpose.msra.mxu0 0
      %1550 = vmatprep.subr.bf16.mxu0 0
      %1551 = vmatpush2.bf16.xpose.msra.mxu0 0
      %1552 = vmatprep.subr.bf16.mxu0 0
      %1553 = vmatpush2.bf16.xpose.msra.mxu0 0
      %1554 = vmatprep.subr.bf16.mxu0 0
      %1555 = vmatpush2.bf16.xpose.msra.mxu0 0
      %1556 = vmatprep.subr.bf16.mxu0 0
      %1557 = vmatpush2.bf16.xpose.msra.mxu0 0
      %1558 = vmatprep.subr.bf16.mxu0 0
      %1559 = vmatpush2.bf16.xpose.msra.mxu0 0
      %1560 = vmatprep.subr.bf16.mxu0 0
      %1561 = vmatpush2.bf16.xpose.msra.mxu0 0
      %1562 = vmatprep.mubr.bf16.mxu0 0
      %1563 = vmatmul.mubr.bf16.gmra.mxu0 %v1525
      %v1564 = vpop.f32.mrf.mxu0
      %v1565 = vadd.f32 %v1520, %v1564
      %v1566 = vpop.f32.mrf.mxu0
      %v1567 = vpop.f32.mrf.mxu0
      %v1568 = vpop.f32.mrf.mxu0
      %1569 = vdwg.mxu0
      %v1570 = vsel %vm1060, %v1565, -inf
      %1571 = vmax.xlane.f32.xlu0 %v1570
      %v1572 = vpop.xlane.xlu0 %1571
      %v1573 = vsub.f32 %v1565, %v1572
      %v1574 = vmul.f32 %v1573, 1.442695
      %v1575 = vpow.pop %v1574
      %v1576 = vsel %vm1060, %v1575, 0.0
      %1577 = vadd.xlane.f32.xlu0 %v1576
      %v1578 = vpop.xlane.xlu0 %1577
      %v1579 = vrcp.pop %v1578
      %v1580 = vmul.f32 %v1575, %v1579
      %v1581 = vpack.c.bf16 %v1580, %v1580
      %1582 = vrot.lane.b32.xlu0 %v1518, 64
      %v1583 = vpop.permute.xlu0 %1582
      %v1585 = vsel %vm1060, %v1581, 0
      %v1588 = vsel %vm1124, %v1583, 0
      %1590 = vmatprep.subr.bf16.mxu0 0
      %1591 = vmatpush1.bf16.msra.mxu0 0
      %1592 = vmatprep.subr.bf16.mxu0 0
      %1593 = vmatpush1.bf16.msra.mxu0 0
      %1594 = vmatprep.subr.bf16.mxu0 0
      %1595 = vmatpush1.bf16.msra.mxu0 0
      %1596 = vmatprep.subr.bf16.mxu0 0
      %1597 = vmatpush1.bf16.msra.mxu0 0
      %1598 = vmatprep.subr.bf16.mxu0 0
      %1599 = vmatpush1.bf16.msra.mxu0 0
      %1600 = vmatprep.subr.bf16.mxu0 0
      %1601 = vmatpush1.bf16.msra.mxu0 0
      %1602 = vmatprep.subr.bf16.mxu0 0
      %1603 = vmatpush1.bf16.msra.mxu0 0
      %1604 = vmatprep.subr.bf16.mxu0 0
      %1605 = vmatpush1.bf16.msra.mxu0 %v1588
      %1606 = vmatprep.subr.bf16.mxu0 0
      %1607 = vmatpush2.bf16.msra.mxu0 0
      %1608 = vmatprep.subr.bf16.mxu0 0
      %1609 = vmatpush2.bf16.msra.mxu0 0
      %1610 = vmatprep.subr.bf16.mxu0 0
      %1611 = vmatpush2.bf16.msra.mxu0 0
      %1612 = vmatprep.subr.bf16.mxu0 0
      %1613 = vmatpush2.bf16.msra.mxu0 0
      %1614 = vmatprep.subr.bf16.mxu0 0
      %1615 = vmatpush2.bf16.msra.mxu0 0
      %1616 = vmatprep.subr.bf16.mxu0 0
      %1617 = vmatpush2.bf16.msra.mxu0 0
      %1618 = vmatprep.subr.bf16.mxu0 0
      %1619 = vmatpush2.bf16.msra.mxu0 0
      %1620 = vmatprep.subr.bf16.mxu0 0
      %1621 = vmatpush2.bf16.msra.mxu0 0
      %1622 = vmatprep.mubr.bf16.mxu0 0
      %1623 = vmatmul.mubr.bf16.gmra.mxu0 %v1585
      %v1624 = vpop.f32.mrf.mxu0
      %v1625 = vadd.f32 0.0, %v1624
      %v1626 = vpop.f32.mrf.mxu0
      %v1627 = vpop.f32.mrf.mxu0
      %v1628 = vpop.f32.mrf.mxu0
      %1629 = vdwg.mxu0
      %1631 = vrot.lane.b32.xlu0 %v1517, 120
      %v1632 = vpop.permute.xlu0 %1631
      %1633 = vrot.lane.b32.xlu0 %v1518, 88
      %v1634 = vpop.permute.xlu0 %1633
      %v1636 = vsel %vm1060, %v1632, 0
      %v1639 = vsel %vm1060, %v1634, 0
      %1641 = vmatprep.subr.bf16.mxu0 0
      %1642 = vmatpush1.bf16.xpose.msra.mxu0 0
      %1643 = vmatprep.subr.bf16.mxu0 0
      %1644 = vmatpush1.bf16.xpose.msra.mxu0 0
      %1645 = vmatprep.subr.bf16.mxu0 0
      %1646 = vmatpush1.bf16.xpose.msra.mxu0 0
      %1647 = vmatprep.subr.bf16.mxu0 0
      %1648 = vmatpush1.bf16.xpose.msra.mxu0 0
      %1649 = vmatprep.subr.bf16.mxu0 0
      %1650 = vmatpush1.bf16.xpose.msra.mxu0 0
      %1651 = vmatprep.subr.bf16.mxu0 0
      %1652 = vmatpush1.bf16.xpose.msra.mxu0 0
      %1653 = vmatprep.subr.bf16.mxu0 0
      %1654 = vmatpush1.bf16.xpose.msra.mxu0 0
      %1655 = vmatprep.subr.bf16.mxu0 0
      %1656 = vmatpush1.bf16.xpose.msra.mxu0 %v1639
      %1657 = vmatprep.subr.bf16.mxu0 0
      %1658 = vmatpush2.bf16.xpose.msra.mxu0 0
      %1659 = vmatprep.subr.bf16.mxu0 0
      %1660 = vmatpush2.bf16.xpose.msra.mxu0 0
      %1661 = vmatprep.subr.bf16.mxu0 0
      %1662 = vmatpush2.bf16.xpose.msra.mxu0 0
      %1663 = vmatprep.subr.bf16.mxu0 0
      %1664 = vmatpush2.bf16.xpose.msra.mxu0 0
      %1665 = vmatprep.subr.bf16.mxu0 0
      %1666 = vmatpush2.bf16.xpose.msra.mxu0 0
      %1667 = vmatprep.subr.bf16.mxu0 0
      %1668 = vmatpush2.bf16.xpose.msra.mxu0 0
      %1669 = vmatprep.subr.bf16.mxu0 0
      %1670 = vmatpush2.bf16.xpose.msra.mxu0 0
      %1671 = vmatprep.subr.bf16.mxu0 0
      %1672 = vmatpush2.bf16.xpose.msra.mxu0 0
      %1673 = vmatprep.mubr.bf16.mxu0 0
      %1674 = vmatmul.mubr.bf16.gmra.mxu0 %v1636
      %v1675 = vpop.f32.mrf.mxu0
      %v1676 = vadd.f32 %v1520, %v1675
      %v1677 = vpop.f32.mrf.mxu0
      %v1678 = vpop.f32.mrf.mxu0
      %v1679 = vpop.f32.mrf.mxu0
      %1680 = vdwg.mxu0
      %v1681 = vsel %vm1060, %v1676, -inf
      %1682 = vmax.xlane.f32.xlu0 %v1681
      %v1683 = vpop.xlane.xlu0 %1682
      %v1684 = vsub.f32 %v1676, %v1683
      %v1685 = vmul.f32 %v1684, 1.442695
      %v1686 = vpow.pop %v1685
      %v1687 = vsel %vm1060, %v1686, 0.0
      %1688 = vadd.xlane.f32.xlu0 %v1687
      %v1689 = vpop.xlane.xlu0 %1688
      %v1690 = vrcp.pop %v1689
      %v1691 = vmul.f32 %v1686, %v1690
      %v1692 = vpack.c.bf16 %v1691, %v1691
      %1693 = vrot.lane.b32.xlu0 %v1518, 56
      %v1694 = vpop.permute.xlu0 %1693
      %v1696 = vsel %vm1060, %v1692, 0
      %v1699 = vsel %vm1124, %v1694, 0
      %1701 = vmatprep.subr.bf16.mxu0 0
      %1702 = vmatpush1.bf16.msra.mxu0 0
      %1703 = vmatprep.subr.bf16.mxu0 0
      %1704 = vmatpush1.bf16.msra.mxu0 0
      %1705 = vmatprep.subr.bf16.mxu0 0
      %1706 = vmatpush1.bf16.msra.mxu0 0
      %1707 = vmatprep.subr.bf16.mxu0 0
      %1708 = vmatpush1.bf16.msra.mxu0 0
      %1709 = vmatprep.subr.bf16.mxu0 0
      %1710 = vmatpush1.bf16.msra.mxu0 0
      %1711 = vmatprep.subr.bf16.mxu0 0
      %1712 = vmatpush1.bf16.msra.mxu0 0
      %1713 = vmatprep.subr.bf16.mxu0 0
      %1714 = vmatpush1.bf16.msra.mxu0 0
      %1715 = vmatprep.subr.bf16.mxu0 0
      %1716 = vmatpush1.bf16.msra.mxu0 %v1699
      %1717 = vmatprep.subr.bf16.mxu0 0
      %1718 = vmatpush2.bf16.msra.mxu0 0
      %1719 = vmatprep.subr.bf16.mxu0 0
      %1720 = vmatpush2.bf16.msra.mxu0 0
      %1721 = vmatprep.subr.bf16.mxu0 0
      %1722 = vmatpush2.bf16.msra.mxu0 0
      %1723 = vmatprep.subr.bf16.mxu0 0
      %1724 = vmatpush2.bf16.msra.mxu0 0
      %1725 = vmatprep.subr.bf16.mxu0 0
      %1726 = vmatpush2.bf16.msra.mxu0 0
      %1727 = vmatprep.subr.bf16.mxu0 0
      %1728 = vmatpush2.bf16.msra.mxu0 0
      %1729 = vmatprep.subr.bf16.mxu0 0
      %1730 = vmatpush2.bf16.msra.mxu0 0
      %1731 = vmatprep.subr.bf16.mxu0 0
      %1732 = vmatpush2.bf16.msra.mxu0 0
      %1733 = vmatprep.mubr.bf16.mxu0 0
      %1734 = vmatmul.mubr.bf16.gmra.mxu0 %v1696
      %v1735 = vpop.f32.mrf.mxu0
      %v1736 = vadd.f32 0.0, %v1735
      %v1737 = vpop.f32.mrf.mxu0
      %v1738 = vpop.f32.mrf.mxu0
      %v1739 = vpop.f32.mrf.mxu0
      %1740 = vdwg.mxu0
      %1741 = vrot.lane.b32.xlu0 %v1517, 112
      %v1742 = vpop.permute.xlu0 %1741
      %1743 = vrot.lane.b32.xlu0 %v1518, 80
      %v1744 = vpop.permute.xlu0 %1743
      %v1746 = vsel %vm1060, %v1742, 0
      %v1749 = vsel %vm1060, %v1744, 0
      %1751 = vmatprep.subr.bf16.mxu0 0
      %1752 = vmatpush1.bf16.xpose.msra.mxu0 0
      %1753 = vmatprep.subr.bf16.mxu0 0
      %1754 = vmatpush1.bf16.xpose.msra.mxu0 0
      %1755 = vmatprep.subr.bf16.mxu0 0
      %1756 = vmatpush1.bf16.xpose.msra.mxu0 0
      %1757 = vmatprep.subr.bf16.mxu0 0
      %1758 = vmatpush1.bf16.xpose.msra.mxu0 0
      %1759 = vmatprep.subr.bf16.mxu0 0
      %1760 = vmatpush1.bf16.xpose.msra.mxu0 0
      %1761 = vmatprep.subr.bf16.mxu0 0
      %1762 = vmatpush1.bf16.xpose.msra.mxu0 0
      %1763 = vmatprep.subr.bf16.mxu0 0
      %1764 = vmatpush1.bf16.xpose.msra.mxu0 0
      %1765 = vmatprep.subr.bf16.mxu0 0
      %1766 = vmatpush1.bf16.xpose.msra.mxu0 %v1749
      %1767 = vmatprep.subr.bf16.mxu0 0
      %1768 = vmatpush2.bf16.xpose.msra.mxu0 0
      %1769 = vmatprep.subr.bf16.mxu0 0
      %1770 = vmatpush2.bf16.xpose.msra.mxu0 0
      %1771 = vmatprep.subr.bf16.mxu0 0
      %1772 = vmatpush2.bf16.xpose.msra.mxu0 0
      %1773 = vmatprep.subr.bf16.mxu0 0
      %1774 = vmatpush2.bf16.xpose.msra.mxu0 0
      %1775 = vmatprep.subr.bf16.mxu0 0
      %1776 = vmatpush2.bf16.xpose.msra.mxu0 0
      %1777 = vmatprep.subr.bf16.mxu0 0
      %1778 = vmatpush2.bf16.xpose.msra.mxu0 0
      %1779 = vmatprep.subr.bf16.mxu0 0
      %1780 = vmatpush2.bf16.xpose.msra.mxu0 0
      %1781 = vmatprep.subr.bf16.mxu0 0
      %1782 = vmatpush2.bf16.xpose.msra.mxu0 0
      %1783 = vmatprep.mubr.bf16.mxu0 0
      %1784 = vmatmul.mubr.bf16.gmra.mxu0 %v1746
      %v1785 = vpop.f32.mrf.mxu0
      %v1786 = vadd.f32 %v1520, %v1785
      %v1787 = vpop.f32.mrf.mxu0
      %v1788 = vpop.f32.mrf.mxu0
      %v1789 = vpop.f32.mrf.mxu0
      %1790 = vdwg.mxu0
      %v1791 = vsel %vm1060, %v1786, -inf
      %1792 = vmax.xlane.f32.xlu0 %v1791
      %v1793 = vpop.xlane.xlu0 %1792
      %v1794 = vsub.f32 %v1786, %v1793
      %v1795 = vmul.f32 %v1794, 1.442695
      %v1796 = vpow.pop %v1795
      %v1797 = vsel %vm1060, %v1796, 0.0
      %1798 = vadd.xlane.f32.xlu0 %v1797
      %v1799 = vpop.xlane.xlu0 %1798
      %v1800 = vrcp.pop %v1799
      %v1801 = vmul.f32 %v1796, %v1800
      %v1802 = vpack.c.bf16 %v1801, %v1801
      %1803 = vrot.lane.b32.xlu0 %v1518, 48
      %v1804 = vpop.permute.xlu0 %1803
      %v1806 = vsel %vm1060, %v1802, 0
      %v1809 = vsel %vm1124, %v1804, 0
      %1811 = vmatprep.subr.bf16.mxu0 0
      %1812 = vmatpush1.bf16.msra.mxu0 0
      %1813 = vmatprep.subr.bf16.mxu0 0
      %1814 = vmatpush1.bf16.msra.mxu0 0
      %1815 = vmatprep.subr.bf16.mxu0 0
      %1816 = vmatpush1.bf16.msra.mxu0 0
      %1817 = vmatprep.subr.bf16.mxu0 0
      %1818 = vmatpush1.bf16.msra.mxu0 0
      %1819 = vmatprep.subr.bf16.mxu0 0
      %1820 = vmatpush1.bf16.msra.mxu0 0
      %1821 = vmatprep.subr.bf16.mxu0 0
      %1822 = vmatpush1.bf16.msra.mxu0 0
      %1823 = vmatprep.subr.bf16.mxu0 0
      %1824 = vmatpush1.bf16.msra.mxu0 0
      %1825 = vmatprep.subr.bf16.mxu0 0
      %1826 = vmatpush1.bf16.msra.mxu0 %v1809
      %1827 = vmatprep.subr.bf16.mxu0 0
      %1828 = vmatpush2.bf16.msra.mxu0 0
      %1829 = vmatprep.subr.bf16.mxu0 0
      %1830 = vmatpush2.bf16.msra.mxu0 0
      %1831 = vmatprep.subr.bf16.mxu0 0
      %1832 = vmatpush2.bf16.msra.mxu0 0
      %1833 = vmatprep.subr.bf16.mxu0 0
      %1834 = vmatpush2.bf16.msra.mxu0 0
      %1835 = vmatprep.subr.bf16.mxu0 0
      %1836 = vmatpush2.bf16.msra.mxu0 0
      %1837 = vmatprep.subr.bf16.mxu0 0
      %1838 = vmatpush2.bf16.msra.mxu0 0
      %1839 = vmatprep.subr.bf16.mxu0 0
      %1840 = vmatpush2.bf16.msra.mxu0 0
      %1841 = vmatprep.subr.bf16.mxu0 0
      %1842 = vmatpush2.bf16.msra.mxu0 0
      %1843 = vmatprep.mubr.bf16.mxu0 0
      %1844 = vmatmul.mubr.bf16.gmra.mxu0 %v1806
      %v1845 = vpop.f32.mrf.mxu0
      %v1846 = vadd.f32 0.0, %v1845
      %v1847 = vpop.f32.mrf.mxu0
      %v1848 = vpop.f32.mrf.mxu0
      %v1849 = vpop.f32.mrf.mxu0
      %1850 = vdwg.mxu0
      %1851 = vrot.lane.b32.xlu0 %v1517, 104
      %v1852 = vpop.permute.xlu0 %1851
      %1853 = vrot.lane.b32.xlu0 %v1518, 72
      %v1854 = vpop.permute.xlu0 %1853
      %v1856 = vsel %vm1060, %v1852, 0
      %v1859 = vsel %vm1060, %v1854, 0
      %1861 = vmatprep.subr.bf16.mxu0 0
      %1862 = vmatpush1.bf16.xpose.msra.mxu0 0
      %1863 = vmatprep.subr.bf16.mxu0 0
      %1864 = vmatpush1.bf16.xpose.msra.mxu0 0
      %1865 = vmatprep.subr.bf16.mxu0 0
      %1866 = vmatpush1.bf16.xpose.msra.mxu0 0
      %1867 = vmatprep.subr.bf16.mxu0 0
      %1868 = vmatpush1.bf16.xpose.msra.mxu0 0
      %1869 = vmatprep.subr.bf16.mxu0 0
      %1870 = vmatpush1.bf16.xpose.msra.mxu0 0
      %1871 = vmatprep.subr.bf16.mxu0 0
      %1872 = vmatpush1.bf16.xpose.msra.mxu0 0
      %1873 = vmatprep.subr.bf16.mxu0 0
      %1874 = vmatpush1.bf16.xpose.msra.mxu0 0
      %1875 = vmatprep.subr.bf16.mxu0 0
      %1876 = vmatpush1.bf16.xpose.msra.mxu0 %v1859
      %1877 = vmatprep.subr.bf16.mxu0 0
      %1878 = vmatpush2.bf16.xpose.msra.mxu0 0
      %1879 = vmatprep.subr.bf16.mxu0 0
      %1880 = vmatpush2.bf16.xpose.msra.mxu0 0
      %1881 = vmatprep.subr.bf16.mxu0 0
      %1882 = vmatpush2.bf16.xpose.msra.mxu0 0
      %1883 = vmatprep.subr.bf16.mxu0 0
      %1884 = vmatpush2.bf16.xpose.msra.mxu0 0
      %1885 = vmatprep.subr.bf16.mxu0 0
      %1886 = vmatpush2.bf16.xpose.msra.mxu0 0
      %1887 = vmatprep.subr.bf16.mxu0 0
      %1888 = vmatpush2.bf16.xpose.msra.mxu0 0
      %1889 = vmatprep.subr.bf16.mxu0 0
      %1890 = vmatpush2.bf16.xpose.msra.mxu0 0
      %1891 = vmatprep.subr.bf16.mxu0 0
      %1892 = vmatpush2.bf16.xpose.msra.mxu0 0
      %1893 = vmatprep.mubr.bf16.mxu0 0
      %1894 = vmatmul.mubr.bf16.gmra.mxu0 %v1856
      %v1895 = vpop.f32.mrf.mxu0
      %v1896 = vadd.f32 %v1520, %v1895
      %v1897 = vpop.f32.mrf.mxu0
      %v1898 = vpop.f32.mrf.mxu0
      %v1899 = vpop.f32.mrf.mxu0
      %1900 = vdwg.mxu0
      %v1901 = vsel %vm1060, %v1896, -inf
      %1902 = vmax.xlane.f32.xlu0 %v1901
      %v1903 = vpop.xlane.xlu0 %1902
      %v1904 = vsub.f32 %v1896, %v1903
      %v1905 = vmul.f32 %v1904, 1.442695
      %v1906 = vpow.pop %v1905
      %v1907 = vsel %vm1060, %v1906, 0.0
      %1908 = vadd.xlane.f32.xlu0 %v1907
      %v1909 = vpop.xlane.xlu0 %1908
      %v1910 = vrcp.pop %v1909
      %v1911 = vmul.f32 %v1906, %v1910
      %v1912 = vpack.c.bf16 %v1911, %v1911
      %1913 = vrot.lane.b32.xlu0 %v1518, 40
      %v1914 = vpop.permute.xlu0 %1913
      %v1916 = vsel %vm1060, %v1912, 0
      %v1919 = vsel %vm1124, %v1914, 0
      %1921 = vmatprep.subr.bf16.mxu0 0
      %1922 = vmatpush1.bf16.msra.mxu0 0
      %1923 = vmatprep.subr.bf16.mxu0 0
      %1924 = vmatpush1.bf16.msra.mxu0 0
      %1925 = vmatprep.subr.bf16.mxu0 0
      %1926 = vmatpush1.bf16.msra.mxu0 0
      %1927 = vmatprep.subr.bf16.mxu0 0
      %1928 = vmatpush1.bf16.msra.mxu0 0
      %1929 = vmatprep.subr.bf16.mxu0 0
      %1930 = vmatpush1.bf16.msra.mxu0 0
      %1931 = vmatprep.subr.bf16.mxu0 0
      %1932 = vmatpush1.bf16.msra.mxu0 0
      %1933 = vmatprep.subr.bf16.mxu0 0
      %1934 = vmatpush1.bf16.msra.mxu0 0
      %1935 = vmatprep.subr.bf16.mxu0 0
      %1936 = vmatpush1.bf16.msra.mxu0 %v1919
      %1937 = vmatprep.subr.bf16.mxu0 0
      %1938 = vmatpush2.bf16.msra.mxu0 0
      %1939 = vmatprep.subr.bf16.mxu0 0
      %1940 = vmatpush2.bf16.msra.mxu0 0
      %1941 = vmatprep.subr.bf16.mxu0 0
      %1942 = vmatpush2.bf16.msra.mxu0 0
      %1943 = vmatprep.subr.bf16.mxu0 0
      %1944 = vmatpush2.bf16.msra.mxu0 0
      %1945 = vmatprep.subr.bf16.mxu0 0
      %1946 = vmatpush2.bf16.msra.mxu0 0
      %1947 = vmatprep.subr.bf16.mxu0 0
      %1948 = vmatpush2.bf16.msra.mxu0 0
      %1949 = vmatprep.subr.bf16.mxu0 0
      %1950 = vmatpush2.bf16.msra.mxu0 0
      %1951 = vmatprep.subr.bf16.mxu0 0
      %1952 = vmatpush2.bf16.msra.mxu0 0
      %1953 = vmatprep.mubr.bf16.mxu0 0
      %1954 = vmatmul.mubr.bf16.gmra.mxu0 %v1916
      %v1955 = vpop.f32.mrf.mxu0
      %v1956 = vadd.f32 0.0, %v1955
      %v1957 = vpop.f32.mrf.mxu0
      %v1958 = vpop.f32.mrf.mxu0
      %v1959 = vpop.f32.mrf.mxu0
      %1960 = vdwg.mxu0
      %1962 = vrot.lane.b32.xlu0 %v1736, 8
      %v1963 = vpop.permute.xlu0 %1962
      %1966 = vrot.lane.b32.xlu0 %v1846, 16
      %v1967 = vpop.permute.xlu0 %1966
      %1970 = vrot.lane.b32.xlu0 %v1956, 24
      %v1971 = vpop.permute.xlu0 %1970
      %v1973 = vsel %vm1060, %v1625, %v1963
      %v1974 = vsel %vm1512, %v1973, %v1967
      %v1975 = vsel %vm1514, %v1974, %v1971
      %v1976 = vpack.c.bf16 %v1975, %v1515
      %v1978 = vlaneseq
      %v1979 = vshrl.u32 %v1978, 7
      %v1980 = vsub.s32 0, %v1979
      %v1981 = vrot.slane %v1052, %v1980
      %v1987 = vunpack.c.l.b16 %v1048
      %v1988 = vunpack.c.l.b16 %v1049
      %v1989 = vunpack.c.l.b16 %v1050
      %v1990 = vunpack.c.l.b16 %v1051
      %v1991 = vpack.c.b16 %v1988, %v1987
      %v1992 = vpack.c.b16 %v1990, %v1989
      %v1996 = vsel %vm1003, %v1976, 0
      %1998 = vmatprep.subr.bf16.mxu0 0
      %1999 = vmatpush1.bf16.msra.mxu0 0
      %2000 = vmatprep.subr.bf16.mxu0 0
      %2001 = vmatpush1.bf16.msra.mxu0 0
      %2002 = vmatprep.subr.bf16.mxu0 0
      %2003 = vmatpush1.bf16.msra.mxu0 0
      %2004 = vmatprep.subr.bf16.mxu0 0
      %2005 = vmatpush1.bf16.msra.mxu0 0
      %2006 = vmatprep.subr.bf16.mxu0 0
      %2007 = vmatpush1.bf16.msra.mxu0 0
      %2008 = vmatprep.subr.bf16.mxu0 0
      %2009 = vmatpush1.bf16.msra.mxu0 0
      %2010 = vmatprep.subr.bf16.mxu0 0
      %2011 = vmatpush1.bf16.msra.mxu0 %v1992
      %2012 = vmatprep.subr.bf16.mxu0 0
      %2013 = vmatpush1.bf16.msra.mxu0 %v1991
      %2014 = vmatprep.subr.bf16.mxu0 0
      %2015 = vmatpush2.bf16.msra.mxu0 0
      %2016 = vmatprep.subr.bf16.mxu0 0
      %2017 = vmatpush2.bf16.msra.mxu0 0
      %2018 = vmatprep.subr.bf16.mxu0 0
      %2019 = vmatpush2.bf16.msra.mxu0 0
      %2020 = vmatprep.subr.bf16.mxu0 0
      %2021 = vmatpush2.bf16.msra.mxu0 0
      %2022 = vmatprep.subr.bf16.mxu0 0
      %2023 = vmatpush2.bf16.msra.mxu0 0
      %2024 = vmatprep.subr.bf16.mxu0 0
      %2025 = vmatpush2.bf16.msra.mxu0 0
      %2026 = vmatprep.subr.bf16.mxu0 0
      %2027 = vmatpush2.bf16.msra.mxu0 0
      %2028 = vmatprep.subr.bf16.mxu0 0
      %2029 = vmatpush2.bf16.msra.mxu0 0
      %2030 = vmatprep.mubr.bf16.mxu0 0
      %2031 = vmatmul.mubr.bf16.gmra.mxu0 %v1996
      %v2032 = vpop.f32.mrf.mxu0
      %v2033 = vadd.f32 %v1981, %v2032
      %v2034 = vpop.f32.mrf.mxu0
      %v2035 = vpop.f32.mrf.mxu0
      %v2036 = vadd.f32 %v1981, %v2035
      %v2037 = vpop.f32.mrf.mxu0
      %2038 = vdwg.mxu0
      %v2039 = vadd.f32 %v973, %v2033
      %v2040 = vadd.f32 %v974, %v2036
      %v2041 = vsel %vm1003, %v2039, 0.0
      %2042 = vadd.xlane.f32.xlu0 %v2041
      %v2043 = vpop.xlane.xlu0 %2042
      %v2044 = vsel %vm1003, %v2040, 0.0
      %2045 = vadd.xlane.f32.xlu0 %v2044
      %v2046 = vpop.xlane.xlu0 %2045
      %v2047 = vrcp.pop 32.0
      %v2048 = vmul.f32 %v2043, %v2047
      %v2049 = vmul.f32 %v2046, %v2047
      %v2050 = vsub.f32 %v2039, %v2048
      %v2051 = vsub.f32 %v2040, %v2049
      %v2052 = vmul.f32 %v2050, %v2050
      %v2053 = vmul.f32 %v2051, %v2051
      %v2054 = vsel %vm1003, %v2052, 0.0
      %2055 = vadd.xlane.f32.xlu0 %v2054
      %v2056 = vpop.xlane.xlu0 %2055
      %v2057 = vsel %vm1003, %v2053, 0.0
      %2058 = vadd.xlane.f32.xlu0 %v2057
      %v2059 = vpop.xlane.xlu0 %2058
      %v2060 = vmul.f32 %v2056, %v2047
      %v2061 = vmul.f32 %v2059, %v2047
      %v2062 = vadd.f32 %v2060, 1e-05
      %v2063 = vadd.f32 %v2061, 1e-05
      %v2064 = vrsqrt.pop %v2062
      %v2065 = vrsqrt.pop %v2063
      %v2066 = vmul.f32 %v2050, %v2064
      %v2067 = vmul.f32 %v2051, %v2065
      %v2068 = vlaneseq
      %v2069 = vshrl.u32 %v2068, 7
      %v2070 = vsub.s32 0, %v2069
      %v2071 = vrot.slane %v977, %v2070
      %v2072 = vmul.f32 %v2066, %v2071
      %v2073 = vmul.f32 %v2067, %v2071
      %v2074 = vlaneseq
      %v2075 = vshrl.u32 %v2074, 7
      %v2076 = vsub.s32 0, %v2075
      %v2077 = vrot.slane %v978, %v2076
      %v2078 = vadd.f32 %v2072, %v2077
      %v2079 = vadd.f32 %v2073, %v2077
      %v2080 = vpack.c.bf16 %v2079, %v2078
      %v2081 = vld [vmem:[%s823] sm:$0xf]
      %v2082 = vld [vmem:[%s823 + $0x4] sm:$0xf]
      %v2083 = vld [vmem:[%s823 + $0x8] sm:$0xf]
      %v2084 = vld [vmem:[%s823 + $0xc] sm:$0xf]
      %v2085 = vld [vmem:[%s826] sm:$0x1]
      %v2087 = vlaneseq
      %v2088 = vshrl.u32 %v2087, 7
      %v2089 = vsub.s32 0, %v2088
      %v2090 = vrot.slane %v2085, %v2089
      %v2096 = vunpack.c.l.b16 %v2081
      %v2097 = vunpack.c.l.b16 %v2082
      %v2098 = vunpack.c.l.b16 %v2083
      %v2099 = vunpack.c.l.b16 %v2084
      %v2100 = vpack.c.b16 %v2097, %v2096
      %v2101 = vpack.c.b16 %v2099, %v2098
      %v2105 = vsel %vm1003, %v2080, 0
      %2107 = vmatprep.subr.bf16.mxu0 0
      %2108 = vmatpush1.bf16.msra.mxu0 0
      %2109 = vmatprep.subr.bf16.mxu0 0
      %2110 = vmatpush1.bf16.msra.mxu0 0
      %2111 = vmatprep.subr.bf16.mxu0 0
      %2112 = vmatpush1.bf16.msra.mxu0 0
      %2113 = vmatprep.subr.bf16.mxu0 0
      %2114 = vmatpush1.bf16.msra.mxu0 0
      %2115 = vmatprep.subr.bf16.mxu0 0
      %2116 = vmatpush1.bf16.msra.mxu0 0
      %2117 = vmatprep.subr.bf16.mxu0 0
      %2118 = vmatpush1.bf16.msra.mxu0 0
      %2119 = vmatprep.subr.bf16.mxu0 0
      %2120 = vmatpush1.bf16.msra.mxu0 %v2101
      %2121 = vmatprep.subr.bf16.mxu0 0
      %2122 = vmatpush1.bf16.msra.mxu0 %v2100
      %2123 = vmatprep.subr.bf16.mxu0 0
      %2124 = vmatpush2.bf16.msra.mxu0 0
      %2125 = vmatprep.subr.bf16.mxu0 0
      %2126 = vmatpush2.bf16.msra.mxu0 0
      %2127 = vmatprep.subr.bf16.mxu0 0
      %2128 = vmatpush2.bf16.msra.mxu0 0
      %2129 = vmatprep.subr.bf16.mxu0 0
      %2130 = vmatpush2.bf16.msra.mxu0 0
      %2131 = vmatprep.subr.bf16.mxu0 0
      %2132 = vmatpush2.bf16.msra.mxu0 0
      %2133 = vmatprep.subr.bf16.mxu0 0
      %2134 = vmatpush2.bf16.msra.mxu0 0
      %2135 = vmatprep.subr.bf16.mxu0 0
      %2136 = vmatpush2.bf16.msra.mxu0 0
      %2137 = vmatprep.subr.bf16.mxu0 0
      %2138 = vmatpush2.bf16.msra.mxu0 0
      %2139 = vmatprep.mubr.bf16.mxu0 0
      %2140 = vmatmul.mubr.bf16.gmra.mxu0 %v2105
      %v2141 = vpop.f32.mrf.mxu0
      %v2142 = vadd.f32 %v2090, %v2141
      %v2143 = vpop.f32.mrf.mxu0
      %v2144 = vpop.f32.mrf.mxu0
      %v2145 = vadd.f32 %v2090, %v2144
      %v2146 = vpop.f32.mrf.mxu0
      %2147 = vdwg.mxu0
      %v2148 = vld [vmem:[%s831] sm:$0xf]
      %v2149 = vld [vmem:[%s831 + $0x4] sm:$0xf]
      %v2150 = vld [vmem:[%s831 + $0x8] sm:$0xf]
      %v2151 = vld [vmem:[%s831 + $0xc] sm:$0xf]
      %v2152 = vld [vmem:[%s834] sm:$0x1]
      %v2154 = vlaneseq
      %v2155 = vshrl.u32 %v2154, 7
      %v2156 = vsub.s32 0, %v2155
      %v2157 = vrot.slane %v2152, %v2156
      %v2161 = vunpack.c.l.b16 %v975
      %v2162 = vunpack.c.l.b16 %v976
      %v2163 = vpack.c.b16 %v2162, %v2161
      %v2168 = vunpack.c.l.b16 %v2148
      %v2169 = vunpack.c.l.b16 %v2149
      %v2170 = vunpack.c.l.b16 %v2150
      %v2171 = vunpack.c.l.b16 %v2151
      %v2172 = vpack.c.b16 %v2169, %v2168
      %v2173 = vpack.c.b16 %v2171, %v2170
      %v2177 = vsel %vm1003, %v2163, 0
      %2179 = vmatprep.subr.bf16.mxu0 0
      %2180 = vmatpush1.bf16.msra.mxu0 0
      %2181 = vmatprep.subr.bf16.mxu0 0
      %2182 = vmatpush1.bf16.msra.mxu0 0
      %2183 = vmatprep.subr.bf16.mxu0 0
      %2184 = vmatpush1.bf16.msra.mxu0 0
      %2185 = vmatprep.subr.bf16.mxu0 0
      %2186 = vmatpush1.bf16.msra.mxu0 0
      %2187 = vmatprep.subr.bf16.mxu0 0
      %2188 = vmatpush1.bf16.msra.mxu0 0
      %2189 = vmatprep.subr.bf16.mxu0 0
      %2190 = vmatpush1.bf16.msra.mxu0 0
      %2191 = vmatprep.subr.bf16.mxu0 0
      %2192 = vmatpush1.bf16.msra.mxu0 %v2173
      %2193 = vmatprep.subr.bf16.mxu0 0
      %2194 = vmatpush1.bf16.msra.mxu0 %v2172
      %2195 = vmatprep.subr.bf16.mxu0 0
      %2196 = vmatpush2.bf16.msra.mxu0 0
      %2197 = vmatprep.subr.bf16.mxu0 0
      %2198 = vmatpush2.bf16.msra.mxu0 0
      %2199 = vmatprep.subr.bf16.mxu0 0
      %2200 = vmatpush2.bf16.msra.mxu0 0
      %2201 = vmatprep.subr.bf16.mxu0 0
      %2202 = vmatpush2.bf16.msra.mxu0 0
      %2203 = vmatprep.subr.bf16.mxu0 0
      %2204 = vmatpush2.bf16.msra.mxu0 0
      %2205 = vmatprep.subr.bf16.mxu0 0
      %2206 = vmatpush2.bf16.msra.mxu0 0
      %2207 = vmatprep.subr.bf16.mxu0 0
      %2208 = vmatpush2.bf16.msra.mxu0 0
      %2209 = vmatprep.subr.bf16.mxu0 0
      %2210 = vmatpush2.bf16.msra.mxu0 0
      %2211 = vmatprep.mubr.bf16.mxu0 0
      %2212 = vmatmul.mubr.bf16.gmra.mxu0 %v2177
      %v2213 = vpop.f32.mrf.mxu0
      %v2214 = vadd.f32 %v2157, %v2213
      %v2215 = vpop.f32.mrf.mxu0
      %v2216 = vpop.f32.mrf.mxu0
      %v2217 = vadd.f32 %v2157, %v2216
      %v2218 = vpop.f32.mrf.mxu0
      %2219 = vdwg.mxu0
      %v2220 = vld [vmem:[%s839] sm:$0xf]
      %v2221 = vld [vmem:[%s839 + $0x4] sm:$0xf]
      %v2222 = vld [vmem:[%s839 + $0x8] sm:$0xf]
      %v2223 = vld [vmem:[%s839 + $0xc] sm:$0xf]
      %v2224 = vld [vmem:[%s842] sm:$0x1]
      %v2225 = vmul.f32 %v2142, 0.35355338
      %v2226 = vpack.c.bf16 %v2225, %v2225
      %v2227 = vpack.c.bf16 %v2214, %v2214
      %v2228 = vld [vmem:[#allocation3] sm:$0xff]
      %v2230 = vsel %vm1060, %v2226, 0
      %v2233 = vsel %vm1060, %v2227, 0
      %2235 = vmatprep.subr.bf16.mxu0 0
      %2236 = vmatpush1.bf16.xpose.msra.mxu0 0
      %2237 = vmatprep.subr.bf16.mxu0 0
      %2238 = vmatpush1.bf16.xpose.msra.mxu0 0
      %2239 = vmatprep.subr.bf16.mxu0 0
      %2240 = vmatpush1.bf16.xpose.msra.mxu0 0
      %2241 = vmatprep.subr.bf16.mxu0 0
      %2242 = vmatpush1.bf16.xpose.msra.mxu0 0
      %2243 = vmatprep.subr.bf16.mxu0 0
      %2244 = vmatpush1.bf16.xpose.msra.mxu0 0
      %2245 = vmatprep.subr.bf16.mxu0 0
      %2246 = vmatpush1.bf16.xpose.msra.mxu0 0
      %2247 = vmatprep.subr.bf16.mxu0 0
      %2248 = vmatpush1.bf16.xpose.msra.mxu0 0
      %2249 = vmatprep.subr.bf16.mxu0 0
      %2250 = vmatpush1.bf16.xpose.msra.mxu0 %v2233
      %2251 = vmatprep.subr.bf16.mxu0 0
      %2252 = vmatpush2.bf16.xpose.msra.mxu0 0
      %2253 = vmatprep.subr.bf16.mxu0 0
      %2254 = vmatpush2.bf16.xpose.msra.mxu0 0
      %2255 = vmatprep.subr.bf16.mxu0 0
      %2256 = vmatpush2.bf16.xpose.msra.mxu0 0
      %2257 = vmatprep.subr.bf16.mxu0 0
      %2258 = vmatpush2.bf16.xpose.msra.mxu0 0
      %2259 = vmatprep.subr.bf16.mxu0 0
      %2260 = vmatpush2.bf16.xpose.msra.mxu0 0
      %2261 = vmatprep.subr.bf16.mxu0 0
      %2262 = vmatpush2.bf16.xpose.msra.mxu0 0
      %2263 = vmatprep.subr.bf16.mxu0 0
      %2264 = vmatpush2.bf16.xpose.msra.mxu0 0
      %2265 = vmatprep.subr.bf16.mxu0 0
      %2266 = vmatpush2.bf16.xpose.msra.mxu0 0
      %2267 = vmatprep.mubr.bf16.mxu0 0
      %2268 = vmatmul.mubr.bf16.gmra.mxu0 %v2230
      %v2269 = vpop.f32.mrf.mxu0
      %v2270 = vadd.f32 %v2228, %v2269
      %v2271 = vpop.f32.mrf.mxu0
      %v2272 = vpop.f32.mrf.mxu0
      %v2273 = vpop.f32.mrf.mxu0
      %2274 = vdwg.mxu0
      %v2275 = vsel %vm1060, %v2270, -inf
      %2276 = vmax.xlane.f32.xlu0 %v2275
      %v2277 = vpop.xlane.xlu0 %2276
      %v2278 = vsub.f32 %v2270, %v2277
      %v2279 = vmul.f32 %v2278, 1.442695
      %v2280 = vpow.pop %v2279
      %v2281 = vsel %vm1060, %v2280, 0.0
      %2282 = vadd.xlane.f32.xlu0 %v2281
      %v2283 = vpop.xlane.xlu0 %2282
      %v2284 = vrcp.pop %v2283
      %v2285 = vmul.f32 %v2280, %v2284
      %v2286 = vpack.c.bf16 %v2285, %v2285
      %2288 = vrot.lane.b32.xlu0 %v2227, 96
      %v2289 = vpop.permute.xlu0 %2288
      %v2291 = vsel %vm1060, %v2286, 0
      %v2294 = vsel %vm1124, %v2289, 0
      %2296 = vmatprep.subr.bf16.mxu0 0
      %2297 = vmatpush1.bf16.msra.mxu0 0
      %2298 = vmatprep.subr.bf16.mxu0 0
      %2299 = vmatpush1.bf16.msra.mxu0 0
      %2300 = vmatprep.subr.bf16.mxu0 0
      %2301 = vmatpush1.bf16.msra.mxu0 0
      %2302 = vmatprep.subr.bf16.mxu0 0
      %2303 = vmatpush1.bf16.msra.mxu0 0
      %2304 = vmatprep.subr.bf16.mxu0 0
      %2305 = vmatpush1.bf16.msra.mxu0 0
      %2306 = vmatprep.subr.bf16.mxu0 0
      %2307 = vmatpush1.bf16.msra.mxu0 0
      %2308 = vmatprep.subr.bf16.mxu0 0
      %2309 = vmatpush1.bf16.msra.mxu0 0
      %2310 = vmatprep.subr.bf16.mxu0 0
      %2311 = vmatpush1.bf16.msra.mxu0 %v2294
      %2312 = vmatprep.subr.bf16.mxu0 0
      %2313 = vmatpush2.bf16.msra.mxu0 0
      %2314 = vmatprep.subr.bf16.mxu0 0
      %2315 = vmatpush2.bf16.msra.mxu0 0
      %2316 = vmatprep.subr.bf16.mxu0 0
      %2317 = vmatpush2.bf16.msra.mxu0 0
      %2318 = vmatprep.subr.bf16.mxu0 0
      %2319 = vmatpush2.bf16.msra.mxu0 0
      %2320 = vmatprep.subr.bf16.mxu0 0
      %2321 = vmatpush2.bf16.msra.mxu0 0
      %2322 = vmatprep.subr.bf16.mxu0 0
      %2323 = vmatpush2.bf16.msra.mxu0 0
      %2324 = vmatprep.subr.bf16.mxu0 0
      %2325 = vmatpush2.bf16.msra.mxu0 0
      %2326 = vmatprep.subr.bf16.mxu0 0
      %2327 = vmatpush2.bf16.msra.mxu0 0
      %2328 = vmatprep.mubr.bf16.mxu0 0
      %2329 = vmatmul.mubr.bf16.gmra.mxu0 %v2291
      %v2330 = vpop.f32.mrf.mxu0
      %v2331 = vadd.f32 0.0, %v2330
      %v2332 = vpop.f32.mrf.mxu0
      %v2333 = vpop.f32.mrf.mxu0
      %v2334 = vpop.f32.mrf.mxu0
      %2335 = vdwg.mxu0
      %2337 = vrot.lane.b32.xlu0 %v2226, 120
      %v2338 = vpop.permute.xlu0 %2337
      %2339 = vrot.lane.b32.xlu0 %v2227, 120
      %v2340 = vpop.permute.xlu0 %2339
      %v2342 = vsel %vm1060, %v2338, 0
      %v2345 = vsel %vm1060, %v2340, 0
      %2347 = vmatprep.subr.bf16.mxu0 0
      %2348 = vmatpush1.bf16.xpose.msra.mxu0 0
      %2349 = vmatprep.subr.bf16.mxu0 0
      %2350 = vmatpush1.bf16.xpose.msra.mxu0 0
      %2351 = vmatprep.subr.bf16.mxu0 0
      %2352 = vmatpush1.bf16.xpose.msra.mxu0 0
      %2353 = vmatprep.subr.bf16.mxu0 0
      %2354 = vmatpush1.bf16.xpose.msra.mxu0 0
      %2355 = vmatprep.subr.bf16.mxu0 0
      %2356 = vmatpush1.bf16.xpose.msra.mxu0 0
      %2357 = vmatprep.subr.bf16.mxu0 0
      %2358 = vmatpush1.bf16.xpose.msra.mxu0 0
      %2359 = vmatprep.subr.bf16.mxu0 0
      %2360 = vmatpush1.bf16.xpose.msra.mxu0 0
      %2361 = vmatprep.subr.bf16.mxu0 0
      %2362 = vmatpush1.bf16.xpose.msra.mxu0 %v2345
      %2363 = vmatprep.subr.bf16.mxu0 0
      %2364 = vmatpush2.bf16.xpose.msra.mxu0 0
      %2365 = vmatprep.subr.bf16.mxu0 0
      %2366 = vmatpush2.bf16.xpose.msra.mxu0 0
      %2367 = vmatprep.subr.bf16.mxu0 0
      %2368 = vmatpush2.bf16.xpose.msra.mxu0 0
      %2369 = vmatprep.subr.bf16.mxu0 0
      %2370 = vmatpush2.bf16.xpose.msra.mxu0 0
      %2371 = vmatprep.subr.bf16.mxu0 0
      %2372 = vmatpush2.bf16.xpose.msra.mxu0 0
      %2373 = vmatprep.subr.bf16.mxu0 0
      %2374 = vmatpush2.bf16.xpose.msra.mxu0 0
      %2375 = vmatprep.subr.bf16.mxu0 0
      %2376 = vmatpush2.bf16.xpose.msra.mxu0 0
      %2377 = vmatprep.subr.bf16.mxu0 0
      %2378 = vmatpush2.bf16.xpose.msra.mxu0 0
      %2379 = vmatprep.mubr.bf16.mxu0 0
      %2380 = vmatmul.mubr.bf16.gmra.mxu0 %v2342
      %v2381 = vpop.f32.mrf.mxu0
      %v2382 = vadd.f32 %v2228, %v2381
      %v2383 = vpop.f32.mrf.mxu0
      %v2384 = vpop.f32.mrf.mxu0
      %v2385 = vpop.f32.mrf.mxu0
      %2386 = vdwg.mxu0
      %v2387 = vsel %vm1060, %v2382, -inf
      %2388 = vmax.xlane.f32.xlu0 %v2387
      %v2389 = vpop.xlane.xlu0 %2388
      %v2390 = vsub.f32 %v2382, %v2389
      %v2391 = vmul.f32 %v2390, 1.442695
      %v2392 = vpow.pop %v2391
      %v2393 = vsel %vm1060, %v2392, 0.0
      %2394 = vadd.xlane.f32.xlu0 %v2393
      %v2395 = vpop.xlane.xlu0 %2394
      %v2396 = vrcp.pop %v2395
      %v2397 = vmul.f32 %v2392, %v2396
      %v2398 = vpack.c.bf16 %v2397, %v2397
      %2399 = vrot.lane.b32.xlu0 %v2227, 88
      %v2400 = vpop.permute.xlu0 %2399
      %v2402 = vsel %vm1060, %v2398, 0
      %v2405 = vsel %vm1124, %v2400, 0
      %2407 = vmatprep.subr.bf16.mxu0 0
      %2408 = vmatpush1.bf16.msra.mxu0 0
      %2409 = vmatprep.subr.bf16.mxu0 0
      %2410 = vmatpush1.bf16.msra.mxu0 0
      %2411 = vmatprep.subr.bf16.mxu0 0
      %2412 = vmatpush1.bf16.msra.mxu0 0
      %2413 = vmatprep.subr.bf16.mxu0 0
      %2414 = vmatpush1.bf16.msra.mxu0 0
      %2415 = vmatprep.subr.bf16.mxu0 0
      %2416 = vmatpush1.bf16.msra.mxu0 0
      %2417 = vmatprep.subr.bf16.mxu0 0
      %2418 = vmatpush1.bf16.msra.mxu0 0
      %2419 = vmatprep.subr.bf16.mxu0 0
      %2420 = vmatpush1.bf16.msra.mxu0 0
      %2421 = vmatprep.subr.bf16.mxu0 0
      %2422 = vmatpush1.bf16.msra.mxu0 %v2405
      %2423 = vmatprep.subr.bf16.mxu0 0
      %2424 = vmatpush2.bf16.msra.mxu0 0
      %2425 = vmatprep.subr.bf16.mxu0 0
      %2426 = vmatpush2.bf16.msra.mxu0 0
      %2427 = vmatprep.subr.bf16.mxu0 0
      %2428 = vmatpush2.bf16.msra.mxu0 0
      %2429 = vmatprep.subr.bf16.mxu0 0
      %2430 = vmatpush2.bf16.msra.mxu0 0
      %2431 = vmatprep.subr.bf16.mxu0 0
      %2432 = vmatpush2.bf16.msra.mxu0 0
      %2433 = vmatprep.subr.bf16.mxu0 0
      %2434 = vmatpush2.bf16.msra.mxu0 0
      %2435 = vmatprep.subr.bf16.mxu0 0
      %2436 = vmatpush2.bf16.msra.mxu0 0
      %2437 = vmatprep.subr.bf16.mxu0 0
      %2438 = vmatpush2.bf16.msra.mxu0 0
      %2439 = vmatprep.mubr.bf16.mxu0 0
      %2440 = vmatmul.mubr.bf16.gmra.mxu0 %v2402
      %v2441 = vpop.f32.mrf.mxu0
      %v2442 = vadd.f32 0.0, %v2441
      %v2443 = vpop.f32.mrf.mxu0
      %v2444 = vpop.f32.mrf.mxu0
      %v2445 = vpop.f32.mrf.mxu0
      %2446 = vdwg.mxu0
      %2447 = vrot.lane.b32.xlu0 %v2226, 112
      %v2448 = vpop.permute.xlu0 %2447
      %2449 = vrot.lane.b32.xlu0 %v2227, 112
      %v2450 = vpop.permute.xlu0 %2449
      %v2452 = vsel %vm1060, %v2448, 0
      %v2455 = vsel %vm1060, %v2450, 0
      %2457 = vmatprep.subr.bf16.mxu0 0
      %2458 = vmatpush1.bf16.xpose.msra.mxu0 0
      %2459 = vmatprep.subr.bf16.mxu0 0
      %2460 = vmatpush1.bf16.xpose.msra.mxu0 0
      %2461 = vmatprep.subr.bf16.mxu0 0
      %2462 = vmatpush1.bf16.xpose.msra.mxu0 0
      %2463 = vmatprep.subr.bf16.mxu0 0
      %2464 = vmatpush1.bf16.xpose.msra.mxu0 0
      %2465 = vmatprep.subr.bf16.mxu0 0
      %2466 = vmatpush1.bf16.xpose.msra.mxu0 0
      %2467 = vmatprep.subr.bf16.mxu0 0
      %2468 = vmatpush1.bf16.xpose.msra.mxu0 0
      %2469 = vmatprep.subr.bf16.mxu0 0
      %2470 = vmatpush1.bf16.xpose.msra.mxu0 0
      %2471 = vmatprep.subr.bf16.mxu0 0
      %2472 = vmatpush1.bf16.xpose.msra.mxu0 %v2455
      %2473 = vmatprep.subr.bf16.mxu0 0
      %2474 = vmatpush2.bf16.xpose.msra.mxu0 0
      %2475 = vmatprep.subr.bf16.mxu0 0
      %2476 = vmatpush2.bf16.xpose.msra.mxu0 0
      %2477 = vmatprep.subr.bf16.mxu0 0
      %2478 = vmatpush2.bf16.xpose.msra.mxu0 0
      %2479 = vmatprep.subr.bf16.mxu0 0
      %2480 = vmatpush2.bf16.xpose.msra.mxu0 0
      %2481 = vmatprep.subr.bf16.mxu0 0
      %2482 = vmatpush2.bf16.xpose.msra.mxu0 0
      %2483 = vmatprep.subr.bf16.mxu0 0
      %2484 = vmatpush2.bf16.xpose.msra.mxu0 0
      %2485 = vmatprep.subr.bf16.mxu0 0
      %2486 = vmatpush2.bf16.xpose.msra.mxu0 0
      %2487 = vmatprep.subr.bf16.mxu0 0
      %2488 = vmatpush2.bf16.xpose.msra.mxu0 0
      %2489 = vmatprep.mubr.bf16.mxu0 0
      %2490 = vmatmul.mubr.bf16.gmra.mxu0 %v2452
      %v2491 = vpop.f32.mrf.mxu0
      %v2492 = vadd.f32 %v2228, %v2491
      %v2493 = vpop.f32.mrf.mxu0
      %v2494 = vpop.f32.mrf.mxu0
      %v2495 = vpop.f32.mrf.mxu0
      %2496 = vdwg.mxu0
      %v2497 = vsel %vm1060, %v2492, -inf
      %2498 = vmax.xlane.f32.xlu0 %v2497
      %v2499 = vpop.xlane.xlu0 %2498
      %v2500 = vsub.f32 %v2492, %v2499
      %v2501 = vmul.f32 %v2500, 1.442695
      %v2502 = vpow.pop %v2501
      %v2503 = vsel %vm1060, %v2502, 0.0
      %2504 = vadd.xlane.f32.xlu0 %v2503
      %v2505 = vpop.xlane.xlu0 %2504
      %v2506 = vrcp.pop %v2505
      %v2507 = vmul.f32 %v2502, %v2506
      %v2508 = vpack.c.bf16 %v2507, %v2507
      %2509 = vrot.lane.b32.xlu0 %v2227, 80
      %v2510 = vpop.permute.xlu0 %2509
      %v2512 = vsel %vm1060, %v2508, 0
      %v2515 = vsel %vm1124, %v2510, 0
      %2517 = vmatprep.subr.bf16.mxu0 0
      %2518 = vmatpush1.bf16.msra.mxu0 0
      %2519 = vmatprep.subr.bf16.mxu0 0
      %2520 = vmatpush1.bf16.msra.mxu0 0
      %2521 = vmatprep.subr.bf16.mxu0 0
      %2522 = vmatpush1.bf16.msra.mxu0 0
      %2523 = vmatprep.subr.bf16.mxu0 0
      %2524 = vmatpush1.bf16.msra.mxu0 0
      %2525 = vmatprep.subr.bf16.mxu0 0
      %2526 = vmatpush1.bf16.msra.mxu0 0
      %2527 = vmatprep.subr.bf16.mxu0 0
      %2528 = vmatpush1.bf16.msra.mxu0 0
      %2529 = vmatprep.subr.bf16.mxu0 0
      %2530 = vmatpush1.bf16.msra.mxu0 0
      %2531 = vmatprep.subr.bf16.mxu0 0
      %2532 = vmatpush1.bf16.msra.mxu0 %v2515
      %2533 = vmatprep.subr.bf16.mxu0 0
      %2534 = vmatpush2.bf16.msra.mxu0 0
      %2535 = vmatprep.subr.bf16.mxu0 0
      %2536 = vmatpush2.bf16.msra.mxu0 0
      %2537 = vmatprep.subr.bf16.mxu0 0
      %2538 = vmatpush2.bf16.msra.mxu0 0
      %2539 = vmatprep.subr.bf16.mxu0 0
      %2540 = vmatpush2.bf16.msra.mxu0 0
      %2541 = vmatprep.subr.bf16.mxu0 0
      %2542 = vmatpush2.bf16.msra.mxu0 0
      %2543 = vmatprep.subr.bf16.mxu0 0
      %2544 = vmatpush2.bf16.msra.mxu0 0
      %2545 = vmatprep.subr.bf16.mxu0 0
      %2546 = vmatpush2.bf16.msra.mxu0 0
      %2547 = vmatprep.subr.bf16.mxu0 0
      %2548 = vmatpush2.bf16.msra.mxu0 0
      %2549 = vmatprep.mubr.bf16.mxu0 0
      %2550 = vmatmul.mubr.bf16.gmra.mxu0 %v2512
      %v2551 = vpop.f32.mrf.mxu0
      %v2552 = vadd.f32 0.0, %v2551
      %v2553 = vpop.f32.mrf.mxu0
      %v2554 = vpop.f32.mrf.mxu0
      %v2555 = vpop.f32.mrf.mxu0
      %2556 = vdwg.mxu0
      %2557 = vrot.lane.b32.xlu0 %v2226, 104
      %v2558 = vpop.permute.xlu0 %2557
      %2559 = vrot.lane.b32.xlu0 %v2227, 104
      %v2560 = vpop.permute.xlu0 %2559
      %v2562 = vsel %vm1060, %v2558, 0
      %v2565 = vsel %vm1060, %v2560, 0
      %2567 = vmatprep.subr.bf16.mxu0 0
      %2568 = vmatpush1.bf16.xpose.msra.mxu0 0
      %2569 = vmatprep.subr.bf16.mxu0 0
      %2570 = vmatpush1.bf16.xpose.msra.mxu0 0
      %2571 = vmatprep.subr.bf16.mxu0 0
      %2572 = vmatpush1.bf16.xpose.msra.mxu0 0
      %2573 = vmatprep.subr.bf16.mxu0 0
      %2574 = vmatpush1.bf16.xpose.msra.mxu0 0
      %2575 = vmatprep.subr.bf16.mxu0 0
      %2576 = vmatpush1.bf16.xpose.msra.mxu0 0
      %2577 = vmatprep.subr.bf16.mxu0 0
      %2578 = vmatpush1.bf16.xpose.msra.mxu0 0
      %2579 = vmatprep.subr.bf16.mxu0 0
      %2580 = vmatpush1.bf16.xpose.msra.mxu0 0
      %2581 = vmatprep.subr.bf16.mxu0 0
      %2582 = vmatpush1.bf16.xpose.msra.mxu0 %v2565
      %2583 = vmatprep.subr.bf16.mxu0 0
      %2584 = vmatpush2.bf16.xpose.msra.mxu0 0
      %2585 = vmatprep.subr.bf16.mxu0 0
      %2586 = vmatpush2.bf16.xpose.msra.mxu0 0
      %2587 = vmatprep.subr.bf16.mxu0 0
      %2588 = vmatpush2.bf16.xpose.msra.mxu0 0
      %2589 = vmatprep.subr.bf16.mxu0 0
      %2590 = vmatpush2.bf16.xpose.msra.mxu0 0
      %2591 = vmatprep.subr.bf16.mxu0 0
      %2592 = vmatpush2.bf16.xpose.msra.mxu0 0
      %2593 = vmatprep.subr.bf16.mxu0 0
      %2594 = vmatpush2.bf16.xpose.msra.mxu0 0
      %2595 = vmatprep.subr.bf16.mxu0 0
      %2596 = vmatpush2.bf16.xpose.msra.mxu0 0
      %2597 = vmatprep.subr.bf16.mxu0 0
      %2598 = vmatpush2.bf16.xpose.msra.mxu0 0
      %2599 = vmatprep.mubr.bf16.mxu0 0
      %2600 = vmatmul.mubr.bf16.gmra.mxu0 %v2562
      %v2601 = vpop.f32.mrf.mxu0
      %v2602 = vadd.f32 %v2228, %v2601
      %v2603 = vpop.f32.mrf.mxu0
      %v2604 = vpop.f32.mrf.mxu0
      %v2605 = vpop.f32.mrf.mxu0
      %2606 = vdwg.mxu0
      %v2607 = vsel %vm1060, %v2602, -inf
      %2608 = vmax.xlane.f32.xlu0 %v2607
      %v2609 = vpop.xlane.xlu0 %2608
      %v2610 = vsub.f32 %v2602, %v2609
      %v2611 = vmul.f32 %v2610, 1.442695
      %v2612 = vpow.pop %v2611
      %v2613 = vsel %vm1060, %v2612, 0.0
      %2614 = vadd.xlane.f32.xlu0 %v2613
      %v2615 = vpop.xlane.xlu0 %2614
      %v2616 = vrcp.pop %v2615
      %v2617 = vmul.f32 %v2612, %v2616
      %v2618 = vpack.c.bf16 %v2617, %v2617
      %2619 = vrot.lane.b32.xlu0 %v2227, 72
      %v2620 = vpop.permute.xlu0 %2619
      %v2622 = vsel %vm1060, %v2618, 0
      %v2625 = vsel %vm1124, %v2620, 0
      %2627 = vmatprep.subr.bf16.mxu0 0
      %2628 = vmatpush1.bf16.msra.mxu0 0
      %2629 = vmatprep.subr.bf16.mxu0 0
      %2630 = vmatpush1.bf16.msra.mxu0 0
      %2631 = vmatprep.subr.bf16.mxu0 0
      %2632 = vmatpush1.bf16.msra.mxu0 0
      %2633 = vmatprep.subr.bf16.mxu0 0
      %2634 = vmatpush1.bf16.msra.mxu0 0
      %2635 = vmatprep.subr.bf16.mxu0 0
      %2636 = vmatpush1.bf16.msra.mxu0 0
      %2637 = vmatprep.subr.bf16.mxu0 0
      %2638 = vmatpush1.bf16.msra.mxu0 0
      %2639 = vmatprep.subr.bf16.mxu0 0
      %2640 = vmatpush1.bf16.msra.mxu0 0
      %2641 = vmatprep.subr.bf16.mxu0 0
      %2642 = vmatpush1.bf16.msra.mxu0 %v2625
      %2643 = vmatprep.subr.bf16.mxu0 0
      %2644 = vmatpush2.bf16.msra.mxu0 0
      %2645 = vmatprep.subr.bf16.mxu0 0
      %2646 = vmatpush2.bf16.msra.mxu0 0
      %2647 = vmatprep.subr.bf16.mxu0 0
      %2648 = vmatpush2.bf16.msra.mxu0 0
      %2649 = vmatprep.subr.bf16.mxu0 0
      %2650 = vmatpush2.bf16.msra.mxu0 0
      %2651 = vmatprep.subr.bf16.mxu0 0
      %2652 = vmatpush2.bf16.msra.mxu0 0
      %2653 = vmatprep.subr.bf16.mxu0 0
      %2654 = vmatpush2.bf16.msra.mxu0 0
      %2655 = vmatprep.subr.bf16.mxu0 0
      %2656 = vmatpush2.bf16.msra.mxu0 0
      %2657 = vmatprep.subr.bf16.mxu0 0
      %2658 = vmatpush2.bf16.msra.mxu0 0
      %2659 = vmatprep.mubr.bf16.mxu0 0
      %2660 = vmatmul.mubr.bf16.gmra.mxu0 %v2622
      %v2661 = vpop.f32.mrf.mxu0
      %v2662 = vadd.f32 0.0, %v2661
      %v2663 = vpop.f32.mrf.mxu0
      %v2664 = vpop.f32.mrf.mxu0
      %v2665 = vpop.f32.mrf.mxu0
      %2666 = vdwg.mxu0
      %2668 = vrot.lane.b32.xlu0 %v2442, 8
      %v2669 = vpop.permute.xlu0 %2668
      %2672 = vrot.lane.b32.xlu0 %v2552, 16
      %v2673 = vpop.permute.xlu0 %2672
      %2676 = vrot.lane.b32.xlu0 %v2662, 24
      %v2677 = vpop.permute.xlu0 %2676
      %v2679 = vsel %vm1060, %v2331, %v2669
      %v2680 = vsel %vm1512, %v2679, %v2673
      %v2681 = vsel %vm1514, %v2680, %v2677
      %v2682 = vmul.f32 %v2145, 0.35355338
      %v2683 = vpack.c.bf16 %v2682, %v2682
      %v2684 = vpack.c.bf16 %v2217, %v2217
      %s2685 = scalar_lea.vmem [#allocation3], 8
      %v2686 = vld [vmem:[%s2685] sm:$0xff]
      %v2688 = vsel %vm1060, %v2683, 0
      %v2691 = vsel %vm1060, %v2684, 0
      %2693 = vmatprep.subr.bf16.mxu0 0
      %2694 = vmatpush1.bf16.xpose.msra.mxu0 0
      %2695 = vmatprep.subr.bf16.mxu0 0
      %2696 = vmatpush1.bf16.xpose.msra.mxu0 0
      %2697 = vmatprep.subr.bf16.mxu0 0
      %2698 = vmatpush1.bf16.xpose.msra.mxu0 0
      %2699 = vmatprep.subr.bf16.mxu0 0
      %2700 = vmatpush1.bf16.xpose.msra.mxu0 0
      %2701 = vmatprep.subr.bf16.mxu0 0
      %2702 = vmatpush1.bf16.xpose.msra.mxu0 0
      %2703 = vmatprep.subr.bf16.mxu0 0
      %2704 = vmatpush1.bf16.xpose.msra.mxu0 0
      %2705 = vmatprep.subr.bf16.mxu0 0
      %2706 = vmatpush1.bf16.xpose.msra.mxu0 0
      %2707 = vmatprep.subr.bf16.mxu0 0
      %2708 = vmatpush1.bf16.xpose.msra.mxu0 %v2691
      %2709 = vmatprep.subr.bf16.mxu0 0
      %2710 = vmatpush2.bf16.xpose.msra.mxu0 0
      %2711 = vmatprep.subr.bf16.mxu0 0
      %2712 = vmatpush2.bf16.xpose.msra.mxu0 0
      %2713 = vmatprep.subr.bf16.mxu0 0
      %2714 = vmatpush2.bf16.xpose.msra.mxu0 0
      %2715 = vmatprep.subr.bf16.mxu0 0
      %2716 = vmatpush2.bf16.xpose.msra.mxu0 0
      %2717 = vmatprep.subr.bf16.mxu0 0
      %2718 = vmatpush2.bf16.xpose.msra.mxu0 0
      %2719 = vmatprep.subr.bf16.mxu0 0
      %2720 = vmatpush2.bf16.xpose.msra.mxu0 0
      %2721 = vmatprep.subr.bf16.mxu0 0
      %2722 = vmatpush2.bf16.xpose.msra.mxu0 0
      %2723 = vmatprep.subr.bf16.mxu0 0
      %2724 = vmatpush2.bf16.xpose.msra.mxu0 0
      %2725 = vmatprep.mubr.bf16.mxu0 0
      %2726 = vmatmul.mubr.bf16.gmra.mxu0 %v2688
      %v2727 = vpop.f32.mrf.mxu0
      %v2728 = vadd.f32 %v2686, %v2727
      %v2729 = vpop.f32.mrf.mxu0
      %v2730 = vpop.f32.mrf.mxu0
      %v2731 = vpop.f32.mrf.mxu0
      %2732 = vdwg.mxu0
      %v2733 = vsel %vm1060, %v2728, -inf
      %2734 = vmax.xlane.f32.xlu0 %v2733
      %v2735 = vpop.xlane.xlu0 %2734
      %v2736 = vsub.f32 %v2728, %v2735
      %v2737 = vmul.f32 %v2736, 1.442695
      %v2738 = vpow.pop %v2737
      %v2739 = vsel %vm1060, %v2738, 0.0
      %2740 = vadd.xlane.f32.xlu0 %v2739
      %v2741 = vpop.xlane.xlu0 %2740
      %v2742 = vrcp.pop %v2741
      %v2743 = vmul.f32 %v2738, %v2742
      %v2744 = vpack.c.bf16 %v2743, %v2743
      %2746 = vrot.lane.b32.xlu0 %v2684, 96
      %v2747 = vpop.permute.xlu0 %2746
      %v2749 = vsel %vm1060, %v2744, 0
      %v2752 = vsel %vm1124, %v2747, 0
      %2754 = vmatprep.subr.bf16.mxu0 0
      %2755 = vmatpush1.bf16.msra.mxu0 0
      %2756 = vmatprep.subr.bf16.mxu0 0
      %2757 = vmatpush1.bf16.msra.mxu0 0
      %2758 = vmatprep.subr.bf16.mxu0 0
      %2759 = vmatpush1.bf16.msra.mxu0 0
      %2760 = vmatprep.subr.bf16.mxu0 0
      %2761 = vmatpush1.bf16.msra.mxu0 0
      %2762 = vmatprep.subr.bf16.mxu0 0
      %2763 = vmatpush1.bf16.msra.mxu0 0
      %2764 = vmatprep.subr.bf16.mxu0 0
      %2765 = vmatpush1.bf16.msra.mxu0 0
      %2766 = vmatprep.subr.bf16.mxu0 0
      %2767 = vmatpush1.bf16.msra.mxu0 0
      %2768 = vmatprep.subr.bf16.mxu0 0
      %2769 = vmatpush1.bf16.msra.mxu0 %v2752
      %2770 = vmatprep.subr.bf16.mxu0 0
      %2771 = vmatpush2.bf16.msra.mxu0 0
      %2772 = vmatprep.subr.bf16.mxu0 0
      %2773 = vmatpush2.bf16.msra.mxu0 0
      %2774 = vmatprep.subr.bf16.mxu0 0
      %2775 = vmatpush2.bf16.msra.mxu0 0
      %2776 = vmatprep.subr.bf16.mxu0 0
      %2777 = vmatpush2.bf16.msra.mxu0 0
      %2778 = vmatprep.subr.bf16.mxu0 0
      %2779 = vmatpush2.bf16.msra.mxu0 0
      %2780 = vmatprep.subr.bf16.mxu0 0
      %2781 = vmatpush2.bf16.msra.mxu0 0
      %2782 = vmatprep.subr.bf16.mxu0 0
      %2783 = vmatpush2.bf16.msra.mxu0 0
      %2784 = vmatprep.subr.bf16.mxu0 0
      %2785 = vmatpush2.bf16.msra.mxu0 0
      %2786 = vmatprep.mubr.bf16.mxu0 0
      %2787 = vmatmul.mubr.bf16.gmra.mxu0 %v2749
      %v2788 = vpop.f32.mrf.mxu0
      %v2789 = vadd.f32 0.0, %v2788
      %v2790 = vpop.f32.mrf.mxu0
      %v2791 = vpop.f32.mrf.mxu0
      %v2792 = vpop.f32.mrf.mxu0
      %2793 = vdwg.mxu0
      %2795 = vrot.lane.b32.xlu0 %v2683, 120
      %v2796 = vpop.permute.xlu0 %2795
      %2797 = vrot.lane.b32.xlu0 %v2684, 120
      %v2798 = vpop.permute.xlu0 %2797
      %v2800 = vsel %vm1060, %v2796, 0
      %v2803 = vsel %vm1060, %v2798, 0
      %2805 = vmatprep.subr.bf16.mxu0 0
      %2806 = vmatpush1.bf16.xpose.msra.mxu0 0
      %2807 = vmatprep.subr.bf16.mxu0 0
      %2808 = vmatpush1.bf16.xpose.msra.mxu0 0
      %2809 = vmatprep.subr.bf16.mxu0 0
      %2810 = vmatpush1.bf16.xpose.msra.mxu0 0
      %2811 = vmatprep.subr.bf16.mxu0 0
      %2812 = vmatpush1.bf16.xpose.msra.mxu0 0
      %2813 = vmatprep.subr.bf16.mxu0 0
      %2814 = vmatpush1.bf16.xpose.msra.mxu0 0
      %2815 = vmatprep.subr.bf16.mxu0 0
      %2816 = vmatpush1.bf16.xpose.msra.mxu0 0
      %2817 = vmatprep.subr.bf16.mxu0 0
      %2818 = vmatpush1.bf16.xpose.msra.mxu0 0
      %2819 = vmatprep.subr.bf16.mxu0 0
      %2820 = vmatpush1.bf16.xpose.msra.mxu0 %v2803
      %2821 = vmatprep.subr.bf16.mxu0 0
      %2822 = vmatpush2.bf16.xpose.msra.mxu0 0
      %2823 = vmatprep.subr.bf16.mxu0 0
      %2824 = vmatpush2.bf16.xpose.msra.mxu0 0
      %2825 = vmatprep.subr.bf16.mxu0 0
      %2826 = vmatpush2.bf16.xpose.msra.mxu0 0
      %2827 = vmatprep.subr.bf16.mxu0 0
      %2828 = vmatpush2.bf16.xpose.msra.mxu0 0
      %2829 = vmatprep.subr.bf16.mxu0 0
      %2830 = vmatpush2.bf16.xpose.msra.mxu0 0
      %2831 = vmatprep.subr.bf16.mxu0 0
      %2832 = vmatpush2.bf16.xpose.msra.mxu0 0
      %2833 = vmatprep.subr.bf16.mxu0 0
      %2834 = vmatpush2.bf16.xpose.msra.mxu0 0
      %2835 = vmatprep.subr.bf16.mxu0 0
      %2836 = vmatpush2.bf16.xpose.msra.mxu0 0
      %2837 = vmatprep.mubr.bf16.mxu0 0
      %2838 = vmatmul.mubr.bf16.gmra.mxu0 %v2800
      %v2839 = vpop.f32.mrf.mxu0
      %v2840 = vadd.f32 %v2686, %v2839
      %v2841 = vpop.f32.mrf.mxu0
      %v2842 = vpop.f32.mrf.mxu0
      %v2843 = vpop.f32.mrf.mxu0
      %2844 = vdwg.mxu0
      %v2845 = vsel %vm1060, %v2840, -inf
      %2846 = vmax.xlane.f32.xlu0 %v2845
      %v2847 = vpop.xlane.xlu0 %2846
      %v2848 = vsub.f32 %v2840, %v2847
      %v2849 = vmul.f32 %v2848, 1.442695
      %v2850 = vpow.pop %v2849
      %v2851 = vsel %vm1060, %v2850, 0.0
      %2852 = vadd.xlane.f32.xlu0 %v2851
      %v2853 = vpop.xlane.xlu0 %2852
      %v2854 = vrcp.pop %v2853
      %v2855 = vmul.f32 %v2850, %v2854
      %v2856 = vpack.c.bf16 %v2855, %v2855
      %2857 = vrot.lane.b32.xlu0 %v2684, 88
      %v2858 = vpop.permute.xlu0 %2857
      %v2860 = vsel %vm1060, %v2856, 0
      %v2863 = vsel %vm1124, %v2858, 0
      %2865 = vmatprep.subr.bf16.mxu0 0
      %2866 = vmatpush1.bf16.msra.mxu0 0
      %2867 = vmatprep.subr.bf16.mxu0 0
      %2868 = vmatpush1.bf16.msra.mxu0 0
      %2869 = vmatprep.subr.bf16.mxu0 0
      %2870 = vmatpush1.bf16.msra.mxu0 0
      %2871 = vmatprep.subr.bf16.mxu0 0
      %2872 = vmatpush1.bf16.msra.mxu0 0
      %2873 = vmatprep.subr.bf16.mxu0 0
      %2874 = vmatpush1.bf16.msra.mxu0 0
      %2875 = vmatprep.subr.bf16.mxu0 0
      %2876 = vmatpush1.bf16.msra.mxu0 0
      %2877 = vmatprep.subr.bf16.mxu0 0
      %2878 = vmatpush1.bf16.msra.mxu0 0
      %2879 = vmatprep.subr.bf16.mxu0 0
      %2880 = vmatpush1.bf16.msra.mxu0 %v2863
      %2881 = vmatprep.subr.bf16.mxu0 0
      %2882 = vmatpush2.bf16.msra.mxu0 0
      %2883 = vmatprep.subr.bf16.mxu0 0
      %2884 = vmatpush2.bf16.msra.mxu0 0
      %2885 = vmatprep.subr.bf16.mxu0 0
      %2886 = vmatpush2.bf16.msra.mxu0 0
      %2887 = vmatprep.subr.bf16.mxu0 0
      %2888 = vmatpush2.bf16.msra.mxu0 0
      %2889 = vmatprep.subr.bf16.mxu0 0
      %2890 = vmatpush2.bf16.msra.mxu0 0
      %2891 = vmatprep.subr.bf16.mxu0 0
      %2892 = vmatpush2.bf16.msra.mxu0 0
      %2893 = vmatprep.subr.bf16.mxu0 0
      %2894 = vmatpush2.bf16.msra.mxu0 0
      %2895 = vmatprep.subr.bf16.mxu0 0
      %2896 = vmatpush2.bf16.msra.mxu0 0
      %2897 = vmatprep.mubr.bf16.mxu0 0
      %2898 = vmatmul.mubr.bf16.gmra.mxu0 %v2860
      %v2899 = vpop.f32.mrf.mxu0
      %v2900 = vadd.f32 0.0, %v2899
      %v2901 = vpop.f32.mrf.mxu0
      %v2902 = vpop.f32.mrf.mxu0
      %v2903 = vpop.f32.mrf.mxu0
      %2904 = vdwg.mxu0
      %2905 = vrot.lane.b32.xlu0 %v2683, 112
      %v2906 = vpop.permute.xlu0 %2905
      %2907 = vrot.lane.b32.xlu0 %v2684, 112
      %v2908 = vpop.permute.xlu0 %2907
      %v2910 = vsel %vm1060, %v2906, 0
      %v2913 = vsel %vm1060, %v2908, 0
      %2915 = vmatprep.subr.bf16.mxu0 0
      %2916 = vmatpush1.bf16.xpose.msra.mxu0 0
      %2917 = vmatprep.subr.bf16.mxu0 0
      %2918 = vmatpush1.bf16.xpose.msra.mxu0 0
      %2919 = vmatprep.subr.bf16.mxu0 0
      %2920 = vmatpush1.bf16.xpose.msra.mxu0 0
      %2921 = vmatprep.subr.bf16.mxu0 0
      %2922 = vmatpush1.bf16.xpose.msra.mxu0 0
      %2923 = vmatprep.subr.bf16.mxu0 0
      %2924 = vmatpush1.bf16.xpose.msra.mxu0 0
      %2925 = vmatprep.subr.bf16.mxu0 0
      %2926 = vmatpush1.bf16.xpose.msra.mxu0 0
      %2927 = vmatprep.subr.bf16.mxu0 0
      %2928 = vmatpush1.bf16.xpose.msra.mxu0 0
      %2929 = vmatprep.subr.bf16.mxu0 0
      %2930 = vmatpush1.bf16.xpose.msra.mxu0 %v2913
      %2931 = vmatprep.subr.bf16.mxu0 0
      %2932 = vmatpush2.bf16.xpose.msra.mxu0 0
      %2933 = vmatprep.subr.bf16.mxu0 0
      %2934 = vmatpush2.bf16.xpose.msra.mxu0 0
      %2935 = vmatprep.subr.bf16.mxu0 0
      %2936 = vmatpush2.bf16.xpose.msra.mxu0 0
      %2937 = vmatprep.subr.bf16.mxu0 0
      %2938 = vmatpush2.bf16.xpose.msra.mxu0 0
      %2939 = vmatprep.subr.bf16.mxu0 0
      %2940 = vmatpush2.bf16.xpose.msra.mxu0 0
      %2941 = vmatprep.subr.bf16.mxu0 0
      %2942 = vmatpush2.bf16.xpose.msra.mxu0 0
      %2943 = vmatprep.subr.bf16.mxu0 0
      %2944 = vmatpush2.bf16.xpose.msra.mxu0 0
      %2945 = vmatprep.subr.bf16.mxu0 0
      %2946 = vmatpush2.bf16.xpose.msra.mxu0 0
      %2947 = vmatprep.mubr.bf16.mxu0 0
      %2948 = vmatmul.mubr.bf16.gmra.mxu0 %v2910
      %v2949 = vpop.f32.mrf.mxu0
      %v2950 = vadd.f32 %v2686, %v2949
      %v2951 = vpop.f32.mrf.mxu0
      %v2952 = vpop.f32.mrf.mxu0
      %v2953 = vpop.f32.mrf.mxu0
      %2954 = vdwg.mxu0
      %v2955 = vsel %vm1060, %v2950, -inf
      %2956 = vmax.xlane.f32.xlu0 %v2955
      %v2957 = vpop.xlane.xlu0 %2956
      %v2958 = vsub.f32 %v2950, %v2957
      %v2959 = vmul.f32 %v2958, 1.442695
      %v2960 = vpow.pop %v2959
      %v2961 = vsel %vm1060, %v2960, 0.0
      %2962 = vadd.xlane.f32.xlu0 %v2961
      %v2963 = vpop.xlane.xlu0 %2962
      %v2964 = vrcp.pop %v2963
      %v2965 = vmul.f32 %v2960, %v2964
      %v2966 = vpack.c.bf16 %v2965, %v2965
      %2967 = vrot.lane.b32.xlu0 %v2684, 80
      %v2968 = vpop.permute.xlu0 %2967
      %v2970 = vsel %vm1060, %v2966, 0
      %v2973 = vsel %vm1124, %v2968, 0
      %2975 = vmatprep.subr.bf16.mxu0 0
      %2976 = vmatpush1.bf16.msra.mxu0 0
      %2977 = vmatprep.subr.bf16.mxu0 0
      %2978 = vmatpush1.bf16.msra.mxu0 0
      %2979 = vmatprep.subr.bf16.mxu0 0
      %2980 = vmatpush1.bf16.msra.mxu0 0
      %2981 = vmatprep.subr.bf16.mxu0 0
      %2982 = vmatpush1.bf16.msra.mxu0 0
      %2983 = vmatprep.subr.bf16.mxu0 0
      %2984 = vmatpush1.bf16.msra.mxu0 0
      %2985 = vmatprep.subr.bf16.mxu0 0
      %2986 = vmatpush1.bf16.msra.mxu0 0
      %2987 = vmatprep.subr.bf16.mxu0 0
      %2988 = vmatpush1.bf16.msra.mxu0 0
      %2989 = vmatprep.subr.bf16.mxu0 0
      %2990 = vmatpush1.bf16.msra.mxu0 %v2973
      %2991 = vmatprep.subr.bf16.mxu0 0
      %2992 = vmatpush2.bf16.msra.mxu0 0
      %2993 = vmatprep.subr.bf16.mxu0 0
      %2994 = vmatpush2.bf16.msra.mxu0 0
      %2995 = vmatprep.subr.bf16.mxu0 0
      %2996 = vmatpush2.bf16.msra.mxu0 0
      %2997 = vmatprep.subr.bf16.mxu0 0
      %2998 = vmatpush2.bf16.msra.mxu0 0
      %2999 = vmatprep.subr.bf16.mxu0 0
      %3000 = vmatpush2.bf16.msra.mxu0 0
      %3001 = vmatprep.subr.bf16.mxu0 0
      %3002 = vmatpush2.bf16.msra.mxu0 0
      %3003 = vmatprep.subr.bf16.mxu0 0
      %3004 = vmatpush2.bf16.msra.mxu0 0
      %3005 = vmatprep.subr.bf16.mxu0 0
      %3006 = vmatpush2.bf16.msra.mxu0 0
      %3007 = vmatprep.mubr.bf16.mxu0 0
      %3008 = vmatmul.mubr.bf16.gmra.mxu0 %v2970
      %v3009 = vpop.f32.mrf.mxu0
      %v3010 = vadd.f32 0.0, %v3009
      %v3011 = vpop.f32.mrf.mxu0
      %v3012 = vpop.f32.mrf.mxu0
      %v3013 = vpop.f32.mrf.mxu0
      %3014 = vdwg.mxu0
      %3015 = vrot.lane.b32.xlu0 %v2683, 104
      %v3016 = vpop.permute.xlu0 %3015
      %3017 = vrot.lane.b32.xlu0 %v2684, 104
      %v3018 = vpop.permute.xlu0 %3017
      %v3020 = vsel %vm1060, %v3016, 0
      %v3023 = vsel %vm1060, %v3018, 0
      %3025 = vmatprep.subr.bf16.mxu0 0
      %3026 = vmatpush1.bf16.xpose.msra.mxu0 0
      %3027 = vmatprep.subr.bf16.mxu0 0
      %3028 = vmatpush1.bf16.xpose.msra.mxu0 0
      %3029 = vmatprep.subr.bf16.mxu0 0
      %3030 = vmatpush1.bf16.xpose.msra.mxu0 0
      %3031 = vmatprep.subr.bf16.mxu0 0
      %3032 = vmatpush1.bf16.xpose.msra.mxu0 0
      %3033 = vmatprep.subr.bf16.mxu0 0
      %3034 = vmatpush1.bf16.xpose.msra.mxu0 0
      %3035 = vmatprep.subr.bf16.mxu0 0
      %3036 = vmatpush1.bf16.xpose.msra.mxu0 0
      %3037 = vmatprep.subr.bf16.mxu0 0
      %3038 = vmatpush1.bf16.xpose.msra.mxu0 0
      %3039 = vmatprep.subr.bf16.mxu0 0
      %3040 = vmatpush1.bf16.xpose.msra.mxu0 %v3023
      %3041 = vmatprep.subr.bf16.mxu0 0
      %3042 = vmatpush2.bf16.xpose.msra.mxu0 0
      %3043 = vmatprep.subr.bf16.mxu0 0
      %3044 = vmatpush2.bf16.xpose.msra.mxu0 0
      %3045 = vmatprep.subr.bf16.mxu0 0
      %3046 = vmatpush2.bf16.xpose.msra.mxu0 0
      %3047 = vmatprep.subr.bf16.mxu0 0
      %3048 = vmatpush2.bf16.xpose.msra.mxu0 0
      %3049 = vmatprep.subr.bf16.mxu0 0
      %3050 = vmatpush2.bf16.xpose.msra.mxu0 0
      %3051 = vmatprep.subr.bf16.mxu0 0
      %3052 = vmatpush2.bf16.xpose.msra.mxu0 0
      %3053 = vmatprep.subr.bf16.mxu0 0
      %3054 = vmatpush2.bf16.xpose.msra.mxu0 0
      %3055 = vmatprep.subr.bf16.mxu0 0
      %3056 = vmatpush2.bf16.xpose.msra.mxu0 0
      %3057 = vmatprep.mubr.bf16.mxu0 0
      %3058 = vmatmul.mubr.bf16.gmra.mxu0 %v3020
      %v3059 = vpop.f32.mrf.mxu0
      %v3060 = vadd.f32 %v2686, %v3059
      %v3061 = vpop.f32.mrf.mxu0
      %v3062 = vpop.f32.mrf.mxu0
      %v3063 = vpop.f32.mrf.mxu0
      %3064 = vdwg.mxu0
      %v3065 = vsel %vm1060, %v3060, -inf
      %3066 = vmax.xlane.f32.xlu0 %v3065
      %v3067 = vpop.xlane.xlu0 %3066
      %v3068 = vsub.f32 %v3060, %v3067
      %v3069 = vmul.f32 %v3068, 1.442695
      %v3070 = vpow.pop %v3069
      %v3071 = vsel %vm1060, %v3070, 0.0
      %3072 = vadd.xlane.f32.xlu0 %v3071
      %v3073 = vpop.xlane.xlu0 %3072
      %v3074 = vrcp.pop %v3073
      %v3075 = vmul.f32 %v3070, %v3074
      %v3076 = vpack.c.bf16 %v3075, %v3075
      %3077 = vrot.lane.b32.xlu0 %v2684, 72
      %v3078 = vpop.permute.xlu0 %3077
      %v3080 = vsel %vm1060, %v3076, 0
      %v3083 = vsel %vm1124, %v3078, 0
      %3085 = vmatprep.subr.bf16.mxu0 0
      %3086 = vmatpush1.bf16.msra.mxu0 0
      %3087 = vmatprep.subr.bf16.mxu0 0
      %3088 = vmatpush1.bf16.msra.mxu0 0
      %3089 = vmatprep.subr.bf16.mxu0 0
      %3090 = vmatpush1.bf16.msra.mxu0 0
      %3091 = vmatprep.subr.bf16.mxu0 0
      %3092 = vmatpush1.bf16.msra.mxu0 0
      %3093 = vmatprep.subr.bf16.mxu0 0
      %3094 = vmatpush1.bf16.msra.mxu0 0
      %3095 = vmatprep.subr.bf16.mxu0 0
      %3096 = vmatpush1.bf16.msra.mxu0 0
      %3097 = vmatprep.subr.bf16.mxu0 0
      %3098 = vmatpush1.bf16.msra.mxu0 0
      %3099 = vmatprep.subr.bf16.mxu0 0
      %3100 = vmatpush1.bf16.msra.mxu0 %v3083
      %3101 = vmatprep.subr.bf16.mxu0 0
      %3102 = vmatpush2.bf16.msra.mxu0 0
      %3103 = vmatprep.subr.bf16.mxu0 0
      %3104 = vmatpush2.bf16.msra.mxu0 0
      %3105 = vmatprep.subr.bf16.mxu0 0
      %3106 = vmatpush2.bf16.msra.mxu0 0
      %3107 = vmatprep.subr.bf16.mxu0 0
      %3108 = vmatpush2.bf16.msra.mxu0 0
      %3109 = vmatprep.subr.bf16.mxu0 0
      %3110 = vmatpush2.bf16.msra.mxu0 0
      %3111 = vmatprep.subr.bf16.mxu0 0
      %3112 = vmatpush2.bf16.msra.mxu0 0
      %3113 = vmatprep.subr.bf16.mxu0 0
      %3114 = vmatpush2.bf16.msra.mxu0 0
      %3115 = vmatprep.subr.bf16.mxu0 0
      %3116 = vmatpush2.bf16.msra.mxu0 0
      %3117 = vmatprep.mubr.bf16.mxu0 0
      %3118 = vmatmul.mubr.bf16.gmra.mxu0 %v3080
      %v3119 = vpop.f32.mrf.mxu0
      %v3120 = vadd.f32 0.0, %v3119
      %v3121 = vpop.f32.mrf.mxu0
      %v3122 = vpop.f32.mrf.mxu0
      %v3123 = vpop.f32.mrf.mxu0
      %3124 = vdwg.mxu0
      %3126 = vrot.lane.b32.xlu0 %v2900, 8
      %v3127 = vpop.permute.xlu0 %3126
      %3130 = vrot.lane.b32.xlu0 %v3010, 16
      %v3131 = vpop.permute.xlu0 %3130
      %3134 = vrot.lane.b32.xlu0 %v3120, 24
      %v3135 = vpop.permute.xlu0 %3134
      %v3137 = vsel %vm1060, %v2789, %v3127
      %v3138 = vsel %vm1512, %v3137, %v3131
      %v3139 = vsel %vm1514, %v3138, %v3135
      %v3140 = vpack.c.bf16 %v3139, %v2681
      %v3142 = vlaneseq
      %v3143 = vshrl.u32 %v3142, 7
      %v3144 = vsub.s32 0, %v3143
      %v3145 = vrot.slane %v2224, %v3144
      %v3151 = vunpack.c.l.b16 %v2220
      %v3152 = vunpack.c.l.b16 %v2221
      %v3153 = vunpack.c.l.b16 %v2222
      %v3154 = vunpack.c.l.b16 %v2223
      %v3155 = vpack.c.b16 %v3152, %v3151
      %v3156 = vpack.c.b16 %v3154, %v3153
      %v3160 = vsel %vm1003, %v3140, 0
      %3162 = vmatprep.subr.bf16.mxu0 0
      %3163 = vmatpush1.bf16.msra.mxu0 0
      %3164 = vmatprep.subr.bf16.mxu0 0
      %3165 = vmatpush1.bf16.msra.mxu0 0
      %3166 = vmatprep.subr.bf16.mxu0 0
      %3167 = vmatpush1.bf16.msra.mxu0 0
      %3168 = vmatprep.subr.bf16.mxu0 0
      %3169 = vmatpush1.bf16.msra.mxu0 0
      %3170 = vmatprep.subr.bf16.mxu0 0
      %3171 = vmatpush1.bf16.msra.mxu0 0
      %3172 = vmatprep.subr.bf16.mxu0 0
      %3173 = vmatpush1.bf16.msra.mxu0 0
      %3174 = vmatprep.subr.bf16.mxu0 0
      %3175 = vmatpush1.bf16.msra.mxu0 %v3156
      %3176 = vmatprep.subr.bf16.mxu0 0
      %3177 = vmatpush1.bf16.msra.mxu0 %v3155
      %3178 = vmatprep.subr.bf16.mxu0 0
      %3179 = vmatpush2.bf16.msra.mxu0 0
      %3180 = vmatprep.subr.bf16.mxu0 0
      %3181 = vmatpush2.bf16.msra.mxu0 0
      %3182 = vmatprep.subr.bf16.mxu0 0
      %3183 = vmatpush2.bf16.msra.mxu0 0
      %3184 = vmatprep.subr.bf16.mxu0 0
      %3185 = vmatpush2.bf16.msra.mxu0 0
      %3186 = vmatprep.subr.bf16.mxu0 0
      %3187 = vmatpush2.bf16.msra.mxu0 0
      %3188 = vmatprep.subr.bf16.mxu0 0
      %3189 = vmatpush2.bf16.msra.mxu0 0
      %3190 = vmatprep.subr.bf16.mxu0 0
      %3191 = vmatpush2.bf16.msra.mxu0 0
      %3192 = vmatprep.subr.bf16.mxu0 0
      %3193 = vmatpush2.bf16.msra.mxu0 0
      %3194 = vmatprep.mubr.bf16.mxu0 0
      %3195 = vmatmul.mubr.bf16.gmra.mxu0 %v3160
      %v3196 = vpop.f32.mrf.mxu0
      %v3197 = vadd.f32 %v3145, %v3196
      %v3198 = vpop.f32.mrf.mxu0
      %v3199 = vpop.f32.mrf.mxu0
      %v3200 = vadd.f32 %v3145, %v3199
      %v3201 = vpop.f32.mrf.mxu0
      %3202 = vdwg.mxu0
      %v3203 = vadd.f32 %v2078, %v3197
      %v3204 = vadd.f32 %v2079, %v3200
      %v3205 = vsel %vm1003, %v3203, 0.0
      %3206 = vadd.xlane.f32.xlu0 %v3205
      %v3207 = vpop.xlane.xlu0 %3206
      %v3208 = vsel %vm1003, %v3204, 0.0
      %3209 = vadd.xlane.f32.xlu0 %v3208
      %v3210 = vpop.xlane.xlu0 %3209
      %v3211 = vmul.f32 %v3207, %v2047
      %v3212 = vmul.f32 %v3210, %v2047
      %v3213 = vsub.f32 %v3203, %v3211
      %v3214 = vsub.f32 %v3204, %v3212
      %v3215 = vmul.f32 %v3213, %v3213
      %v3216 = vmul.f32 %v3214, %v3214
      %v3217 = vsel %vm1003, %v3215, 0.0
      %3218 = vadd.xlane.f32.xlu0 %v3217
      %v3219 = vpop.xlane.xlu0 %3218
      %v3220 = vsel %vm1003, %v3216, 0.0
      %3221 = vadd.xlane.f32.xlu0 %v3220
      %v3222 = vpop.xlane.xlu0 %3221
      %v3223 = vmul.f32 %v3219, %v2047
      %v3224 = vmul.f32 %v3222, %v2047
      %v3225 = vadd.f32 %v3223, 1e-05
      %v3226 = vadd.f32 %v3224, 1e-05
      %v3227 = vrsqrt.pop %v3225
      %v3228 = vrsqrt.pop %v3226
      %v3229 = vmul.f32 %v3213, %v3227
      %v3230 = vmul.f32 %v3214, %v3228
      %v3231 = vlaneseq
      %v3232 = vshrl.u32 %v3231, 7
      %v3233 = vsub.s32 1, %v3232
      %v3234 = vrot.slane %v977, %v3233
      %v3235 = vmul.f32 %v3229, %v3234
      %v3236 = vmul.f32 %v3230, %v3234
      %v3237 = vlaneseq
      %v3238 = vshrl.u32 %v3237, 7
      %v3239 = vsub.s32 1, %v3238
      %v3240 = vrot.slane %v978, %v3239
      %v3241 = vadd.f32 %v3235, %v3240
      %v3242 = vadd.f32 %v3236, %v3240
      %v3243 = vpack.c.bf16 %v3242, %v3241
      %v3244 = vld [vmem:[%s847] sm:$0xf]
      %v3245 = vld [vmem:[%s847 + $0x4] sm:$0xf]
      %v3246 = vld [vmem:[%s847 + $0x8] sm:$0xf]
      %v3247 = vld [vmem:[%s847 + $0xc] sm:$0xf]
      %v3248 = vld [vmem:[%s850] sm:$0x1]
      %v3250 = vlaneseq
      %v3251 = vshrl.u32 %v3250, 7
      %v3252 = vsub.s32 0, %v3251
      %v3253 = vrot.slane %v3248, %v3252
      %v3259 = vunpack.c.l.b16 %v3244
      %v3260 = vunpack.c.l.b16 %v3245
      %v3261 = vunpack.c.l.b16 %v3246
      %v3262 = vunpack.c.l.b16 %v3247
      %v3263 = vpack.c.b16 %v3260, %v3259
      %v3264 = vpack.c.b16 %v3262, %v3261
      %v3268 = vsel %vm1003, %v3243, 0
      %3270 = vmatprep.subr.bf16.mxu0 0
      %3271 = vmatpush1.bf16.msra.mxu0 0
      %3272 = vmatprep.subr.bf16.mxu0 0
      %3273 = vmatpush1.bf16.msra.mxu0 0
      %3274 = vmatprep.subr.bf16.mxu0 0
      %3275 = vmatpush1.bf16.msra.mxu0 0
      %3276 = vmatprep.subr.bf16.mxu0 0
      %3277 = vmatpush1.bf16.msra.mxu0 0
      %3278 = vmatprep.subr.bf16.mxu0 0
      %3279 = vmatpush1.bf16.msra.mxu0 0
      %3280 = vmatprep.subr.bf16.mxu0 0
      %3281 = vmatpush1.bf16.msra.mxu0 0
      %3282 = vmatprep.subr.bf16.mxu0 0
      %3283 = vmatpush1.bf16.msra.mxu0 %v3264
      %3284 = vmatprep.subr.bf16.mxu0 0
      %3285 = vmatpush1.bf16.msra.mxu0 %v3263
      %3286 = vmatprep.subr.bf16.mxu0 0
      %3287 = vmatpush2.bf16.msra.mxu0 0
      %3288 = vmatprep.subr.bf16.mxu0 0
      %3289 = vmatpush2.bf16.msra.mxu0 0
      %3290 = vmatprep.subr.bf16.mxu0 0
      %3291 = vmatpush2.bf16.msra.mxu0 0
      %3292 = vmatprep.subr.bf16.mxu0 0
      %3293 = vmatpush2.bf16.msra.mxu0 0
      %3294 = vmatprep.subr.bf16.mxu0 0
      %3295 = vmatpush2.bf16.msra.mxu0 0
      %3296 = vmatprep.subr.bf16.mxu0 0
      %3297 = vmatpush2.bf16.msra.mxu0 0
      %3298 = vmatprep.subr.bf16.mxu0 0
      %3299 = vmatpush2.bf16.msra.mxu0 0
      %3300 = vmatprep.subr.bf16.mxu0 0
      %3301 = vmatpush2.bf16.msra.mxu0 0
      %3302 = vmatprep.mubr.bf16.mxu0 0
      %3303 = vmatmul.mubr.bf16.gmra.mxu0 %v3268
      %v3304 = vpop.f32.mrf.mxu0
      %v3305 = vadd.f32 %v3253, %v3304
      %v3306 = vpop.f32.mrf.mxu0
      %v3307 = vpop.f32.mrf.mxu0
      %v3308 = vadd.f32 %v3253, %v3307
      %v3309 = vpop.f32.mrf.mxu0
      %3310 = vdwg.mxu0
      %v3311 = vmax.f32 %v3305, 0.0
      %v3312 = vmax.f32 %v3308, 0.0
      %v3313 = vpack.c.bf16 %v3312, %v3311
      %v3314 = vld [vmem:[%s855] sm:$0xf]
      %v3315 = vld [vmem:[%s855 + $0x4] sm:$0xf]
      %v3316 = vld [vmem:[%s855 + $0x8] sm:$0xf]
      %v3317 = vld [vmem:[%s855 + $0xc] sm:$0xf]
      %v3318 = vld [vmem:[%s855 + $0x10] sm:$0xf]
      %v3319 = vld [vmem:[%s855 + $0x14] sm:$0xf]
      %v3320 = vld [vmem:[%s855 + $0x18] sm:$0xf]
      %v3321 = vld [vmem:[%s855 + $0x1c] sm:$0xf]
      %v3322 = vld [vmem:[%s858] sm:$0x1]
      %v3324 = vlaneseq
      %v3325 = vshrl.u32 %v3324, 7
      %v3326 = vsub.s32 0, %v3325
      %v3327 = vrot.slane %v3322, %v3326
      %v3337 = vunpack.c.l.b16 %v3314
      %v3338 = vunpack.c.l.b16 %v3315
      %v3339 = vunpack.c.l.b16 %v3316
      %v3340 = vunpack.c.l.b16 %v3317
      %v3341 = vunpack.c.l.b16 %v3318
      %v3342 = vunpack.c.l.b16 %v3319
      %v3343 = vunpack.c.l.b16 %v3320
      %v3344 = vunpack.c.l.b16 %v3321
      %v3345 = vpack.c.b16 %v3338, %v3337
      %v3346 = vpack.c.b16 %v3340, %v3339
      %v3347 = vpack.c.b16 %v3342, %v3341
      %v3348 = vpack.c.b16 %v3344, %v3343
      %vm3353 = vcmask 523264
      %v3355 = vsel %vm3353, %v3313, 0
      %3357 = vmatprep.subr.bf16.mxu0 0
      %3358 = vmatpush1.bf16.msra.mxu0 0
      %3359 = vmatprep.subr.bf16.mxu0 0
      %3360 = vmatpush1.bf16.msra.mxu0 0
      %3361 = vmatprep.subr.bf16.mxu0 0
      %3362 = vmatpush1.bf16.msra.mxu0 0
      %3363 = vmatprep.subr.bf16.mxu0 0
      %3364 = vmatpush1.bf16.msra.mxu0 0
      %3365 = vmatprep.subr.bf16.mxu0 0
      %3366 = vmatpush1.bf16.msra.mxu0 %v3348
      %3367 = vmatprep.subr.bf16.mxu0 0
      %3368 = vmatpush1.bf16.msra.mxu0 %v3347
      %3369 = vmatprep.subr.bf16.mxu0 0
      %3370 = vmatpush1.bf16.msra.mxu0 %v3346
      %3371 = vmatprep.subr.bf16.mxu0 0
      %3372 = vmatpush1.bf16.msra.mxu0 %v3345
      %3373 = vmatprep.subr.bf16.mxu0 0
      %3374 = vmatpush2.bf16.msra.mxu0 0
      %3375 = vmatprep.subr.bf16.mxu0 0
      %3376 = vmatpush2.bf16.msra.mxu0 0
      %3377 = vmatprep.subr.bf16.mxu0 0
      %3378 = vmatpush2.bf16.msra.mxu0 0
      %3379 = vmatprep.subr.bf16.mxu0 0
      %3380 = vmatpush2.bf16.msra.mxu0 0
      %3381 = vmatprep.subr.bf16.mxu0 0
      %3382 = vmatpush2.bf16.msra.mxu0 0
      %3383 = vmatprep.subr.bf16.mxu0 0
      %3384 = vmatpush2.bf16.msra.mxu0 0
      %3385 = vmatprep.subr.bf16.mxu0 0
      %3386 = vmatpush2.bf16.msra.mxu0 0
      %3387 = vmatprep.subr.bf16.mxu0 0
      %3388 = vmatpush2.bf16.msra.mxu0 0
      %3389 = vmatprep.mubr.bf16.mxu0 0
      %3390 = vmatmul.mubr.bf16.gmra.mxu0 %v3355
      %v3391 = vpop.f32.mrf.mxu0
      %v3392 = vadd.f32 %v3327, %v3391
      %v3393 = vpop.f32.mrf.mxu0
      %v3394 = vpop.f32.mrf.mxu0
      %v3395 = vadd.f32 %v3327, %v3394
      %v3396 = vpop.f32.mrf.mxu0
      %3397 = vdwg.mxu0
      %v3398 = vadd.f32 %v3241, %v3392
      %v3399 = vadd.f32 %v3242, %v3395
      %v3400 = vsel %vm1003, %v3398, 0.0
      %3401 = vadd.xlane.f32.xlu0 %v3400
      %v3402 = vpop.xlane.xlu0 %3401
      %v3403 = vsel %vm1003, %v3399, 0.0
      %3404 = vadd.xlane.f32.xlu0 %v3403
      %v3405 = vpop.xlane.xlu0 %3404
      %v3406 = vmul.f32 %v3402, %v2047
      %v3407 = vmul.f32 %v3405, %v2047
      %v3408 = vsub.f32 %v3398, %v3406
      %v3409 = vsub.f32 %v3399, %v3407
      %v3410 = vmul.f32 %v3408, %v3408
      %v3411 = vmul.f32 %v3409, %v3409
      %v3412 = vsel %vm1003, %v3410, 0.0
      %3413 = vadd.xlane.f32.xlu0 %v3412
      %v3414 = vpop.xlane.xlu0 %3413
      %v3415 = vsel %vm1003, %v3411, 0.0
      %3416 = vadd.xlane.f32.xlu0 %v3415
      %v3417 = vpop.xlane.xlu0 %3416
      %v3418 = vmul.f32 %v3414, %v2047
      %v3419 = vmul.f32 %v3417, %v2047
      %v3420 = vadd.f32 %v3418, 1e-05
      %v3421 = vadd.f32 %v3419, 1e-05
      %v3422 = vrsqrt.pop %v3420
      %v3423 = vrsqrt.pop %v3421
      %v3424 = vmul.f32 %v3408, %v3422
      %v3425 = vmul.f32 %v3409, %v3423
      %v3426 = vlaneseq
      %v3427 = vshrl.u32 %v3426, 7
      %v3428 = vsub.s32 2, %v3427
      %v3429 = vrot.slane %v977, %v3428
      %v3430 = vmul.f32 %v3424, %v3429
      %v3431 = vmul.f32 %v3425, %v3429
      %v3432 = vlaneseq
      %v3433 = vshrl.u32 %v3432, 7
      %v3434 = vsub.s32 2, %v3433
      %v3435 = vrot.slane %v978, %v3434
      %v3436 = vadd.f32 %v3430, %v3435
      %v3437 = vadd.f32 %v3431, %v3435
      %3438 = vst.msk [vmem:[%s20] sm:$0xff] %vm1003, %v3436
      %3439 = vst.msk [vmem:[%s20 + $0x8] sm:$0xff] %vm1003, %v3437
      // Predicated region
      $region105: #{translator_forward.4} parent=99 // pred_check
        %p3440 = pneg %p544
      $region106: #{translator_forward.4} parent=99 // pred_check_branch
        %3442 = sbr.rel (%p3440) target = $region108
      $region107: #{translator_forward.4} parent=99 // pred_region
        _
      $region108: #{translator_forward.4} parent=99 // pred_fallthru
        _
      // Predicated region
      $region109: #{translator_forward.4} parent=99 // pred_check
        %p3443 = pneg %p544
      $region110: #{translator_forward.4} parent=99 // pred_check_branch
        %3445 = sbr.rel (%p3443) target = $region112
      $region111: #{translator_forward.4} parent=99 // pred_region
        _
      $region112: #{translator_forward.4} parent=99 // pred_fallthru
        _
    $region100: #{translator_forward.4} parent=5 // pred_fallthru
      _
    %p3446 = scmp.le.s32.totalorder 2, %s26
    // Predicated region
    $region113: #{translator_forward.4} parent=5 // pred_check
      %p3447 = pneg %p3446
    $region114: #{translator_forward.4} parent=5 // pred_check_branch
      %3449 = sbr.rel (%p3447) target = $region116
    $region115: #{translator_forward.4} parent=5 // pred_region
      %s3450 = ssub.s32 %s26, 2
    $region116: #{translator_forward.4} parent=5 // pred_fallthru
      _
  $region6: #{translator_forward.4} parent=0 // loop_footer
    %s30 = sadd.s32 1, %s26
  $region7: #{translator_forward.4} parent=0 // loop_footer_branch
    %25 = sbr.rel target = $region3
  $region8: #{translator_forward.4} parent=0 // loop_exit
    _

</llo_original>
